<compile_context>
chip_gen: v5e
topology: v5e:2x2
jax: 0.10.0
libtpu: 0.0.40
codegen_flags: <defaults>
</compile_context>

<pallas_src>
import functools

import jax
import jax.numpy as jnp
import numpy as np
from jax.experimental import pallas as pl
from jax.experimental.pallas import tpu as pltpu

EPS = 1e-5
EXPANSION = 4
MAX_TILE_M = 512     # GEMM rows per grid step (bf16 raw outputs keep this well inside VMEM)
MAX_TILE_H = 16      # output rows per conv2 grid step


def _pick_tile(m, cap):
    # Single full block when it fits (block == full dim, no alignment issue),
    # else a fixed aligned tile with a masked partial last block.
    return m if m <= cap else cap


def _num_blocks(m, t):
    return (m + t - 1) // t


# ---------------------------------------------------------------------------
# 1x1 convs: tiled GEMM + per-block partial channel stats (sum, sumsq).
# Optionally applies a preceding BN (scale/shift) + ReLU to the input tile
# (used to fuse BN2+ReLU into conv3's GEMM).
# ---------------------------------------------------------------------------
def _mm_tail(out, raw_ref, stats_ref, *, true_m, tile_m):
    if true_m % tile_m != 0:                       # only the (static) ragged case
        row = pl.program_id(0) * tile_m + jax.lax.broadcasted_iota(
            jnp.int32, out.shape, 0)
        out = jnp.where(row < true_m, out, 0.0)
    raw_ref[...] = out.astype(raw_ref.dtype)       # bf16 intermediate to HBM
    stats_ref[0:1, :] = jnp.sum(out, axis=0, keepdims=True)
    stats_ref[1:2, :] = jnp.sum(out * out, axis=0, keepdims=True)


def _mm_stats_kernel(x_ref, w_ref, raw_ref, stats_ref, *, true_m, tile_m):
    out = jnp.dot(x_ref[...].astype(jnp.bfloat16), w_ref[...],
                  preferred_element_type=jnp.float32)
    _mm_tail(out, raw_ref, stats_ref, true_m=true_m, tile_m=tile_m)


def _mm_preact_stats_kernel(x_ref, s_ref, b_ref, w_ref, raw_ref, stats_ref,
                            *, true_m, tile_m):
    h = x_ref[...].astype(jnp.float32) * s_ref[...] + b_ref[...]
    h = jnp.maximum(h, 0.0).astype(jnp.bfloat16)
    out = jnp.dot(h, w_ref[...], preferred_element_type=jnp.float32)
    _mm_tail(out, raw_ref, stats_ref, true_m=true_m, tile_m=tile_m)


def matmul_stats(x2d, w, scale=None, shift=None):
    m, cin = x2d.shape
    cout = w.shape[1]
    tile_m = _pick_tile(m, MAX_TILE_M)
    nb = _num_blocks(m, tile_m)

    x_spec = pl.BlockSpec((tile_m, cin), lambda i: (i, 0))
    w_spec = pl.BlockSpec((cin, cout), lambda i: (0, 0))      # VMEM-resident weights
    vec_spec = pl.BlockSpec((1, cin), lambda i: (0, 0))
    if scale is None:
        kern = functools.partial(_mm_stats_kernel, true_m=m, tile_m=tile_m)
        in_specs, args = [x_spec, w_spec], (x2d, w)
    else:
        kern = functools.partial(_mm_preact_stats_kernel, true_m=m, tile_m=tile_m)
        in_specs, args = [x_spec, vec_spec, vec_spec, w_spec], (x2d, scale, shift, w)

    raw, stats = pl.pallas_call(
        kern,
        out_shape=(jax.ShapeDtypeStruct((m, cout), jnp.bfloat16),
                   jax.ShapeDtypeStruct((nb, 2, cout), jnp.float32)),
        grid=(nb,),
        in_specs=in_specs,
        out_specs=(pl.BlockSpec((tile_m, cout), lambda i: (i, 0)),
                   pl.BlockSpec((None, 2, cout), lambda i: (i, 0, 0))),  # partial stats
        compiler_params=pltpu.CompilerParams(dimension_semantics=("parallel",)),
        cost_estimate=pl.CostEstimate(
            flops=2 * m * cin * cout, transcendentals=0,
            bytes_accessed=int(x2d.size * x2d.dtype.itemsize
                               + w.size * w.dtype.itemsize + m * cout * 2)),
    )(*args)
    return raw, jnp.sum(stats, axis=0)


# ---------------------------------------------------------------------------
# 3x3 stride-s conv: row-tiled, kh looped in-kernel, kw folded into GEMM-K.
# ---------------------------------------------------------------------------
def _conv_tail(acc, raw_ref, stats_ref, tile_h, wout):
    cout = raw_ref.shape[-1]
    raw_ref[...] = acc.reshape(tile_h, wout, cout).astype(raw_ref.dtype)
    stats_ref[0:1, :] = jnp.sum(acc, axis=0, keepdims=True)
    stats_ref[1:2, :] = jnp.sum(acc * acc, axis=0, keepdims=True)


def _conv3x3_s1_kernel(x_ref, w_ref, raw_ref, stats_ref, *, tile_h, wout, c):
    # x_ref: (H+2, W+2, C) padded image (whole image resident per n).
    r0 = pl.program_id(1) * tile_h
    cout = raw_ref.shape[-1]
    acc = jnp.zeros((tile_h * wout, cout), jnp.float32)
    for kh in range(3):
        rows = x_ref[pl.ds(r0 + kh, tile_h), :, :]               # (tile_h, W+2, C)
        xk = jnp.concatenate([rows[:, kw:kw + wout, :] for kw in range(3)],
                             axis=-1)                             # (tile_h, wout, 3C)
        acc = acc + jnp.dot(xk.reshape(tile_h * wout, 3 * c), w_ref[kh],
                            preferred_element_type=jnp.float32)
    _conv_tail(acc, raw_ref, stats_ref, tile_h, wout)


def _conv3x3_s2_kernel(xe_ref, xo_ref, w_ref, raw_ref, stats_ref, *, tile_h, wout, c):
    # xe/xo: even/odd padded rows, W parity packed into channels: (Hout+1, Wout+1, 2C)
    #   xe[i, j, 0:C]  = xpad[2i, 2j],  xe[i, j, C:2C] = xpad[2i, 2j+1]   (xo: rows 2i+1)
    r0 = pl.program_id(1) * tile_h
    cout = raw_ref.shape[-1]
    acc = jnp.zeros((tile_h * wout, cout), jnp.float32)
    row_sets = (xe_ref[pl.ds(r0, tile_h), :, :],        # kh = 0 -> padded rows 2*oh
                xo_ref[pl.ds(r0, tile_h), :, :],        # kh = 1 -> padded rows 2*oh+1
                xe_ref[pl.ds(r0 + 1, tile_h), :, :])    # kh = 2 -> padded rows 2*oh+2
    for kh in range(3):
        rows = row_sets[kh]                              # (tile_h, wout+1, 2C)
        xk = jnp.concatenate([rows[:, 0:wout, 0:c],          # kw = 0 (even cols)
                              rows[:, 0:wout, c:2 * c],      # kw = 1 (odd cols)
                              rows[:, 1:wout + 1, 0:c]],     # kw = 2 (even cols + 1)
                             axis=-1)
        acc = acc + jnp.dot(xk.reshape(tile_h * wout, 3 * c), w_ref[kh],
                            preferred_element_type=jnp.float32)
    _conv_tail(acc, raw_ref, stats_ref, tile_h, wout)


def conv3x3_stats(h1, w_k, stride):
    """h1: (N, H, W, C) bf16; w_k: (3, 3*C, Cout) bf16; stride in {1, 2}."""
    assert stride in (1, 2)
    n, h, w_in, c = h1.shape
    cout = w_k.shape[-1]
    hout = (h - 1) // stride + 1
    wout = (w_in - 1) // stride + 1

    tile_h = 1
    for d in range(1, min(MAX_TILE_H, hout) + 1):
        if hout % d == 0:
            tile_h = d
    n_t = hout // tile_h

    if stride == 1:
        xp = jnp.pad(h1, ((0, 0), (1, 1), (1, 1), (0, 0)))
        in_specs = [pl.BlockSpec((None, h + 2, w_in + 2, c),
                                 lambda ni, ti: (ni, 0, 0, 0)),
                    pl.BlockSpec((3, 3 * c, cout), lambda ni, ti: (0, 0, 0))]
        args = (xp, w_k)
        kern = functools.partial(_conv3x3_s1_kernel, tile_h=tile_h, wout=wout, c=c)
    else:
        # Pack H parity into two planes and W parity into channels so the kernel
        # needs only contiguous slices (no strided VMEM reads).
        pad_b = 2 * hout - h + 1
        pad_r = 2 * wout - w_in + 1
        xp = jnp.pad(h1, ((0, 0), (1, pad_b), (1, pad_r), (0, 0)))
        xr = xp.reshape(n, hout + 1, 2, wout + 1, 2 * c)
        x_even, x_odd = xr[:, :, 0], xr[:, :, 1]
        plane_spec = pl.BlockSpec((None, hout + 1, wout + 1, 2 * c),
                                  lambda ni, ti: (ni, 0, 0, 0))
        in_specs = [plane_spec, plane_spec,
                    pl.BlockSpec((3, 3 * c, cout), lambda ni, ti: (0, 0, 0))]
        args = (x_even, x_odd, w_k)
        kern = functools.partial(_conv3x3_s2_kernel, tile_h=tile_h, wout=wout, c=c)

    raw, stats = pl.pallas_call(
        kern,
        out_shape=(jax.ShapeDtypeStruct((n, hout, wout, cout), jnp.bfloat16),
                   jax.ShapeDtypeStruct((n, n_t, 2, cout), jnp.float32)),
        grid=(n, n_t),
        in_specs=in_specs,
        out_specs=(pl.BlockSpec((None, tile_h, wout, cout),
                                lambda ni, ti: (ni, ti, 0, 0)),
                   pl.BlockSpec((None, None, 2, cout),
                                lambda ni, ti: (ni, ti, 0, 0))),
        compiler_params=pltpu.CompilerParams(
            dimension_semantics=("parallel", "parallel")),
        cost_estimate=pl.CostEstimate(
            flops=2 * n * hout * wout * 9 * c * cout, transcendentals=0,
            bytes_accessed=int(n * (h + 2) * (w_in + 2) * c * 2
                               + w_k.size * 2 + n * hout * wout * cout * 2)),
    )(*args)
    return raw, jnp.sum(stats, axis=(0, 1))


# ---------------------------------------------------------------------------
# Elementwise BN apply (+ReLU) and the fused BN3 + residual-BN + add + ReLU.
# ---------------------------------------------------------------------------
def _bn_act_kernel(x_ref, s_ref, b_ref, o_ref, *, relu):
    y = x_ref[...].astype(jnp.float32) * s_ref[...] + b_ref[...]
    if relu:
        y = jnp.maximum(y, 0.0)
    o_ref[...] = y.astype(o_ref.dtype)


def bn_act(x2d, scale, shift, *, relu, out_dtype):
    m, c = x2d.shape
    tile_m = _pick_tile(m, MAX_TILE_M)
    nb = _num_blocks(m, tile_m)
    return pl.pallas_call(
        functools.partial(_bn_act_kernel, relu=relu),
        out_shape=jax.ShapeDtypeStruct((m, c), out_dtype),
        grid=(nb,),
        in_specs=[pl.BlockSpec((tile_m, c), lambda i: (i, 0)),
                  pl.BlockSpec((1, c), lambda i: (0, 0)),
                  pl.BlockSpec((1, c), lambda i: (0, 0))],
        out_specs=pl.BlockSpec((tile_m, c), lambda i: (i, 0)),
        compiler_params=pltpu.CompilerParams(dimension_semantics=("parallel",)),
    )(x2d, scale, shift)


def _bn_add_act_kernel(x_ref, s_ref, b_ref, r_ref, rs_ref, rb_ref, o_ref):
    y = x_ref[...].astype(jnp.float32) * s_ref[...] + b_ref[...]
    r = r_ref[...].astype(jnp.float32) * rs_ref[...] + rb_ref[...]
    o_ref[...] = jnp.maximum(y + r, 0.0).astype(o_ref.dtype)


def _bn_add_act_id_kernel(x_ref, s_ref, b_ref, r_ref, o_ref):
    y = x_ref[...].astype(jnp.float32) * s_ref[...] + b_ref[...]
    o_ref[...] = jnp.maximum(y + r_ref[...].astype(jnp.float32), 0.0).astype(o_ref.dtype)


def bn_add_act(x2d, scale, shift, res2d, res_scale=None, res_shift=None):
    m, c = x2d.shape
    tile_m = _pick_tile(m, MAX_TILE_M)
    nb = _num_blocks(m, tile_m)
    tile = pl.BlockSpec((tile_m, c), lambda i: (i, 0))
    vec = pl.BlockSpec((1, c), lambda i: (0, 0))
    if res_scale is None:           # identity residual: skip dead affine work
        kern, in_specs, args = (_bn_add_act_id_kernel, [tile, vec, vec, tile],
                                (x2d, scale, shift, res2d))
    else:
        kern, in_specs, args = (_bn_add_act_kernel, [tile, vec, vec, tile, vec, vec],
                                (x2d, scale, shift, res2d, res_scale, res_shift))
    return pl.pallas_call(
        kern,
        out_shape=jax.ShapeDtypeStruct((m, c), jnp.float32),
        grid=(nb,),
        in_specs=in_specs,
        out_specs=pl.BlockSpec((tile_m, c), lambda i: (i, 0)),
        compiler_params=pltpu.CompilerParams(dimension_semantics=("parallel",)),
    )(*args)


# ---------------------------------------------------------------------------
# Per-channel vector math (Cout-length): batch stats -> BN affine.
# ---------------------------------------------------------------------------
def _affine_from_stats(stats, gamma, beta, count):
    mean = stats[0] / count
    var = jnp.maximum(stats[1] / count - mean * mean, 0.0)   # biased var, clamped
    inv = jax.lax.rsqrt(var + EPS)
    scale = gamma * inv
    shift = beta - mean * scale
    return (scale.reshape(1, -1).astype(jnp.float32),
            shift.reshape(1, -1).astype(jnp.float32))


# ---------------------------------------------------------------------------
# Bottleneck forward (hot paths in Pallas; transposes / pads are XLA glue).
# ---------------------------------------------------------------------------
def bottleneck_forward(x_nchw, params, stride):
    x = jnp.transpose(x_nchw, (0, 2, 3, 1))        # NHWC
    n, h, w, cin = x.shape
    planes = params["w1"].shape[1]
    outc = planes * EXPANSION
    hout = (h - 1) // stride + 1
    wout = (w - 1) // stride + 1
    m0, m1 = n * h * w, n * hout * wout

    x_bf = x.astype(jnp.bfloat16)

    # --- conv1 (1x1) + batch-stat accumulation ---
    raw1, stats1 = matmul_stats(x_bf.reshape(m0, cin), params["w1"])
    scale1, shift1 = _affine_from_stats(stats1, params["g1"], params["b1"], m0)

    # --- BN1 + ReLU (bf16 in/out) ---
    # TODO(synk): fuse BN1+ReLU and the spatial halo directly into conv2's input path.
    h1 = bn_act(raw1, scale1, shift1, relu=True, out_dtype=jnp.bfloat16)
    h1 = h1.reshape(n, h, w, planes)

    # --- conv2 (3x3, stride, pad=1): row-tiled, kw folded into GEMM-K ---
    raw2, stats2 = conv3x3_stats(h1, params["w2"], stride)
    scale2, shift2 = _affine_from_stats(stats2, params["g2"], params["b2"], m1)

    # --- conv3 (1x1) with BN2 + ReLU fused into its GEMM input ---
    raw3, stats3 = matmul_stats(raw2.reshape(m1, planes), params["w3"],
                                scale2, shift2)
    scale3, shift3 = _affine_from_stats(stats3, params["g3"], params["b3"], m1)

    # --- residual branch ---
    if stride != 1 or cin != outc:
        # TODO(synk): fold the stride-2 spatial subsampling into the downsample
        # GEMM's BlockSpec instead of this XLA strided slice.
        xs2d = x_bf[:, ::stride, ::stride, :].reshape(m1, cin)
        rawd, statsd = matmul_stats(xs2d, params["wd"])
        rscale, rshift = _affine_from_stats(statsd, params["gd"], params["bd"], m1)
        out = bn_add_act(raw3, scale3, shift3, rawd, rscale, rshift)
    else:
        out = bn_add_act(raw3, scale3, shift3, x_bf.reshape(m1, cin))

    out = out.reshape(n, hout, wout, outc)
    return jnp.transpose(out, (0, 3, 1, 2)).astype(x_nchw.dtype)


# ---------------------------------------------------------------------------
# Parameter construction (PyTorch OIHW weights -> GEMM/bf16 layouts)
# ---------------------------------------------------------------------------
def init_params(key, inplanes, planes, stride):
    ks = jax.random.split(key, 16)
    outc = planes * EXPANSION

    def rnd(k, shape, s=0.1):
        return (s * jax.random.normal(k, shape)).astype(jnp.float32)

    pt = {
        "w1": rnd(ks[0], (planes, inplanes, 1, 1)),
        "w2": rnd(ks[1], (planes, planes, 3, 3)),
        "w3": rnd(ks[2], (outc, planes, 1, 1)),
        "g1": 1.0 + rnd(ks[3], (planes,)), "b1": rnd(ks[4], (planes,)),
        "g2": 1.0 + rnd(ks[5], (planes,)), "b2": rnd(ks[6], (planes,)),
        "g3": 1.0 + rnd(ks[7], (outc,)),   "b3": rnd(ks[8], (outc,)),
    }
    if stride != 1 or inplanes != outc:
        pt["wd"] = rnd(ks[9], (outc, inplanes, 1, 1))
        pt["gd"] = 1.0 + rnd(ks[10], (outc,))
        pt["bd"] = rnd(ks[11], (outc,))

    kp = {
        "w1": pt["w1"].reshape(planes, inplanes).T.astype(jnp.bfloat16),
        # (kh, kw, Cin, Cout) -> (3, 3*Cin, Cout): kw folded into GEMM-K
        "w2": jnp.transpose(pt["w2"], (2, 3, 1, 0)).reshape(3, 3 * planes,
                                                            planes).astype(jnp.bfloat16),
        "w3": pt["w3"].reshape(outc, planes).T.astype(jnp.bfloat16),
        "g1": pt["g1"], "b1": pt["b1"],
        "g2": pt["g2"], "b2": pt["b2"],
        "g3": pt["g3"], "b3": pt["b3"],
    }
    if "wd" in pt:
        kp["wd"] = pt["wd"].reshape(outc, inplanes).T.astype(jnp.bfloat16)
        kp["gd"] = pt["gd"]
        kp["bd"] = pt["bd"]
    return pt, kp


# ---------------------------------------------------------------------------
# Pure-JAX f32 reference (PyTorch train-mode forward semantics)
# ---------------------------------------------------------------------------
def _bn_ref(x, gamma, beta):  # NCHW
    mean = jnp.mean(x, axis=(0, 2, 3), keepdims=True)
    var = jnp.mean((x - mean) ** 2, axis=(0, 2, 3), keepdims=True)
    return gamma[None, :, None, None] * (x - mean) * jax.lax.rsqrt(var + EPS) \
        + beta[None, :, None, None]


def _conv_ref(x, w, stride=1, padding=0):
    return jax.lax.conv_general_dilated(
        x, w, (stride, stride), [(padding, padding)] * 2,
        dimension_numbers=("NCHW", "OIHW", "NCHW"))


def bottleneck_ref(x, pt, stride):
    out = jax.nn.relu(_bn_ref(_conv_ref(x, pt["w1"]), pt["g1"], pt["b1"]))
    out = jax.nn.relu(_bn_ref(_conv_ref(out, pt["w2"], stride=stride, padding=1),
                              pt["g2"], pt["b2"]))
    out = _bn_ref(_conv_ref(out, pt["w3"]), pt["g3"], pt["b3"])
    if "wd" in pt:
        res = _bn_ref(_conv_ref(x, pt["wd"], stride=stride), pt["gd"], pt["bd"])
    else:
        res = x
    return jax.nn.relu(out + res)


# ---------------------------------------------------------------------------
if __name__ == "__main__":
    key = jax.random.PRNGKey(0)

    # bf16 MXU inputs + bf16 intermediates vs an all-f32 reference.
    TOL = 5e-2

    fwd = jax.jit(bottleneck_forward, static_argnums=(2,))

    # Case 1: downsample branch active (stride=2, channel change)
    inplanes, planes, stride = 16, 8, 2
    kx, kp0 = jax.random.split(key)
    x = jax.random.normal(kx, (2, inplanes, 16, 16), dtype=jnp.float32)  # NCHW
    pt, kp = init_params(kp0, inplanes, planes, stride)
    out = jax.block_until_ready(fwd(x, kp, stride))
    ref = jax.block_until_ready(bottleneck_ref(x, pt, stride))
    assert out.shape == (2, planes * EXPANSION, 8, 8), out.shape
    np.testing.assert_allclose(np.asarray(out), np.asarray(ref), rtol=TOL, atol=TOL)

    # Case 2: identity residual (stride=1, inplanes == planes*4)
    inplanes, planes, stride = 32, 8, 1
    kx2, kp1 = jax.random.split(kp0)
    x2 = jax.random.normal(kx2, (2, inplanes, 8, 8), dtype=jnp.float32)
    pt2, kp2 = init_params(kp1, inplanes, planes, stride)
    out2 = jax.block_until_ready(fwd(x2, kp2, stride))
    ref2 = jax.block_until_ready(bottleneck_ref(x2, pt2, stride))
    assert out2.shape == (2, planes * EXPANSION, 8, 8), out2.shape
    np.testing.assert_allclose(np.asarray(out2), np.asarray(ref2), rtol=TOL, atol=TOL)

    print("KERNEL_OK")
</pallas_src>

<mosaic_0001>
module attributes {stable_mosaic.version = 11 : i64} {
  func.func @_mm_stats_kernel(%arg0: i32, %arg1: memref<512x16xbf16, #tpu.memory_space<vmem>>, %arg2: memref<16x8xbf16, #tpu.memory_space<vmem>>, %arg3: memref<512x8xbf16, #tpu.memory_space<vmem>>, %arg4: memref<1x2x8xf32, #tpu.memory_space<vmem>>) attributes {dimension_semantics = [#tpu.dimension_semantics<parallel>], iteration_bounds = array<i64: 1>, scalar_prefetch = 0 : i64, scratch_operands = 0 : i64, tpu.core_type = #tpu.core_type<tc>, window_params = [{transform_indices = @transform_0, window_bounds = array<i64: 512, 16>}, {pipeline_mode = #tpu.pipeline_mode<synchronous>, transform_indices = @transform_1, window_bounds = array<i64: 16, 8>}, {transform_indices = @transform_2, window_bounds = array<i64: 512, 8>}, {transform_indices = @transform_3, window_bounds = array<i64: 1, 2, 8>}]} {
    %c0 = arith.constant 0 : index
    %c0_0 = arith.constant 0 : index
    %0 = vector.load %arg1[%c0, %c0_0] : memref<512x16xbf16, #tpu.memory_space<vmem>>, vector<512x16xbf16>
    %c0_1 = arith.constant 0 : index
    %c0_2 = arith.constant 0 : index
    %1 = vector.load %arg2[%c0_1, %c0_2] : memref<16x8xbf16, #tpu.memory_space<vmem>>, vector<16x8xbf16>
    %cst = arith.constant dense<0.000000e+00> : vector<512x8xf32>
    %2 = tpu.matmul %0, %1, %cst {dimension_numbers = #tpu.dot_dimension_numbers<[1], [0], [0], [1], [0, 0, 1, 1], [], []>} : vector<512x16xbf16>, vector<16x8xbf16>, vector<512x8xf32> -> vector<512x8xf32>
    %3 = arith.truncf %2 : vector<512x8xf32> to vector<512x8xbf16>
    %c0_3 = arith.constant 0 : index
    %c0_4 = arith.constant 0 : index
    %4 = vector.load %arg3[%c0_3, %c0_4] : memref<512x8xbf16, #tpu.memory_space<vmem>>, vector<512x8xbf16>
    tpu.vector_store %arg3[%c0_3, %c0_4], %3 {strides = array<i32>} : memref<512x8xbf16, #tpu.memory_space<vmem>>, vector<512x8xbf16>,
    %cst_5 = arith.constant dense<0.000000e+00> : vector<8xf32>
    %5 = vector.multi_reduction <add>, %2, %cst_5 [0] : vector<512x8xf32> to vector<8xf32>
    %6 = vector.shape_cast %5 : vector<8xf32> to vector<1x8xf32>
    %c0_6 = arith.constant 0 : index
    %c0_7 = arith.constant 0 : index
    %c0_8 = arith.constant 0 : index
    %7 = vector.load %arg4[%c0_6, %c0_7, %c0_8] : memref<1x2x8xf32, #tpu.memory_space<vmem>>, vector<1x1x8xf32>
    %8 = vector.shape_cast %7 : vector<1x1x8xf32> to vector<1x8xf32>
    %9 = vector.shape_cast %6 : vector<1x8xf32> to vector<1x1x8xf32>
    tpu.vector_store %arg4[%c0_6, %c0_7, %c0_8], %9 {strides = array<i32>} : memref<1x2x8xf32, #tpu.memory_space<vmem>>, vector<1x1x8xf32>,
    %10 = arith.mulf %2, %2 : vector<512x8xf32>
    %cst_9 = arith.constant dense<0.000000e+00> : vector<8xf32>
    %11 = vector.multi_reduction <add>, %10, %cst_9 [0] : vector<512x8xf32> to vector<8xf32>
    %12 = vector.shape_cast %11 : vector<8xf32> to vector<1x8xf32>
    %c0_10 = arith.constant 0 : index
    %c1 = arith.constant 1 : index
    %c0_11 = arith.constant 0 : index
    %13 = vector.load %arg4[%c0_10, %c1, %c0_11] : memref<1x2x8xf32, #tpu.memory_space<vmem>>, vector<1x1x8xf32>
    %14 = vector.shape_cast %13 : vector<1x1x8xf32> to vector<1x8xf32>
    %15 = vector.shape_cast %12 : vector<1x8xf32> to vector<1x1x8xf32>
    tpu.vector_store %arg4[%c0_10, %c1, %c0_11], %15 {strides = array<i32>} : memref<1x2x8xf32, #tpu.memory_space<vmem>>, vector<1x1x8xf32>,
    return
  }
  func.func @transform_0(%arg0: i32) -> (i32, i32) {
    %c0_i32 = arith.constant 0 : i32
    %c0_i32_0 = arith.constant 0 : i32
    return %arg0, %c0_i32 : i32, i32
  }
  func.func @transform_1(%arg0: i32) -> (i32, i32) {
    %c0_i32 = arith.constant 0 : i32
    %c0_i32_0 = arith.constant 0 : i32
    %c0_i32_1 = arith.constant 0 : i32
    return %c0_i32, %c0_i32_0 : i32, i32
  }
  func.func @transform_2(%arg0: i32) -> (i32, i32) {
    %c0_i32 = arith.constant 0 : i32
    %c0_i32_0 = arith.constant 0 : i32
    return %arg0, %c0_i32 : i32, i32
  }
  func.func @transform_3(%arg0: i32) -> (i32, i32, i32) {
    %c0_i32 = arith.constant 0 : i32
    %c0_i32_0 = arith.constant 0 : i32
    %c0_i32_1 = arith.constant 0 : i32
    return %arg0, %c0_i32, %c0_i32_0 : i32, i32, i32
  }
}

module attributes {stable_mosaic.version = 11 : i64} {
  func.func @_bn_act_kernel(%arg0: i32, %arg1: memref<512x8xbf16, #tpu.memory_space<vmem>>, %arg2: memref<1x8xf32, #tpu.memory_space<vmem>>, %arg3: memref<1x8xf32, #tpu.memory_space<vmem>>, %arg4: memref<512x8xbf16, #tpu.memory_space<vmem>>) attributes {dimension_semantics = [#tpu.dimension_semantics<parallel>], iteration_bounds = array<i64: 1>, scalar_prefetch = 0 : i64, scratch_operands = 0 : i64, tpu.core_type = #tpu.core_type<tc>, window_params = [{transform_indices = @transform_0, window_bounds = array<i64: 512, 8>}, {pipeline_mode = #tpu.pipeline_mode<synchronous>, transform_indices = @transform_1, window_bounds = array<i64: 1, 8>}, {pipeline_mode = #tpu.pipeline_mode<synchronous>, transform_indices = @transform_2, window_bounds = array<i64: 1, 8>}, {transform_indices = @transform_3, window_bounds = array<i64: 512, 8>}]} {
    %c0 = arith.constant 0 : index
    %c0_0 = arith.constant 0 : index
    %0 = vector.load %arg1[%c0, %c0_0] : memref<512x8xbf16, #tpu.memory_space<vmem>>, vector<512x8xbf16>
    %1 = arith.extf %0 : vector<512x8xbf16> to vector<512x8xf32>
    %c0_1 = arith.constant 0 : index
    %c0_2 = arith.constant 0 : index
    %2 = vector.load %arg2[%c0_1, %c0_2] : memref<1x8xf32, #tpu.memory_space<vmem>>, vector<1x8xf32>
    %3 = vector.broadcast %2 : vector<1x8xf32> to vector<512x8xf32>
    %4 = arith.mulf %1, %3 : vector<512x8xf32>
    %c0_3 = arith.constant 0 : index
    %c0_4 = arith.constant 0 : index
    %5 = vector.load %arg3[%c0_3, %c0_4] : memref<1x8xf32, #tpu.memory_space<vmem>>, vector<1x8xf32>
    %6 = vector.broadcast %5 : vector<1x8xf32> to vector<512x8xf32>
    %7 = arith.addf %4, %6 : vector<512x8xf32>
    %cst = arith.constant 0.000000e+00 : f32
    %8 = vector.broadcast %cst : f32 to vector<512x8xf32>
    %9 = arith.maximumf %7, %8 : vector<512x8xf32>
    %10 = arith.truncf %9 : vector<512x8xf32> to vector<512x8xbf16>
    %c0_5 = arith.constant 0 : index
    %c0_6 = arith.constant 0 : index
    %11 = vector.load %arg4[%c0_5, %c0_6] : memref<512x8xbf16, #tpu.memory_space<vmem>>, vector<512x8xbf16>
    tpu.vector_store %arg4[%c0_5, %c0_6], %10 {strides = array<i32>} : memref<512x8xbf16, #tpu.memory_space<vmem>>, vector<512x8xbf16>,
    return
  }
  func.func @transform_0(%arg0: i32) -> (i32, i32) {
    %c0_i32 = arith.constant 0 : i32
    %c0_i32_0 = arith.constant 0 : i32
    return %arg0, %c0_i32 : i32, i32
  }
  func.func @transform_1(%arg0: i32) -> (i32, i32) {
    %c0_i32 = arith.constant 0 : i32
    %c0_i32_0 = arith.constant 0 : i32
    %c0_i32_1 = arith.constant 0 : i32
    return %c0_i32, %c0_i32_0 : i32, i32
  }
  func.func @transform_2(%arg0: i32) -> (i32, i32) {
    %c0_i32 = arith.constant 0 : i32
    %c0_i32_0 = arith.constant 0 : i32
    %c0_i32_1 = arith.constant 0 : i32
    return %c0_i32, %c0_i32_0 : i32, i32
  }
  func.func @transform_3(%arg0: i32) -> (i32, i32) {
    %c0_i32 = arith.constant 0 : i32
    %c0_i32_0 = arith.constant 0 : i32
    return %arg0, %c0_i32 : i32, i32
  }
}

module attributes {stable_mosaic.version = 11 : i64} {
  func.func @_mm_stats_kernel(%arg0: i32, %arg1: memref<128x16xbf16, #tpu.memory_space<vmem>>, %arg2: memref<16x32xbf16, #tpu.memory_space<vmem>>, %arg3: memref<128x32xbf16, #tpu.memory_space<vmem>>, %arg4: memref<1x2x32xf32, #tpu.memory_space<vmem>>) attributes {dimension_semantics = [#tpu.dimension_semantics<parallel>], iteration_bounds = array<i64: 1>, scalar_prefetch = 0 : i64, scratch_operands = 0 : i64, tpu.core_type = #tpu.core_type<tc>, window_params = [{transform_indices = @transform_0, window_bounds = array<i64: 128, 16>}, {pipeline_mode = #tpu.pipeline_mode<synchronous>, transform_indices = @transform_1, window_bounds = array<i64: 16, 32>}, {transform_indices = @transform_2, window_bounds = array<i64: 128, 32>}, {transform_indices = @transform_3, window_bounds = array<i64: 1, 2, 32>}]} {
    %c0 = arith.constant 0 : index
    %c0_0 = arith.constant 0 : index
    %0 = vector.load %arg1[%c0, %c0_0] : memref<128x16xbf16, #tpu.memory_space<vmem>>, vector<128x16xbf16>
    %c0_1 = arith.constant 0 : index
    %c0_2 = arith.constant 0 : index
    %1 = vector.load %arg2[%c0_1, %c0_2] : memref<16x32xbf16, #tpu.memory_space<vmem>>, vector<16x32xbf16>
    %cst = arith.constant dense<0.000000e+00> : vector<128x32xf32>
    %2 = tpu.matmul %0, %1, %cst {dimension_numbers = #tpu.dot_dimension_numbers<[1], [0], [0], [1], [0, 0, 1, 1], [], []>} : vector<128x16xbf16>, vector<16x32xbf16>, vector<128x32xf32> -> vector<128x32xf32>
    %3 = arith.truncf %2 : vector<128x32xf32> to vector<128x32xbf16>
    %c0_3 = arith.constant 0 : index
    %c0_4 = arith.constant 0 : index
    %4 = vector.load %arg3[%c0_3, %c0_4] : memref<128x32xbf16, #tpu.memory_space<vmem>>, vector<128x32xbf16>
    tpu.vector_store %arg3[%c0_3, %c0_4], %3 {strides = array<i32>} : memref<128x32xbf16, #tpu.memory_space<vmem>>, vector<128x32xbf16>,
    %cst_5 = arith.constant dense<0.000000e+00> : vector<32xf32>
    %5 = vector.multi_reduction <add>, %2, %cst_5 [0] : vector<128x32xf32> to vector<32xf32>
    %6 = vector.shape_cast %5 : vector<32xf32> to vector<1x32xf32>
    %c0_6 = arith.constant 0 : index
    %c0_7 = arith.constant 0 : index
    %c0_8 = arith.constant 0 : index
    %7 = vector.load %arg4[%c0_6, %c0_7, %c0_8] : memref<1x2x32xf32, #tpu.memory_space<vmem>>, vector<1x1x32xf32>
    %8 = vector.shape_cast %7 : vector<1x1x32xf32> to vector<1x32xf32>
    %9 = vector.shape_cast %6 : vector<1x32xf32> to vector<1x1x32xf32>
    tpu.vector_store %arg4[%c0_6, %c0_7, %c0_8], %9 {strides = array<i32>} : memref<1x2x32xf32, #tpu.memory_space<vmem>>, vector<1x1x32xf32>,
    %10 = arith.mulf %2, %2 : vector<128x32xf32>
    %cst_9 = arith.constant dense<0.000000e+00> : vector<32xf32>
    %11 = vector.multi_reduction <add>, %10, %cst_9 [0] : vector<128x32xf32> to vector<32xf32>
    %12 = vector.shape_cast %11 : vector<32xf32> to vector<1x32xf32>
    %c0_10 = arith.constant 0 : index
    %c1 = arith.constant 1 : index
    %c0_11 = arith.constant 0 : index
    %13 = vector.load %arg4[%c0_10, %c1, %c0_11] : memref<1x2x32xf32, #tpu.memory_space<vmem>>, vector<1x1x32xf32>
    %14 = vector.shape_cast %13 : vector<1x1x32xf32> to vector<1x32xf32>
    %15 = vector.shape_cast %12 : vector<1x32xf32> to vector<1x1x32xf32>
    tpu.vector_store %arg4[%c0_10, %c1, %c0_11], %15 {strides = array<i32>} : memref<1x2x32xf32, #tpu.memory_space<vmem>>, vector<1x1x32xf32>,
    return
  }
  func.func @transform_0(%arg0: i32) -> (i32, i32) {
    %c0_i32 = arith.constant 0 : i32
    %c0_i32_0 = arith.constant 0 : i32
    return %arg0, %c0_i32 : i32, i32
  }
  func.func @transform_1(%arg0: i32) -> (i32, i32) {
    %c0_i32 = arith.constant 0 : i32
    %c0_i32_0 = arith.constant 0 : i32
    %c0_i32_1 = arith.constant 0 : i32
    return %c0_i32, %c0_i32_0 : i32, i32
  }
  func.func @transform_2(%arg0: i32) -> (i32, i32) {
    %c0_i32 = arith.constant 0 : i32
    %c0_i32_0 = arith.constant 0 : i32
    return %arg0, %c0_i32 : i32, i32
  }
  func.func @transform_3(%arg0: i32) -> (i32, i32, i32) {
    %c0_i32 = arith.constant 0 : i32
    %c0_i32_0 = arith.constant 0 : i32
    %c0_i32_1 = arith.constant 0 : i32
    return %arg0, %c0_i32, %c0_i32_0 : i32, i32, i32
  }
}

module attributes {stable_mosaic.version = 11 : i64} {
  func.func @_conv3x3_s2_kernel(%arg0: i32, %arg1: i32, %arg2: memref<1x9x9x16xbf16, #tpu.memory_space<vmem>>, %arg3: memref<1x9x9x16xbf16, #tpu.memory_space<vmem>>, %arg4: memref<3x24x8xbf16, #tpu.memory_space<vmem>>, %arg5: memref<1x8x8x8xbf16, #tpu.memory_space<vmem>>, %arg6: memref<1x1x2x8xf32, #tpu.memory_space<vmem>>) attributes {dimension_semantics = [#tpu.dimension_semantics<parallel>, #tpu.dimension_semantics<parallel>], iteration_bounds = array<i64: 2, 1>, scalar_prefetch = 0 : i64, scratch_operands = 0 : i64, tpu.core_type = #tpu.core_type<tc>, window_params = [{transform_indices = @transform_0, window_bounds = array<i64: 1, 9, 9, 16>}, {transform_indices = @transform_1, window_bounds = array<i64: 1, 9, 9, 16>}, {pipeline_mode = #tpu.pipeline_mode<synchronous>, transform_indices = @transform_2, window_bounds = array<i64: 3, 24, 8>}, {transform_indices = @transform_3, window_bounds = array<i64: 1, 8, 8, 8>}, {transform_indices = @transform_4, window_bounds = array<i64: 1, 1, 2, 8>}]} {
    %c8_i32 = arith.constant 8 : i32
    %0 = arith.muli %arg1, %c8_i32 : i32
    %cst = arith.constant 0.000000e+00 : f32
    %1 = vector.broadcast %cst : f32 to vector<64x8xf32>
    %c0 = arith.constant 0 : index
    %2 = arith.index_cast %0 : i32 to index
    %c0_0 = arith.constant 0 : index
    %c0_1 = arith.constant 0 : index
    %3 = vector.load %arg2[%c0, %2, %c0_0, %c0_1] : memref<1x9x9x16xbf16, #tpu.memory_space<vmem>>, vector<1x8x9x16xbf16>
    %4 = vector.shape_cast %3 : vector<1x8x9x16xbf16> to vector<8x9x16xbf16>
    %c0_2 = arith.constant 0 : index
    %5 = arith.index_cast %0 : i32 to index
    %c0_3 = arith.constant 0 : index
    %c0_4 = arith.constant 0 : index
    %6 = vector.load %arg3[%c0_2, %5, %c0_3, %c0_4] : memref<1x9x9x16xbf16, #tpu.memory_space<vmem>>, vector<1x8x9x16xbf16>
    %7 = vector.shape_cast %6 : vector<1x8x9x16xbf16> to vector<8x9x16xbf16>
    %c1_i32 = arith.constant 1 : i32
    %8 = arith.addi %0, %c1_i32 : i32
    %c0_5 = arith.constant 0 : index
    %9 = arith.index_cast %8 : i32 to index
    %c0_6 = arith.constant 0 : index
    %c0_7 = arith.constant 0 : index
    %10 = vector.load %arg2[%c0_5, %9, %c0_6, %c0_7] : memref<1x9x9x16xbf16, #tpu.memory_space<vmem>>, vector<1x8x9x16xbf16>
    %11 = vector.shape_cast %10 : vector<1x8x9x16xbf16> to vector<8x9x16xbf16>
    %12 = vector.extract_strided_slice %4 {offsets = [0, 0, 0], sizes = [8, 8, 8], strides = [1, 1, 1]} : vector<8x9x16xbf16> to vector<8x8x8xbf16>
    %13 = vector.extract_strided_slice %4 {offsets = [0, 0, 8], sizes = [8, 8, 8], strides = [1, 1, 1]} : vector<8x9x16xbf16> to vector<8x8x8xbf16>
    %14 = vector.extract_strided_slice %4 {offsets = [0, 1, 0], sizes = [8, 8, 8], strides = [1, 1, 1]} : vector<8x9x16xbf16> to vector<8x8x8xbf16>
    %15 = tpu.concatenate %12, %13, %14 in 2 : vector<8x8x8xbf16>, vector<8x8x8xbf16>, vector<8x8x8xbf16> -> vector<8x8x24xbf16>
    %16 = vector.shape_cast %15 : vector<8x8x24xbf16> to vector<64x24xbf16>
    %c0_8 = arith.constant 0 : index
    %c0_9 = arith.constant 0 : index
    %c0_10 = arith.constant 0 : index
    %17 = vector.load %arg4[%c0_8, %c0_9, %c0_10] : memref<3x24x8xbf16, #tpu.memory_space<vmem>>, vector<1x24x8xbf16>
    %18 = vector.shape_cast %17 : vector<1x24x8xbf16> to vector<24x8xbf16>
    %cst_11 = arith.constant dense<0.000000e+00> : vector<64x8xf32>
    %19 = tpu.matmul %16, %18, %cst_11 {dimension_numbers = #tpu.dot_dimension_numbers<[1], [0], [0], [1], [0, 0, 1, 1], [], []>} : vector<64x24xbf16>, vector<24x8xbf16>, vector<64x8xf32> -> vector<64x8xf32>
    %20 = arith.addf %1, %19 : vector<64x8xf32>
    %21 = vector.extract_strided_slice %7 {offsets = [0, 0, 0], sizes = [8, 8, 8], strides = [1, 1, 1]} : vector<8x9x16xbf16> to vector<8x8x8xbf16>
    %22 = vector.extract_strided_slice %7 {offsets = [0, 0, 8], sizes = [8, 8, 8], strides = [1, 1, 1]} : vector<8x9x16xbf16> to vector<8x8x8xbf16>
    %23 = vector.extract_strided_slice %7 {offsets = [0, 1, 0], sizes = [8, 8, 8], strides = [1, 1, 1]} : vector<8x9x16xbf16> to vector<8x8x8xbf16>
    %24 = tpu.concatenate %21, %22, %23 in 2 : vector<8x8x8xbf16>, vector<8x8x8xbf16>, vector<8x8x8xbf16> -> vector<8x8x24xbf16>
    %25 = vector.shape_cast %24 : vector<8x8x24xbf16> to vector<64x24xbf16>
    %c1 = arith.constant 1 : index
    %c0_12 = arith.constant 0 : index
    %c0_13 = arith.constant 0 : index
    %26 = vector.load %arg4[%c1, %c0_12, %c0_13] : memref<3x24x8xbf16, #tpu.memory_space<vmem>>, vector<1x24x8xbf16>
    %27 = vector.shape_cast %26 : vector<1x24x8xbf16> to vector<24x8xbf16>
    %cst_14 = arith.constant dense<0.000000e+00> : vector<64x8xf32>
    %28 = tpu.matmul %25, %27, %cst_14 {dimension_numbers = #tpu.dot_dimension_numbers<[1], [0], [0], [1], [0, 0, 1, 1], [], []>} : vector<64x24xbf16>, vector<24x8xbf16>, vector<64x8xf32> -> vector<64x8xf32>
    %29 = arith.addf %20, %28 : vector<64x8xf32>
    %30 = vector.extract_strided_slice %11 {offsets = [0, 0, 0], sizes = [8, 8, 8], strides = [1, 1, 1]} : vector<8x9x16xbf16> to vector<8x8x8xbf16>
    %31 = vector.extract_strided_slice %11 {offsets = [0, 0, 8], sizes = [8, 8, 8], strides = [1, 1, 1]} : vector<8x9x16xbf16> to vector<8x8x8xbf16>
    %32 = vector.extract_strided_slice %11 {offsets = [0, 1, 0], sizes = [8, 8, 8], strides = [1, 1, 1]} : vector<8x9x16xbf16> to vector<8x8x8xbf16>
    %33 = tpu.concatenate %30, %31, %32 in 2 : vector<8x8x8xbf16>, vector<8x8x8xbf16>, vector<8x8x8xbf16> -> vector<8x8x24xbf16>
    %34 = vector.shape_cast %33 : vector<8x8x24xbf16> to vector<64x24xbf16>
    %c2 = arith.constant 2 : index
    %c0_15 = arith.constant 0 : index
    %c0_16 = arith.constant 0 : index
    %35 = vector.load %arg4[%c2, %c0_15, %c0_16] : memref<3x24x8xbf16, #tpu.memory_space<vmem>>, vector<1x24x8xbf16>
    %36 = vector.shape_cast %35 : vector<1x24x8xbf16> to vector<24x8xbf16>
    %cst_17 = arith.constant dense<0.000000e+00> : vector<64x8xf32>
    %37 = tpu.matmul %34, %36, %cst_17 {dimension_numbers = #tpu.dot_dimension_numbers<[1], [0], [0], [1], [0, 0, 1, 1], [], []>} : vector<64x24xbf16>, vector<24x8xbf16>, vector<64x8xf32> -> vector<64x8xf32>
    %38 = arith.addf %29, %37 : vector<64x8xf32>
    %39 = vector.shape_cast %38 : vector<64x8xf32> to vector<8x8x8xf32>
    %40 = arith.truncf %39 : vector<8x8x8xf32> to vector<8x8x8xbf16>
    %c0_18 = arith.constant 0 : index
    %c0_19 = arith.constant 0 : index
    %c0_20 = arith.constant 0 : index
    %c0_21 = arith.constant 0 : index
    %41 = vector.load %arg5[%c0_18, %c0_19, %c0_20, %c0_21] : memref<1x8x8x8xbf16, #tpu.memory_space<vmem>>, vector<1x8x8x8xbf16>
    %42 = vector.shape_cast %41 : vector<1x8x8x8xbf16> to vector<8x8x8xbf16>
    %43 = vector.shape_cast %40 : vector<8x8x8xbf16> to vector<1x8x8x8xbf16>
    tpu.vector_store %arg5[%c0_18, %c0_19, %c0_20, %c0_21], %43 {strides = array<i32>} : memref<1x8x8x8xbf16, #tpu.memory_space<vmem>>, vector<1x8x8x8xbf16>,
    %cst_22 = arith.constant dense<0.000000e+00> : vector<8xf32>
    %44 = vector.multi_reduction <add>, %38, %cst_22 [0] : vector<64x8xf32> to vector<8xf32>
    %45 = vector.shape_cast %44 : vector<8xf32> to vector<1x8xf32>
    %c0_23 = arith.constant 0 : index
    %c0_24 = arith.constant 0 : index
    %c0_25 = arith.constant 0 : index
    %c0_26 = arith.constant 0 : index
    %46 = vector.load %arg6[%c0_23, %c0_24, %c0_25, %c0_26] : memref<1x1x2x8xf32, #tpu.memory_space<vmem>>, vector<1x1x1x8xf32>
    %47 = vector.shape_cast %46 : vector<1x1x1x8xf32> to vector<1x8xf32>
    %48 = vector.shape_cast %45 : vector<1x8xf32> to vector<1x1x1x8xf32>
    tpu.vector_store %arg6[%c0_23, %c0_24, %c0_25, %c0_26], %48 {strides = array<i32>} : memref<1x1x2x8xf32, #tpu.memory_space<vmem>>, vector<1x1x1x8xf32>,
    %49 = arith.mulf %38, %38 : vector<64x8xf32>
    %cst_27 = arith.constant dense<0.000000e+00> : vector<8xf32>
    %50 = vector.multi_reduction <add>, %49, %cst_27 [0] : vector<64x8xf32> to vector<8xf32>
    %51 = vector.shape_cast %50 : vector<8xf32> to vector<1x8xf32>
    %c0_28 = arith.constant 0 : index
    %c0_29 = arith.constant 0 : index
    %c1_30 = arith.constant 1 : index
    %c0_31 = arith.constant 0 : index
    %52 = vector.load %arg6[%c0_28, %c0_29, %c1_30, %c0_31] : memref<1x1x2x8xf32, #tpu.memory_space<vmem>>, vector<1x1x1x8xf32>
    %53 = vector.shape_cast %52 : vector<1x1x1x8xf32> to vector<1x8xf32>
    %54 = vector.shape_cast %51 : vector<1x8xf32> to vector<1x1x1x8xf32>
    tpu.vector_store %arg6[%c0_28, %c0_29, %c1_30, %c0_31], %54 {strides = array<i32>} : memref<1x1x2x8xf32, #tpu.memory_space<vmem>>, vector<1x1x1x8xf32>,
    return
  }
  func.func @transform_0(%arg0: i32, %arg1: i32) -> (i32, i32, i32, i32) {
    %c0_i32 = arith.constant 0 : i32
    %c0_i32_0 = arith.constant 0 : i32
    %c0_i32_1 = arith.constant 0 : i32
    %c0_i32_2 = arith.constant 0 : i32
    return %arg0, %c0_i32, %c0_i32_0, %c0_i32_1 : i32, i32, i32, i32
  }
  func.func @transform_1(%arg0: i32, %arg1: i32) -> (i32, i32, i32, i32) {
    %c0_i32 = arith.constant 0 : i32
    %c0_i32_0 = arith.constant 0 : i32
    %c0_i32_1 = arith.constant 0 : i32
    %c0_i32_2 = arith.constant 0 : i32
    return %arg0, %c0_i32, %c0_i32_0, %c0_i32_1 : i32, i32, i32, i32
  }
  func.func @transform_2(%arg0: i32, %arg1: i32) -> (i32, i32, i32) {
    %c0_i32 = arith.constant 0 : i32
    %c0_i32_0 = arith.constant 0 : i32
    %c0_i32_1 = arith.constant 0 : i32
    %c0_i32_2 = arith.constant 0 : i32
    return %c0_i32, %c0_i32_0, %c0_i32_1 : i32, i32, i32
  }
  func.func @transform_3(%arg0: i32, %arg1: i32) -> (i32, i32, i32, i32) {
    %c0_i32 = arith.constant 0 : i32
    %c0_i32_0 = arith.constant 0 : i32
    %c0_i32_1 = arith.constant 0 : i32
    return %arg0, %arg1, %c0_i32, %c0_i32_0 : i32, i32, i32, i32
  }
  func.func @transform_4(%arg0: i32, %arg1: i32) -> (i32, i32, i32, i32) {
    %c0_i32 = arith.constant 0 : i32
    %c0_i32_0 = arith.constant 0 : i32
    %c0_i32_1 = arith.constant 0 : i32
    return %arg0, %arg1, %c0_i32, %c0_i32_0 : i32, i32, i32, i32
  }
}

module attributes {stable_mosaic.version = 11 : i64} {
  func.func @_bn_add_act_kernel(%arg0: i32, %arg1: memref<128x32xbf16, #tpu.memory_space<vmem>>, %arg2: memref<1x32xf32, #tpu.memory_space<vmem>>, %arg3: memref<1x32xf32, #tpu.memory_space<vmem>>, %arg4: memref<128x32xbf16, #tpu.memory_space<vmem>>, %arg5: memref<1x32xf32, #tpu.memory_space<vmem>>, %arg6: memref<1x32xf32, #tpu.memory_space<vmem>>, %arg7: memref<128x32xf32, #tpu.memory_space<vmem>>) attributes {dimension_semantics = [#tpu.dimension_semantics<parallel>], iteration_bounds = array<i64: 1>, scalar_prefetch = 0 : i64, scratch_operands = 0 : i64, tpu.core_type = #tpu.core_type<tc>, window_params = [{transform_indices = @transform_0, window_bounds = array<i64: 128, 32>}, {pipeline_mode = #tpu.pipeline_mode<synchronous>, transform_indices = @transform_1, window_bounds = array<i64: 1, 32>}, {pipeline_mode = #tpu.pipeline_mode<synchronous>, transform_indices = @transform_2, window_bounds = array<i64: 1, 32>}, {transform_indices = @transform_3, window_bounds = array<i64: 128, 32>}, {pipeline_mode = #tpu.pipeline_mode<synchronous>, transform_indices = @transform_4, window_bounds = array<i64: 1, 32>}, {pipeline_mode = #tpu.pipeline_mode<synchronous>, transform_indices = @transform_5, window_bounds = array<i64: 1, 32>}, {transform_indices = @transform_6, window_bounds = array<i64: 128, 32>}]} {
    %c0 = arith.constant 0 : index
    %c0_0 = arith.constant 0 : index
    %0 = vector.load %arg1[%c0, %c0_0] : memref<128x32xbf16, #tpu.memory_space<vmem>>, vector<128x32xbf16>
    %1 = arith.extf %0 : vector<128x32xbf16> to vector<128x32xf32>
    %c0_1 = arith.constant 0 : index
    %c0_2 = arith.constant 0 : index
    %2 = vector.load %arg2[%c0_1, %c0_2] : memref<1x32xf32, #tpu.memory_space<vmem>>, vector<1x32xf32>
    %3 = vector.broadcast %2 : vector<1x32xf32> to vector<128x32xf32>
    %4 = arith.mulf %1, %3 : vector<128x32xf32>
    %c0_3 = arith.constant 0 : index
    %c0_4 = arith.constant 0 : index
    %5 = vector.load %arg3[%c0_3, %c0_4] : memref<1x32xf32, #tpu.memory_space<vmem>>, vector<1x32xf32>
    %6 = vector.broadcast %5 : vector<1x32xf32> to vector<128x32xf32>
    %7 = arith.addf %4, %6 : vector<128x32xf32>
    %c0_5 = arith.constant 0 : index
    %c0_6 = arith.constant 0 : index
    %8 = vector.load %arg4[%c0_5, %c0_6] : memref<128x32xbf16, #tpu.memory_space<vmem>>, vector<128x32xbf16>
    %9 = arith.extf %8 : vector<128x32xbf16> to vector<128x32xf32>
    %c0_7 = arith.constant 0 : index
    %c0_8 = arith.constant 0 : index
    %10 = vector.load %arg5[%c0_7, %c0_8] : memref<1x32xf32, #tpu.memory_space<vmem>>, vector<1x32xf32>
    %11 = vector.broadcast %10 : vector<1x32xf32> to vector<128x32xf32>
    %12 = arith.mulf %9, %11 : vector<128x32xf32>
    %c0_9 = arith.constant 0 : index
    %c0_10 = arith.constant 0 : index
    %13 = vector.load %arg6[%c0_9, %c0_10] : memref<1x32xf32, #tpu.memory_space<vmem>>, vector<1x32xf32>
    %14 = vector.broadcast %13 : vector<1x32xf32> to vector<128x32xf32>
    %15 = arith.addf %12, %14 : vector<128x32xf32>
    %16 = arith.addf %7, %15 : vector<128x32xf32>
    %cst = arith.constant 0.000000e+00 : f32
    %17 = vector.broadcast %cst : f32 to vector<128x32xf32>
    %18 = arith.maximumf %16, %17 : vector<128x32xf32>
    %c0_11 = arith.constant 0 : index
    %c0_12 = arith.constant 0 : index
    %19 = vector.load %arg7[%c0_11, %c0_12] : memref<128x32xf32, #tpu.memory_space<vmem>>, vector<128x32xf32>
    tpu.vector_store %arg7[%c0_11, %c0_12], %18 {strides = array<i32>} : memref<128x32xf32, #tpu.memory_space<vmem>>, vector<128x32xf32>,
    return
  }
  func.func @transform_0(%arg0: i32) -> (i32, i32) {
    %c0_i32 = arith.constant 0 : i32
    %c0_i32_0 = arith.constant 0 : i32
    return %arg0, %c0_i32 : i32, i32
  }
  func.func @transform_1(%arg0: i32) -> (i32, i32) {
    %c0_i32 = arith.constant 0 : i32
    %c0_i32_0 = arith.constant 0 : i32
    %c0_i32_1 = arith.constant 0 : i32
    return %c0_i32, %c0_i32_0 : i32, i32
  }
  func.func @transform_2(%arg0: i32) -> (i32, i32) {
    %c0_i32 = arith.constant 0 : i32
    %c0_i32_0 = arith.constant 0 : i32
    %c0_i32_1 = arith.constant 0 : i32
    return %c0_i32, %c0_i32_0 : i32, i32
  }
  func.func @transform_3(%arg0: i32) -> (i32, i32) {
    %c0_i32 = arith.constant 0 : i32
    %c0_i32_0 = arith.constant 0 : i32
    return %arg0, %c0_i32 : i32, i32
  }
  func.func @transform_4(%arg0: i32) -> (i32, i32) {
    %c0_i32 = arith.constant 0 : i32
    %c0_i32_0 = arith.constant 0 : i32
    %c0_i32_1 = arith.constant 0 : i32
    return %c0_i32, %c0_i32_0 : i32, i32
  }
  func.func @transform_5(%arg0: i32) -> (i32, i32) {
    %c0_i32 = arith.constant 0 : i32
    %c0_i32_0 = arith.constant 0 : i32
    %c0_i32_1 = arith.constant 0 : i32
    return %c0_i32, %c0_i32_0 : i32, i32
  }
  func.func @transform_6(%arg0: i32) -> (i32, i32) {
    %c0_i32 = arith.constant 0 : i32
    %c0_i32_0 = arith.constant 0 : i32
    return %arg0, %c0_i32 : i32, i32
  }
}

module attributes {stable_mosaic.version = 11 : i64} {
  func.func @_mm_preact_stats_kernel(%arg0: i32, %arg1: memref<128x8xbf16, #tpu.memory_space<vmem>>, %arg2: memref<1x8xf32, #tpu.memory_space<vmem>>, %arg3: memref<1x8xf32, #tpu.memory_space<vmem>>, %arg4: memref<8x32xbf16, #tpu.memory_space<vmem>>, %arg5: memref<128x32xbf16, #tpu.memory_space<vmem>>, %arg6: memref<1x2x32xf32, #tpu.memory_space<vmem>>) attributes {dimension_semantics = [#tpu.dimension_semantics<parallel>], iteration_bounds = array<i64: 1>, scalar_prefetch = 0 : i64, scratch_operands = 0 : i64, tpu.core_type = #tpu.core_type<tc>, window_params = [{transform_indices = @transform_0, window_bounds = array<i64: 128, 8>}, {pipeline_mode = #tpu.pipeline_mode<synchronous>, transform_indices = @transform_1, window_bounds = array<i64: 1, 8>}, {pipeline_mode = #tpu.pipeline_mode<synchronous>, transform_indices = @transform_2, window_bounds = array<i64: 1, 8>}, {pipeline_mode = #tpu.pipeline_mode<synchronous>, transform_indices = @transform_3, window_bounds = array<i64: 8, 32>}, {transform_indices = @transform_4, window_bounds = array<i64: 128, 32>}, {transform_indices = @transform_5, window_bounds = array<i64: 1, 2, 32>}]} {
    %c0 = arith.constant 0 : index
    %c0_0 = arith.constant 0 : index
    %0 = vector.load %arg1[%c0, %c0_0] : memref<128x8xbf16, #tpu.memory_space<vmem>>, vector<128x8xbf16>
    %1 = arith.extf %0 : vector<128x8xbf16> to vector<128x8xf32>
    %c0_1 = arith.constant 0 : index
    %c0_2 = arith.constant 0 : index
    %2 = vector.load %arg2[%c0_1, %c0_2] : memref<1x8xf32, #tpu.memory_space<vmem>>, vector<1x8xf32>
    %3 = vector.broadcast %2 : vector<1x8xf32> to vector<128x8xf32>
    %4 = arith.mulf %1, %3 : vector<128x8xf32>
    %c0_3 = arith.constant 0 : index
    %c0_4 = arith.constant 0 : index
    %5 = vector.load %arg3[%c0_3, %c0_4] : memref<1x8xf32, #tpu.memory_space<vmem>>, vector<1x8xf32>
    %6 = vector.broadcast %5 : vector<1x8xf32> to vector<128x8xf32>
    %7 = arith.addf %4, %6 : vector<128x8xf32>
    %cst = arith.constant 0.000000e+00 : f32
    %8 = vector.broadcast %cst : f32 to vector<128x8xf32>
    %9 = arith.maximumf %7, %8 : vector<128x8xf32>
    %10 = arith.truncf %9 : vector<128x8xf32> to vector<128x8xbf16>
    %c0_5 = arith.constant 0 : index
    %c0_6 = arith.constant 0 : index
    %11 = vector.load %arg4[%c0_5, %c0_6] : memref<8x32xbf16, #tpu.memory_space<vmem>>, vector<8x32xbf16>
    %cst_7 = arith.constant dense<0.000000e+00> : vector<128x32xf32>
    %12 = tpu.matmul %10, %11, %cst_7 {dimension_numbers = #tpu.dot_dimension_numbers<[1], [0], [0], [1], [0, 0, 1, 1], [], []>} : vector<128x8xbf16>, vector<8x32xbf16>, vector<128x32xf32> -> vector<128x32xf32>
    %13 = arith.truncf %12 : vector<128x32xf32> to vector<128x32xbf16>
    %c0_8 = arith.constant 0 : index
    %c0_9 = arith.constant 0 : index
    %14 = vector.load %arg5[%c0_8, %c0_9] : memref<128x32xbf16, #tpu.memory_space<vmem>>, vector<128x32xbf16>
    tpu.vector_store %arg5[%c0_8, %c0_9], %13 {strides = array<i32>} : memref<128x32xbf16, #tpu.memory_space<vmem>>, vector<128x32xbf16>,
    %cst_10 = arith.constant dense<0.000000e+00> : vector<32xf32>
    %15 = vector.multi_reduction <add>, %12, %cst_10 [0] : vector<128x32xf32> to vector<32xf32>
    %16 = vector.shape_cast %15 : vector<32xf32> to vector<1x32xf32>
    %c0_11 = arith.constant 0 : index
    %c0_12 = arith.constant 0 : index
    %c0_13 = arith.constant 0 : index
    %17 = vector.load %arg6[%c0_11, %c0_12, %c0_13] : memref<1x2x32xf32, #tpu.memory_space<vmem>>, vector<1x1x32xf32>
    %18 = vector.shape_cast %17 : vector<1x1x32xf32> to vector<1x32xf32>
    %19 = vector.shape_cast %16 : vector<1x32xf32> to vector<1x1x32xf32>
    tpu.vector_store %arg6[%c0_11, %c0_12, %c0_13], %19 {strides = array<i32>} : memref<1x2x32xf32, #tpu.memory_space<vmem>>, vector<1x1x32xf32>,
    %20 = arith.mulf %12, %12 : vector<128x32xf32>
    %cst_14 = arith.constant dense<0.000000e+00> : vector<32xf32>
    %21 = vector.multi_reduction <add>, %20, %cst_14 [0] : vector<128x32xf32> to vector<32xf32>
    %22 = vector.shape_cast %21 : vector<32xf32> to vector<1x32xf32>
    %c0_15 = arith.constant 0 : index
    %c1 = arith.constant 1 : index
    %c0_16 = arith.constant 0 : index
    %23 = vector.load %arg6[%c0_15, %c1, %c0_16] : memref<1x2x32xf32, #tpu.memory_space<vmem>>, vector<1x1x32xf32>
    %24 = vector.shape_cast %23 : vector<1x1x32xf32> to vector<1x32xf32>
    %25 = vector.shape_cast %22 : vector<1x32xf32> to vector<1x1x32xf32>
    tpu.vector_store %arg6[%c0_15, %c1, %c0_16], %25 {strides = array<i32>} : memref<1x2x32xf32, #tpu.memory_space<vmem>>, vector<1x1x32xf32>,
    return
  }
  func.func @transform_0(%arg0: i32) -> (i32, i32) {
    %c0_i32 = arith.constant 0 : i32
    %c0_i32_0 = arith.constant 0 : i32
    return %arg0, %c0_i32 : i32, i32
  }
  func.func @transform_1(%arg0: i32) -> (i32, i32) {
    %c0_i32 = arith.constant 0 : i32
    %c0_i32_0 = arith.constant 0 : i32
    %c0_i32_1 = arith.constant 0 : i32
    return %c0_i32, %c0_i32_0 : i32, i32
  }
  func.func @transform_2(%arg0: i32) -> (i32, i32) {
    %c0_i32 = arith.constant 0 : i32
    %c0_i32_0 = arith.constant 0 : i32
    %c0_i32_1 = arith.constant 0 : i32
    return %c0_i32, %c0_i32_0 : i32, i32
  }
  func.func @transform_3(%arg0: i32) -> (i32, i32) {
    %c0_i32 = arith.constant 0 : i32
    %c0_i32_0 = arith.constant 0 : i32
    %c0_i32_1 = arith.constant 0 : i32
    return %c0_i32, %c0_i32_0 : i32, i32
  }
  func.func @transform_4(%arg0: i32) -> (i32, i32) {
    %c0_i32 = arith.constant 0 : i32
    %c0_i32_0 = arith.constant 0 : i32
    return %arg0, %c0_i32 : i32, i32
  }
  func.func @transform_5(%arg0: i32) -> (i32, i32, i32) {
    %c0_i32 = arith.constant 0 : i32
    %c0_i32_0 = arith.constant 0 : i32
    %c0_i32_1 = arith.constant 0 : i32
    return %arg0, %c0_i32, %c0_i32_0 : i32, i32, i32
  }
}

</mosaic_0001>

<llo_original>
// kernel: bottleneck_forward.10
$region0: #{bottleneck_forward.10}
  #allocation0 [shape = 'u32[]', space=smem, size = 0x4, offset = 0x4, fixed_abs, tag = 'smem constant byte address 0x4 - core index']
  #allocation1 [shape = 'u32[72,128]{1,0:T(1,128)}', space=vmem, size = 0x9000, scoped, tag = 'internal scratch']
  %s0 = inlined_call_operand.vmem [shape: bf16[128,16], index: 0, kind: input, shape index: {}]
  %s1 = inlined_call_operand.vmem [shape: bf16[16,32], index: 1, kind: input, shape index: {}]
  %s2 = inlined_call_operand.vmem [shape: bf16[128,32], index: 2, kind: output, shape index: {0}]
  %s3 = inlined_call_operand.vmem [shape: f32[1,2,32], index: 3, kind: output, shape index: {1}]
  %4 = xla_tuple %s2, %s3
  %s5 = sld [smem:[#allocation0]]
  $region26: #{bottleneck_forward.10} parent=0
    _
  %s7 = ssub.s32 1, %s5
  %s8 = scalar_select 0, %s7, %s5
  // Predicated region
  $region2: #{bottleneck_forward.10} parent=0 // pred_check
    _
  $region3: #{bottleneck_forward.10} parent=0 // pred_check_branch
    %10 = sbr.rel (0) target = $region5
  $region4: #{bottleneck_forward.10} parent=0 // pred_region
    _
  $region5: #{bottleneck_forward.10} parent=0 // pred_fallthru
    _
  // Predicated region
  $region6: #{bottleneck_forward.10} parent=0 // pred_check
    _
  $region7: #{bottleneck_forward.10} parent=0 // pred_check_branch
    %12 = sbr.rel (0) target = $region9
  $region8: #{bottleneck_forward.10} parent=0 // pred_region
    _
  $region9: #{bottleneck_forward.10} parent=0 // pred_fallthru
    _
  %v14 = vld [vmem:[%s0] sm:$0xf]
  %v15 = vld [vmem:[%s0 + $0x4] sm:$0xf]
  %v16 = vld [vmem:[%s0 + $0x8] sm:$0xf]
  %v17 = vld [vmem:[%s0 + $0xc] sm:$0xf]
  %v18 = vld [vmem:[%s0 + $0x10] sm:$0xf]
  %v19 = vld [vmem:[%s0 + $0x14] sm:$0xf]
  %v20 = vld [vmem:[%s0 + $0x18] sm:$0xf]
  %v21 = vld [vmem:[%s0 + $0x1c] sm:$0xf]
  %v22 = vld [vmem:[%s0 + $0x20] sm:$0xf]
  %v23 = vld [vmem:[%s0 + $0x24] sm:$0xf]
  %v24 = vld [vmem:[%s0 + $0x28] sm:$0xf]
  %v25 = vld [vmem:[%s0 + $0x2c] sm:$0xf]
  %v26 = vld [vmem:[%s0 + $0x30] sm:$0xf]
  %v27 = vld [vmem:[%s0 + $0x34] sm:$0xf]
  %v28 = vld [vmem:[%s0 + $0x38] sm:$0xf]
  %v29 = vld [vmem:[%s0 + $0x3c] sm:$0xf]
  %v30 = vld [vmem:[%s1] sm:$0xf]
  %v31 = vld [vmem:[%s1 + $0x4] sm:$0xf]
  %v48 = vunpack.c.l.b16 %v14
  %v49 = vunpack.c.l.b16 %v15
  %v50 = vunpack.c.l.b16 %v16
  %v51 = vunpack.c.l.b16 %v17
  %v52 = vunpack.c.l.b16 %v18
  %v53 = vunpack.c.l.b16 %v19
  %v54 = vunpack.c.l.b16 %v20
  %v55 = vunpack.c.l.b16 %v21
  %v56 = vunpack.c.l.b16 %v22
  %v57 = vunpack.c.l.b16 %v23
  %v58 = vunpack.c.l.b16 %v24
  %v59 = vunpack.c.l.b16 %v25
  %v60 = vunpack.c.l.b16 %v26
  %v61 = vunpack.c.l.b16 %v27
  %v62 = vunpack.c.l.b16 %v28
  %v63 = vunpack.c.l.b16 %v29
  %v64 = vpack.c.b16 %v49, %v48
  %v65 = vpack.c.b16 %v51, %v50
  %v66 = vpack.c.b16 %v53, %v52
  %v67 = vpack.c.b16 %v55, %v54
  %v68 = vpack.c.b16 %v57, %v56
  %v69 = vpack.c.b16 %v59, %v58
  %v70 = vpack.c.b16 %v61, %v60
  %v71 = vpack.c.b16 %v63, %v62
  %v74 = vunpack.c.l.b16 %v30
  %v75 = vunpack.c.l.b16 %v31
  %v76 = vpack.c.b16 %v75, %v74
  %vm78 = vcmask 130048
  %v80 = vsel %vm78, %v64, 0
  %v83 = vsel %vm78, %v65, 0
  %v86 = vsel %vm78, %v66, 0
  %v89 = vsel %vm78, %v67, 0
  %v92 = vsel %vm78, %v68, 0
  %v95 = vsel %vm78, %v69, 0
  %v98 = vsel %vm78, %v70, 0
  %v101 = vsel %vm78, %v71, 0
  %103 = vmatpush.bf16.msra.mxu0 0
  %104 = vmatpush.bf16.msra.mxu0 0
  %105 = vmatpush.bf16.msra.mxu0 0
  %106 = vmatpush.bf16.msra.mxu0 0
  %107 = vmatpush.bf16.msra.mxu0 0
  %108 = vmatpush.bf16.msra.mxu0 0
  %109 = vmatpush.bf16.msra.mxu0 0
  %110 = vmatpush.bf16.msra.mxu0 %v76
  %111 = vmatmul.bf16.gmra.mxu0 %v80
  %v112 = vpop.f32.mrf.mxu0
  %v113 = vadd.f32 0.0, %v112
  %v114 = vpop.f32.mrf.mxu0
  %v115 = vadd.f32 0.0, %v114
  %116 = vmatmul.bf16.gmra.mxu0 %v83
  %v117 = vpop.f32.mrf.mxu0
  %v118 = vadd.f32 0.0, %v117
  %v119 = vpop.f32.mrf.mxu0
  %v120 = vadd.f32 0.0, %v119
  %121 = vmatmul.bf16.gmra.mxu0 %v86
  %v122 = vpop.f32.mrf.mxu0
  %v123 = vadd.f32 0.0, %v122
  %v124 = vpop.f32.mrf.mxu0
  %v125 = vadd.f32 0.0, %v124
  %126 = vmatmul.bf16.gmra.mxu0 %v89
  %v127 = vpop.f32.mrf.mxu0
  %v128 = vadd.f32 0.0, %v127
  %v129 = vpop.f32.mrf.mxu0
  %v130 = vadd.f32 0.0, %v129
  %131 = vmatmul.bf16.gmra.mxu0 %v92
  %v132 = vpop.f32.mrf.mxu0
  %v133 = vadd.f32 0.0, %v132
  %v134 = vpop.f32.mrf.mxu0
  %v135 = vadd.f32 0.0, %v134
  %136 = vmatmul.bf16.gmra.mxu0 %v95
  %v137 = vpop.f32.mrf.mxu0
  %v138 = vadd.f32 0.0, %v137
  %v139 = vpop.f32.mrf.mxu0
  %v140 = vadd.f32 0.0, %v139
  %141 = vmatmul.bf16.gmra.mxu0 %v98
  %v142 = vpop.f32.mrf.mxu0
  %v143 = vadd.f32 0.0, %v142
  %v144 = vpop.f32.mrf.mxu0
  %v145 = vadd.f32 0.0, %v144
  %146 = vmatmul.bf16.gmra.mxu0 %v101
  %v147 = vpop.f32.mrf.mxu0
  %v148 = vadd.f32 0.0, %v147
  %v149 = vpop.f32.mrf.mxu0
  %v150 = vadd.f32 0.0, %v149
  %151 = vdwg.mxu0
  %v152 = vpack.c.bf16 %v113, %v113
  %v153 = vpack.c.bf16 %v115, %v115
  %v154 = vpack.c.bf16 %v118, %v118
  %v155 = vpack.c.bf16 %v120, %v120
  %v156 = vpack.c.bf16 %v123, %v123
  %v157 = vpack.c.bf16 %v125, %v125
  %v158 = vpack.c.bf16 %v128, %v128
  %v159 = vpack.c.bf16 %v130, %v130
  %v160 = vpack.c.bf16 %v133, %v133
  %v161 = vpack.c.bf16 %v135, %v135
  %v162 = vpack.c.bf16 %v138, %v138
  %v163 = vpack.c.bf16 %v140, %v140
  %v164 = vpack.c.bf16 %v143, %v143
  %v165 = vpack.c.bf16 %v145, %v145
  %v166 = vpack.c.bf16 %v148, %v148
  %v167 = vpack.c.bf16 %v150, %v150
  %vm168 = vcmask 257024
  %169 = vst.msk [vmem:[%s2] sm:$0xf] %vm168, %v152
  %170 = vst.msk [vmem:[%s2 + $0x4] sm:$0xf] %vm168, %v153
  %171 = vst.msk [vmem:[%s2 + $0x8] sm:$0xf] %vm168, %v154
  %172 = vst.msk [vmem:[%s2 + $0xc] sm:$0xf] %vm168, %v155
  %173 = vst.msk [vmem:[%s2 + $0x10] sm:$0xf] %vm168, %v156
  %174 = vst.msk [vmem:[%s2 + $0x14] sm:$0xf] %vm168, %v157
  %175 = vst.msk [vmem:[%s2 + $0x18] sm:$0xf] %vm168, %v158
  %176 = vst.msk [vmem:[%s2 + $0x1c] sm:$0xf] %vm168, %v159
  %177 = vst.msk [vmem:[%s2 + $0x20] sm:$0xf] %vm168, %v160
  %178 = vst.msk [vmem:[%s2 + $0x24] sm:$0xf] %vm168, %v161
  %179 = vst.msk [vmem:[%s2 + $0x28] sm:$0xf] %vm168, %v162
  %180 = vst.msk [vmem:[%s2 + $0x2c] sm:$0xf] %vm168, %v163
  %181 = vst.msk [vmem:[%s2 + $0x30] sm:$0xf] %vm168, %v164
  %182 = vst.msk [vmem:[%s2 + $0x34] sm:$0xf] %vm168, %v165
  %183 = vst.msk [vmem:[%s2 + $0x38] sm:$0xf] %vm168, %v166
  %184 = vst.msk [vmem:[%s2 + $0x3c] sm:$0xf] %vm168, %v167
  %vm185 = vcmask 261120
  %v186 = vsel %vm185, %v113, 0.0
  %v187 = vsel %vm185, %v115, 0.0
  %v188 = vadd.f32 %v186, %v187
  %v189 = vsel %vm185, %v118, 0.0
  %v190 = vadd.f32 %v188, %v189
  %v191 = vsel %vm185, %v120, 0.0
  %v192 = vadd.f32 %v190, %v191
  %v193 = vsel %vm185, %v123, 0.0
  %v194 = vadd.f32 %v192, %v193
  %v195 = vsel %vm185, %v125, 0.0
  %v196 = vadd.f32 %v194, %v195
  %v197 = vsel %vm185, %v128, 0.0
  %v198 = vadd.f32 %v196, %v197
  %v199 = vsel %vm185, %v130, 0.0
  %v200 = vadd.f32 %v198, %v199
  %v201 = vsel %vm185, %v133, 0.0
  %v202 = vadd.f32 %v200, %v201
  %v203 = vsel %vm185, %v135, 0.0
  %v204 = vadd.f32 %v202, %v203
  %v205 = vsel %vm185, %v138, 0.0
  %v206 = vadd.f32 %v204, %v205
  %v207 = vsel %vm185, %v140, 0.0
  %v208 = vadd.f32 %v206, %v207
  %v209 = vsel %vm185, %v143, 0.0
  %v210 = vadd.f32 %v208, %v209
  %v211 = vsel %vm185, %v145, 0.0
  %v212 = vadd.f32 %v210, %v211
  %v213 = vsel %vm185, %v148, 0.0
  %v214 = vadd.f32 %v212, %v213
  %v215 = vsel %vm185, %v150, 0.0
  %v216 = vadd.f32 %v214, %v215
  %v217 = vrot.slane %v216, 4
  %v218 = vadd.f32 %v216, %v217
  %v219 = vrot.slane %v218, 2
  %v220 = vadd.f32 %v218, %v219
  %v221 = vrot.slane %v220, 1
  %v222 = vadd.f32 %v220, %v221
  %vm223 = vcmask 253952
  %224 = vst.msk [vmem:[%s3] sm:$0x1] %vm223, %v222
  %v225 = vmul.f32 %v113, %v113
  %v226 = vmul.f32 %v115, %v115
  %v227 = vmul.f32 %v118, %v118
  %v228 = vmul.f32 %v120, %v120
  %v229 = vmul.f32 %v123, %v123
  %v230 = vmul.f32 %v125, %v125
  %v231 = vmul.f32 %v128, %v128
  %v232 = vmul.f32 %v130, %v130
  %v233 = vmul.f32 %v133, %v133
  %v234 = vmul.f32 %v135, %v135
  %v235 = vmul.f32 %v138, %v138
  %v236 = vmul.f32 %v140, %v140
  %v237 = vmul.f32 %v143, %v143
  %v238 = vmul.f32 %v145, %v145
  %v239 = vmul.f32 %v148, %v148
  %v240 = vmul.f32 %v150, %v150
  %v241 = vsel %vm185, %v225, 0.0
  %v242 = vsel %vm185, %v226, 0.0
  %v243 = vadd.f32 %v241, %v242
  %v244 = vsel %vm185, %v227, 0.0
  %v245 = vadd.f32 %v243, %v244
  %v246 = vsel %vm185, %v228, 0.0
  %v247 = vadd.f32 %v245, %v246
  %v248 = vsel %vm185, %v229, 0.0
  %v249 = vadd.f32 %v247, %v248
  %v250 = vsel %vm185, %v230, 0.0
  %v251 = vadd.f32 %v249, %v250
  %v252 = vsel %vm185, %v231, 0.0
  %v253 = vadd.f32 %v251, %v252
  %v254 = vsel %vm185, %v232, 0.0
  %v255 = vadd.f32 %v253, %v254
  %v256 = vsel %vm185, %v233, 0.0
  %v257 = vadd.f32 %v255, %v256
  %v258 = vsel %vm185, %v234, 0.0
  %v259 = vadd.f32 %v257, %v258
  %v260 = vsel %vm185, %v235, 0.0
  %v261 = vadd.f32 %v259, %v260
  %v262 = vsel %vm185, %v236, 0.0
  %v263 = vadd.f32 %v261, %v262
  %v264 = vsel %vm185, %v237, 0.0
  %v265 = vadd.f32 %v263, %v264
  %v266 = vsel %vm185, %v238, 0.0
  %v267 = vadd.f32 %v265, %v266
  %v268 = vsel %vm185, %v239, 0.0
  %v269 = vadd.f32 %v267, %v268
  %v270 = vsel %vm185, %v240, 0.0
  %v271 = vadd.f32 %v269, %v270
  %v272 = vrot.slane %v271, 4
  %v273 = vadd.f32 %v271, %v272
  %v274 = vrot.slane %v273, 2
  %v275 = vadd.f32 %v273, %v274
  %v276 = vrot.slane %v275, 1
  %v277 = vadd.f32 %v275, %v276
  %278 = vst.msk [vmem:[%s3 + $0x1] sm:$0x1] %vm223, %v277
  // Predicated region
  $region10: #{bottleneck_forward.10} parent=0 // pred_check
    _
  $region11: #{bottleneck_forward.10} parent=0 // pred_check_branch
    %280 = sbr.rel (0) target = $region13
  $region12: #{bottleneck_forward.10} parent=0 // pred_region
    _
  $region13: #{bottleneck_forward.10} parent=0 // pred_fallthru
    _
  // Predicated region
  $region14: #{bottleneck_forward.10} parent=0 // pred_check
    _
  $region15: #{bottleneck_forward.10} parent=0 // pred_check_branch
    %282 = sbr.rel (0) target = $region17
  $region16: #{bottleneck_forward.10} parent=0 // pred_region
    _
  $region17: #{bottleneck_forward.10} parent=0 // pred_fallthru
    _
  // Predicated region
  $region18: #{bottleneck_forward.10} parent=0 // pred_check
    _
  $region19: #{bottleneck_forward.10} parent=0 // pred_check_branch
    %284 = sbr.rel (0) target = $region21
  $region20: #{bottleneck_forward.10} parent=0 // pred_region
    _
  $region21: #{bottleneck_forward.10} parent=0 // pred_fallthru
    _
  // Predicated region
  $region22: #{bottleneck_forward.10} parent=0 // pred_check
    _
  $region23: #{bottleneck_forward.10} parent=0 // pred_check_branch
    %286 = sbr.rel (0) target = $region25
  $region24: #{bottleneck_forward.10} parent=0 // pred_region
    _
  $region25: #{bottleneck_forward.10} parent=0 // pred_fallthru
    _

// kernel: bottleneck_forward.7
$region0: #{bottleneck_forward.7}
  #allocation0 [shape = 'u32[]', space=smem, size = 0x4, offset = 0x4, fixed_abs, tag = 'smem constant byte address 0x4 - core index']
  #allocation1 [shape = 'u32[72,128]{1,0:T(1,128)}', space=vmem, size = 0x9000, scoped, tag = 'internal scratch']
  %s0 = inlined_call_operand.vmem [shape: bf16[512,8], index: 0, kind: input, shape index: {}]
  %s1 = inlined_call_operand.vmem [shape: f32[1,8], index: 1, kind: input, shape index: {}]
  %s2 = inlined_call_operand.vmem [shape: f32[1,8], index: 2, kind: input, shape index: {}]
  %s3 = inlined_call_operand.vmem [shape: bf16[512,8], index: 3, kind: output, shape index: {}]
  %s4 = sld [smem:[#allocation0]]
  $region22: #{bottleneck_forward.7} parent=0
    _
  %s6 = ssub.s32 1, %s4
  %s7 = scalar_select 0, %s6, %s4
  // Predicated region
  $region2: #{bottleneck_forward.7} parent=0 // pred_check
    _
  $region3: #{bottleneck_forward.7} parent=0 // pred_check_branch
    %9 = sbr.rel (0) target = $region5
  $region4: #{bottleneck_forward.7} parent=0 // pred_region
    _
  $region5: #{bottleneck_forward.7} parent=0 // pred_fallthru
    _
  // Predicated region
  $region6: #{bottleneck_forward.7} parent=0 // pred_check
    _
  $region7: #{bottleneck_forward.7} parent=0 // pred_check_branch
    %11 = sbr.rel (0) target = $region9
  $region8: #{bottleneck_forward.7} parent=0 // pred_region
    _
  $region9: #{bottleneck_forward.7} parent=0 // pred_fallthru
    _
  // Predicated region
  $region10: #{bottleneck_forward.7} parent=0 // pred_check
    _
  $region11: #{bottleneck_forward.7} parent=0 // pred_check_branch
    %13 = sbr.rel (0) target = $region13
  $region12: #{bottleneck_forward.7} parent=0 // pred_region
    _
  $region13: #{bottleneck_forward.7} parent=0 // pred_fallthru
    _
  %v14 = vld [vmem:[%s0] sm:$0xf]
  %v15 = vld [vmem:[%s0 + $0x4] sm:$0xf]
  %v16 = vld [vmem:[%s0 + $0x8] sm:$0xf]
  %v17 = vld [vmem:[%s0 + $0xc] sm:$0xf]
  %v18 = vld [vmem:[%s0 + $0x10] sm:$0xf]
  %v19 = vld [vmem:[%s0 + $0x14] sm:$0xf]
  %v20 = vld [vmem:[%s0 + $0x18] sm:$0xf]
  %v21 = vld [vmem:[%s0 + $0x1c] sm:$0xf]
  %v22 = vld [vmem:[%s0 + $0x20] sm:$0xf]
  %v23 = vld [vmem:[%s0 + $0x24] sm:$0xf]
  %v24 = vld [vmem:[%s0 + $0x28] sm:$0xf]
  %v25 = vld [vmem:[%s0 + $0x2c] sm:$0xf]
  %v26 = vld [vmem:[%s0 + $0x30] sm:$0xf]
  %v27 = vld [vmem:[%s0 + $0x34] sm:$0xf]
  %v28 = vld [vmem:[%s0 + $0x38] sm:$0xf]
  %v29 = vld [vmem:[%s0 + $0x3c] sm:$0xf]
  %v30 = vld [vmem:[%s0 + $0x40] sm:$0xf]
  %v31 = vld [vmem:[%s0 + $0x44] sm:$0xf]
  %v32 = vld [vmem:[%s0 + $0x48] sm:$0xf]
  %v33 = vld [vmem:[%s0 + $0x4c] sm:$0xf]
  %v34 = vld [vmem:[%s0 + $0x50] sm:$0xf]
  %v35 = vld [vmem:[%s0 + $0x54] sm:$0xf]
  %v36 = vld [vmem:[%s0 + $0x58] sm:$0xf]
  %v37 = vld [vmem:[%s0 + $0x5c] sm:$0xf]
  %v38 = vld [vmem:[%s0 + $0x60] sm:$0xf]
  %v39 = vld [vmem:[%s0 + $0x64] sm:$0xf]
  %v40 = vld [vmem:[%s0 + $0x68] sm:$0xf]
  %v41 = vld [vmem:[%s0 + $0x6c] sm:$0xf]
  %v42 = vld [vmem:[%s0 + $0x70] sm:$0xf]
  %v43 = vld [vmem:[%s0 + $0x74] sm:$0xf]
  %v44 = vld [vmem:[%s0 + $0x78] sm:$0xf]
  %v45 = vld [vmem:[%s0 + $0x7c] sm:$0xf]
  %v46 = vld [vmem:[%s0 + $0x80] sm:$0xf]
  %v47 = vld [vmem:[%s0 + $0x84] sm:$0xf]
  %v48 = vld [vmem:[%s0 + $0x88] sm:$0xf]
  %v49 = vld [vmem:[%s0 + $0x8c] sm:$0xf]
  %v50 = vld [vmem:[%s0 + $0x90] sm:$0xf]
  %v51 = vld [vmem:[%s0 + $0x94] sm:$0xf]
  %v52 = vld [vmem:[%s0 + $0x98] sm:$0xf]
  %v53 = vld [vmem:[%s0 + $0x9c] sm:$0xf]
  %v54 = vld [vmem:[%s0 + $0xa0] sm:$0xf]
  %v55 = vld [vmem:[%s0 + $0xa4] sm:$0xf]
  %v56 = vld [vmem:[%s0 + $0xa8] sm:$0xf]
  %v57 = vld [vmem:[%s0 + $0xac] sm:$0xf]
  %v58 = vld [vmem:[%s0 + $0xb0] sm:$0xf]
  %v59 = vld [vmem:[%s0 + $0xb4] sm:$0xf]
  %v60 = vld [vmem:[%s0 + $0xb8] sm:$0xf]
  %v61 = vld [vmem:[%s0 + $0xbc] sm:$0xf]
  %v62 = vld [vmem:[%s0 + $0xc0] sm:$0xf]
  %v63 = vld [vmem:[%s0 + $0xc4] sm:$0xf]
  %v64 = vld [vmem:[%s0 + $0xc8] sm:$0xf]
  %v65 = vld [vmem:[%s0 + $0xcc] sm:$0xf]
  %v66 = vld [vmem:[%s0 + $0xd0] sm:$0xf]
  %v67 = vld [vmem:[%s0 + $0xd4] sm:$0xf]
  %v68 = vld [vmem:[%s0 + $0xd8] sm:$0xf]
  %v69 = vld [vmem:[%s0 + $0xdc] sm:$0xf]
  %v70 = vld [vmem:[%s0 + $0xe0] sm:$0xf]
  %v71 = vld [vmem:[%s0 + $0xe4] sm:$0xf]
  %v72 = vld [vmem:[%s0 + $0xe8] sm:$0xf]
  %v73 = vld [vmem:[%s0 + $0xec] sm:$0xf]
  %v74 = vld [vmem:[%s0 + $0xf0] sm:$0xf]
  %v75 = vld [vmem:[%s0 + $0xf4] sm:$0xf]
  %v76 = vld [vmem:[%s0 + $0xf8] sm:$0xf]
  %v77 = vld [vmem:[%s0 + $0xfc] sm:$0xf]
  %v78 = vunpack.c.l.bf16 %v14
  %v79 = vunpack.c.l.bf16 %v15
  %v80 = vunpack.c.l.bf16 %v16
  %v81 = vunpack.c.l.bf16 %v17
  %v82 = vunpack.c.l.bf16 %v18
  %v83 = vunpack.c.l.bf16 %v19
  %v84 = vunpack.c.l.bf16 %v20
  %v85 = vunpack.c.l.bf16 %v21
  %v86 = vunpack.c.l.bf16 %v22
  %v87 = vunpack.c.l.bf16 %v23
  %v88 = vunpack.c.l.bf16 %v24
  %v89 = vunpack.c.l.bf16 %v25
  %v90 = vunpack.c.l.bf16 %v26
  %v91 = vunpack.c.l.bf16 %v27
  %v92 = vunpack.c.l.bf16 %v28
  %v93 = vunpack.c.l.bf16 %v29
  %v94 = vunpack.c.l.bf16 %v30
  %v95 = vunpack.c.l.bf16 %v31
  %v96 = vunpack.c.l.bf16 %v32
  %v97 = vunpack.c.l.bf16 %v33
  %v98 = vunpack.c.l.bf16 %v34
  %v99 = vunpack.c.l.bf16 %v35
  %v100 = vunpack.c.l.bf16 %v36
  %v101 = vunpack.c.l.bf16 %v37
  %v102 = vunpack.c.l.bf16 %v38
  %v103 = vunpack.c.l.bf16 %v39
  %v104 = vunpack.c.l.bf16 %v40
  %v105 = vunpack.c.l.bf16 %v41
  %v106 = vunpack.c.l.bf16 %v42
  %v107 = vunpack.c.l.bf16 %v43
  %v108 = vunpack.c.l.bf16 %v44
  %v109 = vunpack.c.l.bf16 %v45
  %v110 = vunpack.c.l.bf16 %v46
  %v111 = vunpack.c.l.bf16 %v47
  %v112 = vunpack.c.l.bf16 %v48
  %v113 = vunpack.c.l.bf16 %v49
  %v114 = vunpack.c.l.bf16 %v50
  %v115 = vunpack.c.l.bf16 %v51
  %v116 = vunpack.c.l.bf16 %v52
  %v117 = vunpack.c.l.bf16 %v53
  %v118 = vunpack.c.l.bf16 %v54
  %v119 = vunpack.c.l.bf16 %v55
  %v120 = vunpack.c.l.bf16 %v56
  %v121 = vunpack.c.l.bf16 %v57
  %v122 = vunpack.c.l.bf16 %v58
  %v123 = vunpack.c.l.bf16 %v59
  %v124 = vunpack.c.l.bf16 %v60
  %v125 = vunpack.c.l.bf16 %v61
  %v126 = vunpack.c.l.bf16 %v62
  %v127 = vunpack.c.l.bf16 %v63
  %v128 = vunpack.c.l.bf16 %v64
  %v129 = vunpack.c.l.bf16 %v65
  %v130 = vunpack.c.l.bf16 %v66
  %v131 = vunpack.c.l.bf16 %v67
  %v132 = vunpack.c.l.bf16 %v68
  %v133 = vunpack.c.l.bf16 %v69
  %v134 = vunpack.c.l.bf16 %v70
  %v135 = vunpack.c.l.bf16 %v71
  %v136 = vunpack.c.l.bf16 %v72
  %v137 = vunpack.c.l.bf16 %v73
  %v138 = vunpack.c.l.bf16 %v74
  %v139 = vunpack.c.l.bf16 %v75
  %v140 = vunpack.c.l.bf16 %v76
  %v141 = vunpack.c.l.bf16 %v77
  %v142 = vld [vmem:[%s1] sm:$0x1]
  %v144 = vperm.slane %v142, 0
  %v146 = vmul.f32 %v78, %v144
  %v147 = vmul.f32 %v79, %v144
  %v148 = vmul.f32 %v80, %v144
  %v149 = vmul.f32 %v81, %v144
  %v150 = vmul.f32 %v82, %v144
  %v151 = vmul.f32 %v83, %v144
  %v152 = vmul.f32 %v84, %v144
  %v153 = vmul.f32 %v85, %v144
  %v154 = vmul.f32 %v86, %v144
  %v155 = vmul.f32 %v87, %v144
  %v156 = vmul.f32 %v88, %v144
  %v157 = vmul.f32 %v89, %v144
  %v158 = vmul.f32 %v90, %v144
  %v159 = vmul.f32 %v91, %v144
  %v160 = vmul.f32 %v92, %v144
  %v161 = vmul.f32 %v93, %v144
  %v162 = vmul.f32 %v94, %v144
  %v163 = vmul.f32 %v95, %v144
  %v164 = vmul.f32 %v96, %v144
  %v165 = vmul.f32 %v97, %v144
  %v166 = vmul.f32 %v98, %v144
  %v167 = vmul.f32 %v99, %v144
  %v168 = vmul.f32 %v100, %v144
  %v169 = vmul.f32 %v101, %v144
  %v170 = vmul.f32 %v102, %v144
  %v171 = vmul.f32 %v103, %v144
  %v172 = vmul.f32 %v104, %v144
  %v173 = vmul.f32 %v105, %v144
  %v174 = vmul.f32 %v106, %v144
  %v175 = vmul.f32 %v107, %v144
  %v176 = vmul.f32 %v108, %v144
  %v177 = vmul.f32 %v109, %v144
  %v178 = vmul.f32 %v110, %v144
  %v179 = vmul.f32 %v111, %v144
  %v180 = vmul.f32 %v112, %v144
  %v181 = vmul.f32 %v113, %v144
  %v182 = vmul.f32 %v114, %v144
  %v183 = vmul.f32 %v115, %v144
  %v184 = vmul.f32 %v116, %v144
  %v185 = vmul.f32 %v117, %v144
  %v186 = vmul.f32 %v118, %v144
  %v187 = vmul.f32 %v119, %v144
  %v188 = vmul.f32 %v120, %v144
  %v189 = vmul.f32 %v121, %v144
  %v190 = vmul.f32 %v122, %v144
  %v191 = vmul.f32 %v123, %v144
  %v192 = vmul.f32 %v124, %v144
  %v193 = vmul.f32 %v125, %v144
  %v194 = vmul.f32 %v126, %v144
  %v195 = vmul.f32 %v127, %v144
  %v196 = vmul.f32 %v128, %v144
  %v197 = vmul.f32 %v129, %v144
  %v198 = vmul.f32 %v130, %v144
  %v199 = vmul.f32 %v131, %v144
  %v200 = vmul.f32 %v132, %v144
  %v201 = vmul.f32 %v133, %v144
  %v202 = vmul.f32 %v134, %v144
  %v203 = vmul.f32 %v135, %v144
  %v204 = vmul.f32 %v136, %v144
  %v205 = vmul.f32 %v137, %v144
  %v206 = vmul.f32 %v138, %v144
  %v207 = vmul.f32 %v139, %v144
  %v208 = vmul.f32 %v140, %v144
  %v209 = vmul.f32 %v141, %v144
  %v210 = vld [vmem:[%s2] sm:$0x1]
  %v212 = vperm.slane %v210, 0
  %v214 = vadd.f32 %v146, %v212
  %v215 = vadd.f32 %v147, %v212
  %v216 = vadd.f32 %v148, %v212
  %v217 = vadd.f32 %v149, %v212
  %v218 = vadd.f32 %v150, %v212
  %v219 = vadd.f32 %v151, %v212
  %v220 = vadd.f32 %v152, %v212
  %v221 = vadd.f32 %v153, %v212
  %v222 = vadd.f32 %v154, %v212
  %v223 = vadd.f32 %v155, %v212
  %v224 = vadd.f32 %v156, %v212
  %v225 = vadd.f32 %v157, %v212
  %v226 = vadd.f32 %v158, %v212
  %v227 = vadd.f32 %v159, %v212
  %v228 = vadd.f32 %v160, %v212
  %v229 = vadd.f32 %v161, %v212
  %v230 = vadd.f32 %v162, %v212
  %v231 = vadd.f32 %v163, %v212
  %v232 = vadd.f32 %v164, %v212
  %v233 = vadd.f32 %v165, %v212
  %v234 = vadd.f32 %v166, %v212
  %v235 = vadd.f32 %v167, %v212
  %v236 = vadd.f32 %v168, %v212
  %v237 = vadd.f32 %v169, %v212
  %v238 = vadd.f32 %v170, %v212
  %v239 = vadd.f32 %v171, %v212
  %v240 = vadd.f32 %v172, %v212
  %v241 = vadd.f32 %v173, %v212
  %v242 = vadd.f32 %v174, %v212
  %v243 = vadd.f32 %v175, %v212
  %v244 = vadd.f32 %v176, %v212
  %v245 = vadd.f32 %v177, %v212
  %v246 = vadd.f32 %v178, %v212
  %v247 = vadd.f32 %v179, %v212
  %v248 = vadd.f32 %v180, %v212
  %v249 = vadd.f32 %v181, %v212
  %v250 = vadd.f32 %v182, %v212
  %v251 = vadd.f32 %v183, %v212
  %v252 = vadd.f32 %v184, %v212
  %v253 = vadd.f32 %v185, %v212
  %v254 = vadd.f32 %v186, %v212
  %v255 = vadd.f32 %v187, %v212
  %v256 = vadd.f32 %v188, %v212
  %v257 = vadd.f32 %v189, %v212
  %v258 = vadd.f32 %v190, %v212
  %v259 = vadd.f32 %v191, %v212
  %v260 = vadd.f32 %v192, %v212
  %v261 = vadd.f32 %v193, %v212
  %v262 = vadd.f32 %v194, %v212
  %v263 = vadd.f32 %v195, %v212
  %v264 = vadd.f32 %v196, %v212
  %v265 = vadd.f32 %v197, %v212
  %v266 = vadd.f32 %v198, %v212
  %v267 = vadd.f32 %v199, %v212
  %v268 = vadd.f32 %v200, %v212
  %v269 = vadd.f32 %v201, %v212
  %v270 = vadd.f32 %v202, %v212
  %v271 = vadd.f32 %v203, %v212
  %v272 = vadd.f32 %v204, %v212
  %v273 = vadd.f32 %v205, %v212
  %v274 = vadd.f32 %v206, %v212
  %v275 = vadd.f32 %v207, %v212
  %v276 = vadd.f32 %v208, %v212
  %v277 = vadd.f32 %v209, %v212
  %v278 = vmax.f32 %v214, 0.0
  %v279 = vmax.f32 %v215, 0.0
  %v280 = vmax.f32 %v216, 0.0
  %v281 = vmax.f32 %v217, 0.0
  %v282 = vmax.f32 %v218, 0.0
  %v283 = vmax.f32 %v219, 0.0
  %v284 = vmax.f32 %v220, 0.0
  %v285 = vmax.f32 %v221, 0.0
  %v286 = vmax.f32 %v222, 0.0
  %v287 = vmax.f32 %v223, 0.0
  %v288 = vmax.f32 %v224, 0.0
  %v289 = vmax.f32 %v225, 0.0
  %v290 = vmax.f32 %v226, 0.0
  %v291 = vmax.f32 %v227, 0.0
  %v292 = vmax.f32 %v228, 0.0
  %v293 = vmax.f32 %v229, 0.0
  %v294 = vmax.f32 %v230, 0.0
  %v295 = vmax.f32 %v231, 0.0
  %v296 = vmax.f32 %v232, 0.0
  %v297 = vmax.f32 %v233, 0.0
  %v298 = vmax.f32 %v234, 0.0
  %v299 = vmax.f32 %v235, 0.0
  %v300 = vmax.f32 %v236, 0.0
  %v301 = vmax.f32 %v237, 0.0
  %v302 = vmax.f32 %v238, 0.0
  %v303 = vmax.f32 %v239, 0.0
  %v304 = vmax.f32 %v240, 0.0
  %v305 = vmax.f32 %v241, 0.0
  %v306 = vmax.f32 %v242, 0.0
  %v307 = vmax.f32 %v243, 0.0
  %v308 = vmax.f32 %v244, 0.0
  %v309 = vmax.f32 %v245, 0.0
  %v310 = vmax.f32 %v246, 0.0
  %v311 = vmax.f32 %v247, 0.0
  %v312 = vmax.f32 %v248, 0.0
  %v313 = vmax.f32 %v249, 0.0
  %v314 = vmax.f32 %v250, 0.0
  %v315 = vmax.f32 %v251, 0.0
  %v316 = vmax.f32 %v252, 0.0
  %v317 = vmax.f32 %v253, 0.0
  %v318 = vmax.f32 %v254, 0.0
  %v319 = vmax.f32 %v255, 0.0
  %v320 = vmax.f32 %v256, 0.0
  %v321 = vmax.f32 %v257, 0.0
  %v322 = vmax.f32 %v258, 0.0
  %v323 = vmax.f32 %v259, 0.0
  %v324 = vmax.f32 %v260, 0.0
  %v325 = vmax.f32 %v261, 0.0
  %v326 = vmax.f32 %v262, 0.0
  %v327 = vmax.f32 %v263, 0.0
  %v328 = vmax.f32 %v264, 0.0
  %v329 = vmax.f32 %v265, 0.0
  %v330 = vmax.f32 %v266, 0.0
  %v331 = vmax.f32 %v267, 0.0
  %v332 = vmax.f32 %v268, 0.0
  %v333 = vmax.f32 %v269, 0.0
  %v334 = vmax.f32 %v270, 0.0
  %v335 = vmax.f32 %v271, 0.0
  %v336 = vmax.f32 %v272, 0.0
  %v337 = vmax.f32 %v273, 0.0
  %v338 = vmax.f32 %v274, 0.0
  %v339 = vmax.f32 %v275, 0.0
  %v340 = vmax.f32 %v276, 0.0
  %v341 = vmax.f32 %v277, 0.0
  %v342 = vpack.c.bf16 %v278, %v278
  %v343 = vpack.c.bf16 %v279, %v279
  %v344 = vpack.c.bf16 %v280, %v280
  %v345 = vpack.c.bf16 %v281, %v281
  %v346 = vpack.c.bf16 %v282, %v282
  %v347 = vpack.c.bf16 %v283, %v283
  %v348 = vpack.c.bf16 %v284, %v284
  %v349 = vpack.c.bf16 %v285, %v285
  %v350 = vpack.c.bf16 %v286, %v286
  %v351 = vpack.c.bf16 %v287, %v287
  %v352 = vpack.c.bf16 %v288, %v288
  %v353 = vpack.c.bf16 %v289, %v289
  %v354 = vpack.c.bf16 %v290, %v290
  %v355 = vpack.c.bf16 %v291, %v291
  %v356 = vpack.c.bf16 %v292, %v292
  %v357 = vpack.c.bf16 %v293, %v293
  %v358 = vpack.c.bf16 %v294, %v294
  %v359 = vpack.c.bf16 %v295, %v295
  %v360 = vpack.c.bf16 %v296, %v296
  %v361 = vpack.c.bf16 %v297, %v297
  %v362 = vpack.c.bf16 %v298, %v298
  %v363 = vpack.c.bf16 %v299, %v299
  %v364 = vpack.c.bf16 %v300, %v300
  %v365 = vpack.c.bf16 %v301, %v301
  %v366 = vpack.c.bf16 %v302, %v302
  %v367 = vpack.c.bf16 %v303, %v303
  %v368 = vpack.c.bf16 %v304, %v304
  %v369 = vpack.c.bf16 %v305, %v305
  %v370 = vpack.c.bf16 %v306, %v306
  %v371 = vpack.c.bf16 %v307, %v307
  %v372 = vpack.c.bf16 %v308, %v308
  %v373 = vpack.c.bf16 %v309, %v309
  %v374 = vpack.c.bf16 %v310, %v310
  %v375 = vpack.c.bf16 %v311, %v311
  %v376 = vpack.c.bf16 %v312, %v312
  %v377 = vpack.c.bf16 %v313, %v313
  %v378 = vpack.c.bf16 %v314, %v314
  %v379 = vpack.c.bf16 %v315, %v315
  %v380 = vpack.c.bf16 %v316, %v316
  %v381 = vpack.c.bf16 %v317, %v317
  %v382 = vpack.c.bf16 %v318, %v318
  %v383 = vpack.c.bf16 %v319, %v319
  %v384 = vpack.c.bf16 %v320, %v320
  %v385 = vpack.c.bf16 %v321, %v321
  %v386 = vpack.c.bf16 %v322, %v322
  %v387 = vpack.c.bf16 %v323, %v323
  %v388 = vpack.c.bf16 %v324, %v324
  %v389 = vpack.c.bf16 %v325, %v325
  %v390 = vpack.c.bf16 %v326, %v326
  %v391 = vpack.c.bf16 %v327, %v327
  %v392 = vpack.c.bf16 %v328, %v328
  %v393 = vpack.c.bf16 %v329, %v329
  %v394 = vpack.c.bf16 %v330, %v330
  %v395 = vpack.c.bf16 %v331, %v331
  %v396 = vpack.c.bf16 %v332, %v332
  %v397 = vpack.c.bf16 %v333, %v333
  %v398 = vpack.c.bf16 %v334, %v334
  %v399 = vpack.c.bf16 %v335, %v335
  %v400 = vpack.c.bf16 %v336, %v336
  %v401 = vpack.c.bf16 %v337, %v337
  %v402 = vpack.c.bf16 %v338, %v338
  %v403 = vpack.c.bf16 %v339, %v339
  %v404 = vpack.c.bf16 %v340, %v340
  %v405 = vpack.c.bf16 %v341, %v341
  %vm406 = vcmask 60416
  %407 = vst.msk [vmem:[%s3] sm:$0xf] %vm406, %v342
  %408 = vst.msk [vmem:[%s3 + $0x4] sm:$0xf] %vm406, %v343
  %409 = vst.msk [vmem:[%s3 + $0x8] sm:$0xf] %vm406, %v344
  %410 = vst.msk [vmem:[%s3 + $0xc] sm:$0xf] %vm406, %v345
  %411 = vst.msk [vmem:[%s3 + $0x10] sm:$0xf] %vm406, %v346
  %412 = vst.msk [vmem:[%s3 + $0x14] sm:$0xf] %vm406, %v347
  %413 = vst.msk [vmem:[%s3 + $0x18] sm:$0xf] %vm406, %v348
  %414 = vst.msk [vmem:[%s3 + $0x1c] sm:$0xf] %vm406, %v349
  %415 = vst.msk [vmem:[%s3 + $0x20] sm:$0xf] %vm406, %v350
  %416 = vst.msk [vmem:[%s3 + $0x24] sm:$0xf] %vm406, %v351
  %417 = vst.msk [vmem:[%s3 + $0x28] sm:$0xf] %vm406, %v352
  %418 = vst.msk [vmem:[%s3 + $0x2c] sm:$0xf] %vm406, %v353
  %419 = vst.msk [vmem:[%s3 + $0x30] sm:$0xf] %vm406, %v354
  %420 = vst.msk [vmem:[%s3 + $0x34] sm:$0xf] %vm406, %v355
  %421 = vst.msk [vmem:[%s3 + $0x38] sm:$0xf] %vm406, %v356
  %422 = vst.msk [vmem:[%s3 + $0x3c] sm:$0xf] %vm406, %v357
  %423 = vst.msk [vmem:[%s3 + $0x40] sm:$0xf] %vm406, %v358
  %424 = vst.msk [vmem:[%s3 + $0x44] sm:$0xf] %vm406, %v359
  %425 = vst.msk [vmem:[%s3 + $0x48] sm:$0xf] %vm406, %v360
  %426 = vst.msk [vmem:[%s3 + $0x4c] sm:$0xf] %vm406, %v361
  %427 = vst.msk [vmem:[%s3 + $0x50] sm:$0xf] %vm406, %v362
  %428 = vst.msk [vmem:[%s3 + $0x54] sm:$0xf] %vm406, %v363
  %429 = vst.msk [vmem:[%s3 + $0x58] sm:$0xf] %vm406, %v364
  %430 = vst.msk [vmem:[%s3 + $0x5c] sm:$0xf] %vm406, %v365
  %431 = vst.msk [vmem:[%s3 + $0x60] sm:$0xf] %vm406, %v366
  %432 = vst.msk [vmem:[%s3 + $0x64] sm:$0xf] %vm406, %v367
  %433 = vst.msk [vmem:[%s3 + $0x68] sm:$0xf] %vm406, %v368
  %434 = vst.msk [vmem:[%s3 + $0x6c] sm:$0xf] %vm406, %v369
  %435 = vst.msk [vmem:[%s3 + $0x70] sm:$0xf] %vm406, %v370
  %436 = vst.msk [vmem:[%s3 + $0x74] sm:$0xf] %vm406, %v371
  %437 = vst.msk [vmem:[%s3 + $0x78] sm:$0xf] %vm406, %v372
  %438 = vst.msk [vmem:[%s3 + $0x7c] sm:$0xf] %vm406, %v373
  %439 = vst.msk [vmem:[%s3 + $0x80] sm:$0xf] %vm406, %v374
  %440 = vst.msk [vmem:[%s3 + $0x84] sm:$0xf] %vm406, %v375
  %441 = vst.msk [vmem:[%s3 + $0x88] sm:$0xf] %vm406, %v376
  %442 = vst.msk [vmem:[%s3 + $0x8c] sm:$0xf] %vm406, %v377
  %443 = vst.msk [vmem:[%s3 + $0x90] sm:$0xf] %vm406, %v378
  %444 = vst.msk [vmem:[%s3 + $0x94] sm:$0xf] %vm406, %v379
  %445 = vst.msk [vmem:[%s3 + $0x98] sm:$0xf] %vm406, %v380
  %446 = vst.msk [vmem:[%s3 + $0x9c] sm:$0xf] %vm406, %v381
  %447 = vst.msk [vmem:[%s3 + $0xa0] sm:$0xf] %vm406, %v382
  %448 = vst.msk [vmem:[%s3 + $0xa4] sm:$0xf] %vm406, %v383
  %449 = vst.msk [vmem:[%s3 + $0xa8] sm:$0xf] %vm406, %v384
  %450 = vst.msk [vmem:[%s3 + $0xac] sm:$0xf] %vm406, %v385
  %451 = vst.msk [vmem:[%s3 + $0xb0] sm:$0xf] %vm406, %v386
  %452 = vst.msk [vmem:[%s3 + $0xb4] sm:$0xf] %vm406, %v387
  %453 = vst.msk [vmem:[%s3 + $0xb8] sm:$0xf] %vm406, %v388
  %454 = vst.msk [vmem:[%s3 + $0xbc] sm:$0xf] %vm406, %v389
  %455 = vst.msk [vmem:[%s3 + $0xc0] sm:$0xf] %vm406, %v390
  %456 = vst.msk [vmem:[%s3 + $0xc4] sm:$0xf] %vm406, %v391
  %457 = vst.msk [vmem:[%s3 + $0xc8] sm:$0xf] %vm406, %v392
  %458 = vst.msk [vmem:[%s3 + $0xcc] sm:$0xf] %vm406, %v393
  %459 = vst.msk [vmem:[%s3 + $0xd0] sm:$0xf] %vm406, %v394
  %460 = vst.msk [vmem:[%s3 + $0xd4] sm:$0xf] %vm406, %v395
  %461 = vst.msk [vmem:[%s3 + $0xd8] sm:$0xf] %vm406, %v396
  %462 = vst.msk [vmem:[%s3 + $0xdc] sm:$0xf] %vm406, %v397
  %463 = vst.msk [vmem:[%s3 + $0xe0] sm:$0xf] %vm406, %v398
  %464 = vst.msk [vmem:[%s3 + $0xe4] sm:$0xf] %vm406, %v399
  %465 = vst.msk [vmem:[%s3 + $0xe8] sm:$0xf] %vm406, %v400
  %466 = vst.msk [vmem:[%s3 + $0xec] sm:$0xf] %vm406, %v401
  %467 = vst.msk [vmem:[%s3 + $0xf0] sm:$0xf] %vm406, %v402
  %468 = vst.msk [vmem:[%s3 + $0xf4] sm:$0xf] %vm406, %v403
  %469 = vst.msk [vmem:[%s3 + $0xf8] sm:$0xf] %vm406, %v404
  %470 = vst.msk [vmem:[%s3 + $0xfc] sm:$0xf] %vm406, %v405
  // Predicated region
  $region14: #{bottleneck_forward.7} parent=0 // pred_check
    _
  $region15: #{bottleneck_forward.7} parent=0 // pred_check_branch
    %472 = sbr.rel (0) target = $region17
  $region16: #{bottleneck_forward.7} parent=0 // pred_region
    _
  $region17: #{bottleneck_forward.7} parent=0 // pred_fallthru
    _
  // Predicated region
  $region18: #{bottleneck_forward.7} parent=0 // pred_check
    _
  $region19: #{bottleneck_forward.7} parent=0 // pred_check_branch
    %474 = sbr.rel (0) target = $region21
  $region20: #{bottleneck_forward.7} parent=0 // pred_region
    _
  $region21: #{bottleneck_forward.7} parent=0 // pred_fallthru
    _

// kernel: bottleneck_forward.6
$region0: #{bottleneck_forward.6}
  #allocation0 [shape = 'u32[]', space=smem, size = 0x4, offset = 0x4, fixed_abs, tag = 'smem constant byte address 0x4 - core index']
  #allocation1 [shape = 'u32[72,128]{1,0:T(1,128)}', space=vmem, size = 0x9000, scoped, tag = 'internal scratch']
  %s0 = inlined_call_operand.vmem [shape: bf16[512,16], index: 0, kind: input, shape index: {}]
  %s1 = inlined_call_operand.vmem [shape: bf16[16,8], index: 1, kind: input, shape index: {}]
  %s2 = inlined_call_operand.vmem [shape: bf16[512,8], index: 2, kind: output, shape index: {0}]
  %s3 = inlined_call_operand.vmem [shape: f32[1,2,8], index: 3, kind: output, shape index: {1}]
  %4 = xla_tuple %s2, %s3
  %s5 = sld [smem:[#allocation0]]
  $region26: #{bottleneck_forward.6} parent=0
    _
  %s7 = ssub.s32 1, %s5
  %s8 = scalar_select 0, %s7, %s5
  // Predicated region
  $region2: #{bottleneck_forward.6} parent=0 // pred_check
    _
  $region3: #{bottleneck_forward.6} parent=0 // pred_check_branch
    %10 = sbr.rel (0) target = $region5
  $region4: #{bottleneck_forward.6} parent=0 // pred_region
    _
  $region5: #{bottleneck_forward.6} parent=0 // pred_fallthru
    _
  // Predicated region
  $region6: #{bottleneck_forward.6} parent=0 // pred_check
    _
  $region7: #{bottleneck_forward.6} parent=0 // pred_check_branch
    %12 = sbr.rel (0) target = $region9
  $region8: #{bottleneck_forward.6} parent=0 // pred_region
    _
  $region9: #{bottleneck_forward.6} parent=0 // pred_fallthru
    _
  %v14 = vld [vmem:[%s0] sm:$0xf]
  %v15 = vld [vmem:[%s0 + $0x4] sm:$0xf]
  %v16 = vld [vmem:[%s0 + $0x8] sm:$0xf]
  %v17 = vld [vmem:[%s0 + $0xc] sm:$0xf]
  %v18 = vld [vmem:[%s0 + $0x10] sm:$0xf]
  %v19 = vld [vmem:[%s0 + $0x14] sm:$0xf]
  %v20 = vld [vmem:[%s0 + $0x18] sm:$0xf]
  %v21 = vld [vmem:[%s0 + $0x1c] sm:$0xf]
  %v22 = vld [vmem:[%s0 + $0x20] sm:$0xf]
  %v23 = vld [vmem:[%s0 + $0x24] sm:$0xf]
  %v24 = vld [vmem:[%s0 + $0x28] sm:$0xf]
  %v25 = vld [vmem:[%s0 + $0x2c] sm:$0xf]
  %v26 = vld [vmem:[%s0 + $0x30] sm:$0xf]
  %v27 = vld [vmem:[%s0 + $0x34] sm:$0xf]
  %v28 = vld [vmem:[%s0 + $0x38] sm:$0xf]
  %v29 = vld [vmem:[%s0 + $0x3c] sm:$0xf]
  %v30 = vld [vmem:[%s0 + $0x40] sm:$0xf]
  %v31 = vld [vmem:[%s0 + $0x44] sm:$0xf]
  %v32 = vld [vmem:[%s0 + $0x48] sm:$0xf]
  %v33 = vld [vmem:[%s0 + $0x4c] sm:$0xf]
  %v34 = vld [vmem:[%s0 + $0x50] sm:$0xf]
  %v35 = vld [vmem:[%s0 + $0x54] sm:$0xf]
  %v36 = vld [vmem:[%s0 + $0x58] sm:$0xf]
  %v37 = vld [vmem:[%s0 + $0x5c] sm:$0xf]
  %v38 = vld [vmem:[%s0 + $0x60] sm:$0xf]
  %v39 = vld [vmem:[%s0 + $0x64] sm:$0xf]
  %v40 = vld [vmem:[%s0 + $0x68] sm:$0xf]
  %v41 = vld [vmem:[%s0 + $0x6c] sm:$0xf]
  %v42 = vld [vmem:[%s0 + $0x70] sm:$0xf]
  %v43 = vld [vmem:[%s0 + $0x74] sm:$0xf]
  %v44 = vld [vmem:[%s0 + $0x78] sm:$0xf]
  %v45 = vld [vmem:[%s0 + $0x7c] sm:$0xf]
  %v46 = vld [vmem:[%s0 + $0x80] sm:$0xf]
  %v47 = vld [vmem:[%s0 + $0x84] sm:$0xf]
  %v48 = vld [vmem:[%s0 + $0x88] sm:$0xf]
  %v49 = vld [vmem:[%s0 + $0x8c] sm:$0xf]
  %v50 = vld [vmem:[%s0 + $0x90] sm:$0xf]
  %v51 = vld [vmem:[%s0 + $0x94] sm:$0xf]
  %v52 = vld [vmem:[%s0 + $0x98] sm:$0xf]
  %v53 = vld [vmem:[%s0 + $0x9c] sm:$0xf]
  %v54 = vld [vmem:[%s0 + $0xa0] sm:$0xf]
  %v55 = vld [vmem:[%s0 + $0xa4] sm:$0xf]
  %v56 = vld [vmem:[%s0 + $0xa8] sm:$0xf]
  %v57 = vld [vmem:[%s0 + $0xac] sm:$0xf]
  %v58 = vld [vmem:[%s0 + $0xb0] sm:$0xf]
  %v59 = vld [vmem:[%s0 + $0xb4] sm:$0xf]
  %v60 = vld [vmem:[%s0 + $0xb8] sm:$0xf]
  %v61 = vld [vmem:[%s0 + $0xbc] sm:$0xf]
  %v62 = vld [vmem:[%s0 + $0xc0] sm:$0xf]
  %v63 = vld [vmem:[%s0 + $0xc4] sm:$0xf]
  %v64 = vld [vmem:[%s0 + $0xc8] sm:$0xf]
  %v65 = vld [vmem:[%s0 + $0xcc] sm:$0xf]
  %v66 = vld [vmem:[%s0 + $0xd0] sm:$0xf]
  %v67 = vld [vmem:[%s0 + $0xd4] sm:$0xf]
  %v68 = vld [vmem:[%s0 + $0xd8] sm:$0xf]
  %v69 = vld [vmem:[%s0 + $0xdc] sm:$0xf]
  %v70 = vld [vmem:[%s0 + $0xe0] sm:$0xf]
  %v71 = vld [vmem:[%s0 + $0xe4] sm:$0xf]
  %v72 = vld [vmem:[%s0 + $0xe8] sm:$0xf]
  %v73 = vld [vmem:[%s0 + $0xec] sm:$0xf]
  %v74 = vld [vmem:[%s0 + $0xf0] sm:$0xf]
  %v75 = vld [vmem:[%s0 + $0xf4] sm:$0xf]
  %v76 = vld [vmem:[%s0 + $0xf8] sm:$0xf]
  %v77 = vld [vmem:[%s0 + $0xfc] sm:$0xf]
  %v78 = vld [vmem:[%s1] sm:$0xf]
  %v79 = vld [vmem:[%s1 + $0x4] sm:$0xf]
  %v144 = vunpack.c.l.b16 %v14
  %v145 = vunpack.c.l.b16 %v15
  %v146 = vunpack.c.l.b16 %v16
  %v147 = vunpack.c.l.b16 %v17
  %v148 = vunpack.c.l.b16 %v18
  %v149 = vunpack.c.l.b16 %v19
  %v150 = vunpack.c.l.b16 %v20
  %v151 = vunpack.c.l.b16 %v21
  %v152 = vunpack.c.l.b16 %v22
  %v153 = vunpack.c.l.b16 %v23
  %v154 = vunpack.c.l.b16 %v24
  %v155 = vunpack.c.l.b16 %v25
  %v156 = vunpack.c.l.b16 %v26
  %v157 = vunpack.c.l.b16 %v27
  %v158 = vunpack.c.l.b16 %v28
  %v159 = vunpack.c.l.b16 %v29
  %v160 = vunpack.c.l.b16 %v30
  %v161 = vunpack.c.l.b16 %v31
  %v162 = vunpack.c.l.b16 %v32
  %v163 = vunpack.c.l.b16 %v33
  %v164 = vunpack.c.l.b16 %v34
  %v165 = vunpack.c.l.b16 %v35
  %v166 = vunpack.c.l.b16 %v36
  %v167 = vunpack.c.l.b16 %v37
  %v168 = vunpack.c.l.b16 %v38
  %v169 = vunpack.c.l.b16 %v39
  %v170 = vunpack.c.l.b16 %v40
  %v171 = vunpack.c.l.b16 %v41
  %v172 = vunpack.c.l.b16 %v42
  %v173 = vunpack.c.l.b16 %v43
  %v174 = vunpack.c.l.b16 %v44
  %v175 = vunpack.c.l.b16 %v45
  %v176 = vunpack.c.l.b16 %v46
  %v177 = vunpack.c.l.b16 %v47
  %v178 = vunpack.c.l.b16 %v48
  %v179 = vunpack.c.l.b16 %v49
  %v180 = vunpack.c.l.b16 %v50
  %v181 = vunpack.c.l.b16 %v51
  %v182 = vunpack.c.l.b16 %v52
  %v183 = vunpack.c.l.b16 %v53
  %v184 = vunpack.c.l.b16 %v54
  %v185 = vunpack.c.l.b16 %v55
  %v186 = vunpack.c.l.b16 %v56
  %v187 = vunpack.c.l.b16 %v57
  %v188 = vunpack.c.l.b16 %v58
  %v189 = vunpack.c.l.b16 %v59
  %v190 = vunpack.c.l.b16 %v60
  %v191 = vunpack.c.l.b16 %v61
  %v192 = vunpack.c.l.b16 %v62
  %v193 = vunpack.c.l.b16 %v63
  %v194 = vunpack.c.l.b16 %v64
  %v195 = vunpack.c.l.b16 %v65
  %v196 = vunpack.c.l.b16 %v66
  %v197 = vunpack.c.l.b16 %v67
  %v198 = vunpack.c.l.b16 %v68
  %v199 = vunpack.c.l.b16 %v69
  %v200 = vunpack.c.l.b16 %v70
  %v201 = vunpack.c.l.b16 %v71
  %v202 = vunpack.c.l.b16 %v72
  %v203 = vunpack.c.l.b16 %v73
  %v204 = vunpack.c.l.b16 %v74
  %v205 = vunpack.c.l.b16 %v75
  %v206 = vunpack.c.l.b16 %v76
  %v207 = vunpack.c.l.b16 %v77
  %v208 = vpack.c.b16 %v145, %v144
  %v209 = vpack.c.b16 %v147, %v146
  %v210 = vpack.c.b16 %v149, %v148
  %v211 = vpack.c.b16 %v151, %v150
  %v212 = vpack.c.b16 %v153, %v152
  %v213 = vpack.c.b16 %v155, %v154
  %v214 = vpack.c.b16 %v157, %v156
  %v215 = vpack.c.b16 %v159, %v158
  %v216 = vpack.c.b16 %v161, %v160
  %v217 = vpack.c.b16 %v163, %v162
  %v218 = vpack.c.b16 %v165, %v164
  %v219 = vpack.c.b16 %v167, %v166
  %v220 = vpack.c.b16 %v169, %v168
  %v221 = vpack.c.b16 %v171, %v170
  %v222 = vpack.c.b16 %v173, %v172
  %v223 = vpack.c.b16 %v175, %v174
  %v224 = vpack.c.b16 %v177, %v176
  %v225 = vpack.c.b16 %v179, %v178
  %v226 = vpack.c.b16 %v181, %v180
  %v227 = vpack.c.b16 %v183, %v182
  %v228 = vpack.c.b16 %v185, %v184
  %v229 = vpack.c.b16 %v187, %v186
  %v230 = vpack.c.b16 %v189, %v188
  %v231 = vpack.c.b16 %v191, %v190
  %v232 = vpack.c.b16 %v193, %v192
  %v233 = vpack.c.b16 %v195, %v194
  %v234 = vpack.c.b16 %v197, %v196
  %v235 = vpack.c.b16 %v199, %v198
  %v236 = vpack.c.b16 %v201, %v200
  %v237 = vpack.c.b16 %v203, %v202
  %v238 = vpack.c.b16 %v205, %v204
  %v239 = vpack.c.b16 %v207, %v206
  %v242 = vunpack.c.l.b16 %v78
  %v243 = vunpack.c.l.b16 %v79
  %v244 = vpack.c.b16 %v243, %v242
  %vm246 = vcmask 130048
  %v248 = vsel %vm246, %v208, 0
  %v251 = vsel %vm246, %v209, 0
  %v254 = vsel %vm246, %v210, 0
  %v257 = vsel %vm246, %v211, 0
  %v260 = vsel %vm246, %v212, 0
  %v263 = vsel %vm246, %v213, 0
  %v266 = vsel %vm246, %v214, 0
  %v269 = vsel %vm246, %v215, 0
  %v272 = vsel %vm246, %v216, 0
  %v275 = vsel %vm246, %v217, 0
  %v278 = vsel %vm246, %v218, 0
  %v281 = vsel %vm246, %v219, 0
  %v284 = vsel %vm246, %v220, 0
  %v287 = vsel %vm246, %v221, 0
  %v290 = vsel %vm246, %v222, 0
  %v293 = vsel %vm246, %v223, 0
  %v296 = vsel %vm246, %v224, 0
  %v299 = vsel %vm246, %v225, 0
  %v302 = vsel %vm246, %v226, 0
  %v305 = vsel %vm246, %v227, 0
  %v308 = vsel %vm246, %v228, 0
  %v311 = vsel %vm246, %v229, 0
  %v314 = vsel %vm246, %v230, 0
  %v317 = vsel %vm246, %v231, 0
  %v320 = vsel %vm246, %v232, 0
  %v323 = vsel %vm246, %v233, 0
  %v326 = vsel %vm246, %v234, 0
  %v329 = vsel %vm246, %v235, 0
  %v332 = vsel %vm246, %v236, 0
  %v335 = vsel %vm246, %v237, 0
  %v338 = vsel %vm246, %v238, 0
  %v341 = vsel %vm246, %v239, 0
  %343 = vmatpush.bf16.msra.mxu0 0
  %344 = vmatpush.bf16.msra.mxu0 0
  %345 = vmatpush.bf16.msra.mxu0 0
  %346 = vmatpush.bf16.msra.mxu0 0
  %347 = vmatpush.bf16.msra.mxu0 0
  %348 = vmatpush.bf16.msra.mxu0 0
  %349 = vmatpush.bf16.msra.mxu0 0
  %350 = vmatpush.bf16.msra.mxu0 %v244
  %351 = vmatmul.bf16.gmra.mxu0 %v248
  %v352 = vpop.f32.mrf.mxu0
  %v353 = vadd.f32 0.0, %v352
  %v354 = vpop.f32.mrf.mxu0
  %v355 = vadd.f32 0.0, %v354
  %356 = vmatmul.bf16.gmra.mxu0 %v251
  %v357 = vpop.f32.mrf.mxu0
  %v358 = vadd.f32 0.0, %v357
  %v359 = vpop.f32.mrf.mxu0
  %v360 = vadd.f32 0.0, %v359
  %361 = vmatmul.bf16.gmra.mxu0 %v254
  %v362 = vpop.f32.mrf.mxu0
  %v363 = vadd.f32 0.0, %v362
  %v364 = vpop.f32.mrf.mxu0
  %v365 = vadd.f32 0.0, %v364
  %366 = vmatmul.bf16.gmra.mxu0 %v257
  %v367 = vpop.f32.mrf.mxu0
  %v368 = vadd.f32 0.0, %v367
  %v369 = vpop.f32.mrf.mxu0
  %v370 = vadd.f32 0.0, %v369
  %371 = vmatmul.bf16.gmra.mxu0 %v260
  %v372 = vpop.f32.mrf.mxu0
  %v373 = vadd.f32 0.0, %v372
  %v374 = vpop.f32.mrf.mxu0
  %v375 = vadd.f32 0.0, %v374
  %376 = vmatmul.bf16.gmra.mxu0 %v263
  %v377 = vpop.f32.mrf.mxu0
  %v378 = vadd.f32 0.0, %v377
  %v379 = vpop.f32.mrf.mxu0
  %v380 = vadd.f32 0.0, %v379
  %381 = vmatmul.bf16.gmra.mxu0 %v266
  %v382 = vpop.f32.mrf.mxu0
  %v383 = vadd.f32 0.0, %v382
  %v384 = vpop.f32.mrf.mxu0
  %v385 = vadd.f32 0.0, %v384
  %386 = vmatmul.bf16.gmra.mxu0 %v269
  %v387 = vpop.f32.mrf.mxu0
  %v388 = vadd.f32 0.0, %v387
  %v389 = vpop.f32.mrf.mxu0
  %v390 = vadd.f32 0.0, %v389
  %391 = vmatmul.bf16.gmra.mxu0 %v272
  %v392 = vpop.f32.mrf.mxu0
  %v393 = vadd.f32 0.0, %v392
  %v394 = vpop.f32.mrf.mxu0
  %v395 = vadd.f32 0.0, %v394
  %396 = vmatmul.bf16.gmra.mxu0 %v275
  %v397 = vpop.f32.mrf.mxu0
  %v398 = vadd.f32 0.0, %v397
  %v399 = vpop.f32.mrf.mxu0
  %v400 = vadd.f32 0.0, %v399
  %401 = vmatmul.bf16.gmra.mxu0 %v278
  %v402 = vpop.f32.mrf.mxu0
  %v403 = vadd.f32 0.0, %v402
  %v404 = vpop.f32.mrf.mxu0
  %v405 = vadd.f32 0.0, %v404
  %406 = vmatmul.bf16.gmra.mxu0 %v281
  %v407 = vpop.f32.mrf.mxu0
  %v408 = vadd.f32 0.0, %v407
  %v409 = vpop.f32.mrf.mxu0
  %v410 = vadd.f32 0.0, %v409
  %411 = vmatmul.bf16.gmra.mxu0 %v284
  %v412 = vpop.f32.mrf.mxu0
  %v413 = vadd.f32 0.0, %v412
  %v414 = vpop.f32.mrf.mxu0
  %v415 = vadd.f32 0.0, %v414
  %416 = vmatmul.bf16.gmra.mxu0 %v287
  %v417 = vpop.f32.mrf.mxu0
  %v418 = vadd.f32 0.0, %v417
  %v419 = vpop.f32.mrf.mxu0
  %v420 = vadd.f32 0.0, %v419
  %421 = vmatmul.bf16.gmra.mxu0 %v290
  %v422 = vpop.f32.mrf.mxu0
  %v423 = vadd.f32 0.0, %v422
  %v424 = vpop.f32.mrf.mxu0
  %v425 = vadd.f32 0.0, %v424
  %426 = vmatmul.bf16.gmra.mxu0 %v293
  %v427 = vpop.f32.mrf.mxu0
  %v428 = vadd.f32 0.0, %v427
  %v429 = vpop.f32.mrf.mxu0
  %v430 = vadd.f32 0.0, %v429
  %431 = vmatmul.bf16.gmra.mxu0 %v296
  %v432 = vpop.f32.mrf.mxu0
  %v433 = vadd.f32 0.0, %v432
  %v434 = vpop.f32.mrf.mxu0
  %v435 = vadd.f32 0.0, %v434
  %436 = vmatmul.bf16.gmra.mxu0 %v299
  %v437 = vpop.f32.mrf.mxu0
  %v438 = vadd.f32 0.0, %v437
  %v439 = vpop.f32.mrf.mxu0
  %v440 = vadd.f32 0.0, %v439
  %441 = vmatmul.bf16.gmra.mxu0 %v302
  %v442 = vpop.f32.mrf.mxu0
  %v443 = vadd.f32 0.0, %v442
  %v444 = vpop.f32.mrf.mxu0
  %v445 = vadd.f32 0.0, %v444
  %446 = vmatmul.bf16.gmra.mxu0 %v305
  %v447 = vpop.f32.mrf.mxu0
  %v448 = vadd.f32 0.0, %v447
  %v449 = vpop.f32.mrf.mxu0
  %v450 = vadd.f32 0.0, %v449
  %451 = vmatmul.bf16.gmra.mxu0 %v308
  %v452 = vpop.f32.mrf.mxu0
  %v453 = vadd.f32 0.0, %v452
  %v454 = vpop.f32.mrf.mxu0
  %v455 = vadd.f32 0.0, %v454
  %456 = vmatmul.bf16.gmra.mxu0 %v311
  %v457 = vpop.f32.mrf.mxu0
  %v458 = vadd.f32 0.0, %v457
  %v459 = vpop.f32.mrf.mxu0
  %v460 = vadd.f32 0.0, %v459
  %461 = vmatmul.bf16.gmra.mxu0 %v314
  %v462 = vpop.f32.mrf.mxu0
  %v463 = vadd.f32 0.0, %v462
  %v464 = vpop.f32.mrf.mxu0
  %v465 = vadd.f32 0.0, %v464
  %466 = vmatmul.bf16.gmra.mxu0 %v317
  %v467 = vpop.f32.mrf.mxu0
  %v468 = vadd.f32 0.0, %v467
  %v469 = vpop.f32.mrf.mxu0
  %v470 = vadd.f32 0.0, %v469
  %471 = vmatmul.bf16.gmra.mxu0 %v320
  %v472 = vpop.f32.mrf.mxu0
  %v473 = vadd.f32 0.0, %v472
  %v474 = vpop.f32.mrf.mxu0
  %v475 = vadd.f32 0.0, %v474
  %476 = vmatmul.bf16.gmra.mxu0 %v323
  %v477 = vpop.f32.mrf.mxu0
  %v478 = vadd.f32 0.0, %v477
  %v479 = vpop.f32.mrf.mxu0
  %v480 = vadd.f32 0.0, %v479
  %481 = vmatmul.bf16.gmra.mxu0 %v326
  %v482 = vpop.f32.mrf.mxu0
  %v483 = vadd.f32 0.0, %v482
  %v484 = vpop.f32.mrf.mxu0
  %v485 = vadd.f32 0.0, %v484
  %486 = vmatmul.bf16.gmra.mxu0 %v329
  %v487 = vpop.f32.mrf.mxu0
  %v488 = vadd.f32 0.0, %v487
  %v489 = vpop.f32.mrf.mxu0
  %v490 = vadd.f32 0.0, %v489
  %491 = vmatmul.bf16.gmra.mxu0 %v332
  %v492 = vpop.f32.mrf.mxu0
  %v493 = vadd.f32 0.0, %v492
  %v494 = vpop.f32.mrf.mxu0
  %v495 = vadd.f32 0.0, %v494
  %496 = vmatmul.bf16.gmra.mxu0 %v335
  %v497 = vpop.f32.mrf.mxu0
  %v498 = vadd.f32 0.0, %v497
  %v499 = vpop.f32.mrf.mxu0
  %v500 = vadd.f32 0.0, %v499
  %501 = vmatmul.bf16.gmra.mxu0 %v338
  %v502 = vpop.f32.mrf.mxu0
  %v503 = vadd.f32 0.0, %v502
  %v504 = vpop.f32.mrf.mxu0
  %v505 = vadd.f32 0.0, %v504
  %506 = vmatmul.bf16.gmra.mxu0 %v341
  %v507 = vpop.f32.mrf.mxu0
  %v508 = vadd.f32 0.0, %v507
  %v509 = vpop.f32.mrf.mxu0
  %v510 = vadd.f32 0.0, %v509
  %511 = vdwg.mxu0
  %v512 = vpack.c.bf16 %v353, %v353
  %v513 = vpack.c.bf16 %v355, %v355
  %v514 = vpack.c.bf16 %v358, %v358
  %v515 = vpack.c.bf16 %v360, %v360
  %v516 = vpack.c.bf16 %v363, %v363
  %v517 = vpack.c.bf16 %v365, %v365
  %v518 = vpack.c.bf16 %v368, %v368
  %v519 = vpack.c.bf16 %v370, %v370
  %v520 = vpack.c.bf16 %v373, %v373
  %v521 = vpack.c.bf16 %v375, %v375
  %v522 = vpack.c.bf16 %v378, %v378
  %v523 = vpack.c.bf16 %v380, %v380
  %v524 = vpack.c.bf16 %v383, %v383
  %v525 = vpack.c.bf16 %v385, %v385
  %v526 = vpack.c.bf16 %v388, %v388
  %v527 = vpack.c.bf16 %v390, %v390
  %v528 = vpack.c.bf16 %v393, %v393
  %v529 = vpack.c.bf16 %v395, %v395
  %v530 = vpack.c.bf16 %v398, %v398
  %v531 = vpack.c.bf16 %v400, %v400
  %v532 = vpack.c.bf16 %v403, %v403
  %v533 = vpack.c.bf16 %v405, %v405
  %v534 = vpack.c.bf16 %v408, %v408
  %v535 = vpack.c.bf16 %v410, %v410
  %v536 = vpack.c.bf16 %v413, %v413
  %v537 = vpack.c.bf16 %v415, %v415
  %v538 = vpack.c.bf16 %v418, %v418
  %v539 = vpack.c.bf16 %v420, %v420
  %v540 = vpack.c.bf16 %v423, %v423
  %v541 = vpack.c.bf16 %v425, %v425
  %v542 = vpack.c.bf16 %v428, %v428
  %v543 = vpack.c.bf16 %v430, %v430
  %v544 = vpack.c.bf16 %v433, %v433
  %v545 = vpack.c.bf16 %v435, %v435
  %v546 = vpack.c.bf16 %v438, %v438
  %v547 = vpack.c.bf16 %v440, %v440
  %v548 = vpack.c.bf16 %v443, %v443
  %v549 = vpack.c.bf16 %v445, %v445
  %v550 = vpack.c.bf16 %v448, %v448
  %v551 = vpack.c.bf16 %v450, %v450
  %v552 = vpack.c.bf16 %v453, %v453
  %v553 = vpack.c.bf16 %v455, %v455
  %v554 = vpack.c.bf16 %v458, %v458
  %v555 = vpack.c.bf16 %v460, %v460
  %v556 = vpack.c.bf16 %v463, %v463
  %v557 = vpack.c.bf16 %v465, %v465
  %v558 = vpack.c.bf16 %v468, %v468
  %v559 = vpack.c.bf16 %v470, %v470
  %v560 = vpack.c.bf16 %v473, %v473
  %v561 = vpack.c.bf16 %v475, %v475
  %v562 = vpack.c.bf16 %v478, %v478
  %v563 = vpack.c.bf16 %v480, %v480
  %v564 = vpack.c.bf16 %v483, %v483
  %v565 = vpack.c.bf16 %v485, %v485
  %v566 = vpack.c.bf16 %v488, %v488
  %v567 = vpack.c.bf16 %v490, %v490
  %v568 = vpack.c.bf16 %v493, %v493
  %v569 = vpack.c.bf16 %v495, %v495
  %v570 = vpack.c.bf16 %v498, %v498
  %v571 = vpack.c.bf16 %v500, %v500
  %v572 = vpack.c.bf16 %v503, %v503
  %v573 = vpack.c.bf16 %v505, %v505
  %v574 = vpack.c.bf16 %v508, %v508
  %v575 = vpack.c.bf16 %v510, %v510
  %vm576 = vcmask 60416
  %577 = vst.msk [vmem:[%s2] sm:$0xf] %vm576, %v512
  %578 = vst.msk [vmem:[%s2 + $0x4] sm:$0xf] %vm576, %v513
  %579 = vst.msk [vmem:[%s2 + $0x8] sm:$0xf] %vm576, %v514
  %580 = vst.msk [vmem:[%s2 + $0xc] sm:$0xf] %vm576, %v515
  %581 = vst.msk [vmem:[%s2 + $0x10] sm:$0xf] %vm576, %v516
  %582 = vst.msk [vmem:[%s2 + $0x14] sm:$0xf] %vm576, %v517
  %583 = vst.msk [vmem:[%s2 + $0x18] sm:$0xf] %vm576, %v518
  %584 = vst.msk [vmem:[%s2 + $0x1c] sm:$0xf] %vm576, %v519
  %585 = vst.msk [vmem:[%s2 + $0x20] sm:$0xf] %vm576, %v520
  %586 = vst.msk [vmem:[%s2 + $0x24] sm:$0xf] %vm576, %v521
  %587 = vst.msk [vmem:[%s2 + $0x28] sm:$0xf] %vm576, %v522
  %588 = vst.msk [vmem:[%s2 + $0x2c] sm:$0xf] %vm576, %v523
  %589 = vst.msk [vmem:[%s2 + $0x30] sm:$0xf] %vm576, %v524
  %590 = vst.msk [vmem:[%s2 + $0x34] sm:$0xf] %vm576, %v525
  %591 = vst.msk [vmem:[%s2 + $0x38] sm:$0xf] %vm576, %v526
  %592 = vst.msk [vmem:[%s2 + $0x3c] sm:$0xf] %vm576, %v527
  %593 = vst.msk [vmem:[%s2 + $0x40] sm:$0xf] %vm576, %v528
  %594 = vst.msk [vmem:[%s2 + $0x44] sm:$0xf] %vm576, %v529
  %595 = vst.msk [vmem:[%s2 + $0x48] sm:$0xf] %vm576, %v530
  %596 = vst.msk [vmem:[%s2 + $0x4c] sm:$0xf] %vm576, %v531
  %597 = vst.msk [vmem:[%s2 + $0x50] sm:$0xf] %vm576, %v532
  %598 = vst.msk [vmem:[%s2 + $0x54] sm:$0xf] %vm576, %v533
  %599 = vst.msk [vmem:[%s2 + $0x58] sm:$0xf] %vm576, %v534
  %600 = vst.msk [vmem:[%s2 + $0x5c] sm:$0xf] %vm576, %v535
  %601 = vst.msk [vmem:[%s2 + $0x60] sm:$0xf] %vm576, %v536
  %602 = vst.msk [vmem:[%s2 + $0x64] sm:$0xf] %vm576, %v537
  %603 = vst.msk [vmem:[%s2 + $0x68] sm:$0xf] %vm576, %v538
  %604 = vst.msk [vmem:[%s2 + $0x6c] sm:$0xf] %vm576, %v539
  %605 = vst.msk [vmem:[%s2 + $0x70] sm:$0xf] %vm576, %v540
  %606 = vst.msk [vmem:[%s2 + $0x74] sm:$0xf] %vm576, %v541
  %607 = vst.msk [vmem:[%s2 + $0x78] sm:$0xf] %vm576, %v542
  %608 = vst.msk [vmem:[%s2 + $0x7c] sm:$0xf] %vm576, %v543
  %609 = vst.msk [vmem:[%s2 + $0x80] sm:$0xf] %vm576, %v544
  %610 = vst.msk [vmem:[%s2 + $0x84] sm:$0xf] %vm576, %v545
  %611 = vst.msk [vmem:[%s2 + $0x88] sm:$0xf] %vm576, %v546
  %612 = vst.msk [vmem:[%s2 + $0x8c] sm:$0xf] %vm576, %v547
  %613 = vst.msk [vmem:[%s2 + $0x90] sm:$0xf] %vm576, %v548
  %614 = vst.msk [vmem:[%s2 + $0x94] sm:$0xf] %vm576, %v549
  %615 = vst.msk [vmem:[%s2 + $0x98] sm:$0xf] %vm576, %v550
  %616 = vst.msk [vmem:[%s2 + $0x9c] sm:$0xf] %vm576, %v551
  %617 = vst.msk [vmem:[%s2 + $0xa0] sm:$0xf] %vm576, %v552
  %618 = vst.msk [vmem:[%s2 + $0xa4] sm:$0xf] %vm576, %v553
  %619 = vst.msk [vmem:[%s2 + $0xa8] sm:$0xf] %vm576, %v554
  %620 = vst.msk [vmem:[%s2 + $0xac] sm:$0xf] %vm576, %v555
  %621 = vst.msk [vmem:[%s2 + $0xb0] sm:$0xf] %vm576, %v556
  %622 = vst.msk [vmem:[%s2 + $0xb4] sm:$0xf] %vm576, %v557
  %623 = vst.msk [vmem:[%s2 + $0xb8] sm:$0xf] %vm576, %v558
  %624 = vst.msk [vmem:[%s2 + $0xbc] sm:$0xf] %vm576, %v559
  %625 = vst.msk [vmem:[%s2 + $0xc0] sm:$0xf] %vm576, %v560
  %626 = vst.msk [vmem:[%s2 + $0xc4] sm:$0xf] %vm576, %v561
  %627 = vst.msk [vmem:[%s2 + $0xc8] sm:$0xf] %vm576, %v562
  %628 = vst.msk [vmem:[%s2 + $0xcc] sm:$0xf] %vm576, %v563
  %629 = vst.msk [vmem:[%s2 + $0xd0] sm:$0xf] %vm576, %v564
  %630 = vst.msk [vmem:[%s2 + $0xd4] sm:$0xf] %vm576, %v565
  %631 = vst.msk [vmem:[%s2 + $0xd8] sm:$0xf] %vm576, %v566
  %632 = vst.msk [vmem:[%s2 + $0xdc] sm:$0xf] %vm576, %v567
  %633 = vst.msk [vmem:[%s2 + $0xe0] sm:$0xf] %vm576, %v568
  %634 = vst.msk [vmem:[%s2 + $0xe4] sm:$0xf] %vm576, %v569
  %635 = vst.msk [vmem:[%s2 + $0xe8] sm:$0xf] %vm576, %v570
  %636 = vst.msk [vmem:[%s2 + $0xec] sm:$0xf] %vm576, %v571
  %637 = vst.msk [vmem:[%s2 + $0xf0] sm:$0xf] %vm576, %v572
  %638 = vst.msk [vmem:[%s2 + $0xf4] sm:$0xf] %vm576, %v573
  %639 = vst.msk [vmem:[%s2 + $0xf8] sm:$0xf] %vm576, %v574
  %640 = vst.msk [vmem:[%s2 + $0xfc] sm:$0xf] %vm576, %v575
  %vm641 = vcmask 64512
  %v642 = vsel %vm641, %v353, 0.0
  %v643 = vsel %vm641, %v355, 0.0
  %v644 = vadd.f32 %v642, %v643
  %v645 = vsel %vm641, %v358, 0.0
  %v646 = vadd.f32 %v644, %v645
  %v647 = vsel %vm641, %v360, 0.0
  %v648 = vadd.f32 %v646, %v647
  %v649 = vsel %vm641, %v363, 0.0
  %v650 = vadd.f32 %v648, %v649
  %v651 = vsel %vm641, %v365, 0.0
  %v652 = vadd.f32 %v650, %v651
  %v653 = vsel %vm641, %v368, 0.0
  %v654 = vadd.f32 %v652, %v653
  %v655 = vsel %vm641, %v370, 0.0
  %v656 = vadd.f32 %v654, %v655
  %v657 = vsel %vm641, %v373, 0.0
  %v658 = vadd.f32 %v656, %v657
  %v659 = vsel %vm641, %v375, 0.0
  %v660 = vadd.f32 %v658, %v659
  %v661 = vsel %vm641, %v378, 0.0
  %v662 = vadd.f32 %v660, %v661
  %v663 = vsel %vm641, %v380, 0.0
  %v664 = vadd.f32 %v662, %v663
  %v665 = vsel %vm641, %v383, 0.0
  %v666 = vadd.f32 %v664, %v665
  %v667 = vsel %vm641, %v385, 0.0
  %v668 = vadd.f32 %v666, %v667
  %v669 = vsel %vm641, %v388, 0.0
  %v670 = vadd.f32 %v668, %v669
  %v671 = vsel %vm641, %v390, 0.0
  %v672 = vadd.f32 %v670, %v671
  %v673 = vsel %vm641, %v393, 0.0
  %v674 = vadd.f32 %v672, %v673
  %v675 = vsel %vm641, %v395, 0.0
  %v676 = vadd.f32 %v674, %v675
  %v677 = vsel %vm641, %v398, 0.0
  %v678 = vadd.f32 %v676, %v677
  %v679 = vsel %vm641, %v400, 0.0
  %v680 = vadd.f32 %v678, %v679
  %v681 = vsel %vm641, %v403, 0.0
  %v682 = vadd.f32 %v680, %v681
  %v683 = vsel %vm641, %v405, 0.0
  %v684 = vadd.f32 %v682, %v683
  %v685 = vsel %vm641, %v408, 0.0
  %v686 = vadd.f32 %v684, %v685
  %v687 = vsel %vm641, %v410, 0.0
  %v688 = vadd.f32 %v686, %v687
  %v689 = vsel %vm641, %v413, 0.0
  %v690 = vadd.f32 %v688, %v689
  %v691 = vsel %vm641, %v415, 0.0
  %v692 = vadd.f32 %v690, %v691
  %v693 = vsel %vm641, %v418, 0.0
  %v694 = vadd.f32 %v692, %v693
  %v695 = vsel %vm641, %v420, 0.0
  %v696 = vadd.f32 %v694, %v695
  %v697 = vsel %vm641, %v423, 0.0
  %v698 = vadd.f32 %v696, %v697
  %v699 = vsel %vm641, %v425, 0.0
  %v700 = vadd.f32 %v698, %v699
  %v701 = vsel %vm641, %v428, 0.0
  %v702 = vadd.f32 %v700, %v701
  %v703 = vsel %vm641, %v430, 0.0
  %v704 = vadd.f32 %v702, %v703
  %v705 = vsel %vm641, %v433, 0.0
  %v706 = vadd.f32 %v704, %v705
  %v707 = vsel %vm641, %v435, 0.0
  %v708 = vadd.f32 %v706, %v707
  %v709 = vsel %vm641, %v438, 0.0
  %v710 = vadd.f32 %v708, %v709
  %v711 = vsel %vm641, %v440, 0.0
  %v712 = vadd.f32 %v710, %v711
  %v713 = vsel %vm641, %v443, 0.0
  %v714 = vadd.f32 %v712, %v713
  %v715 = vsel %vm641, %v445, 0.0
  %v716 = vadd.f32 %v714, %v715
  %v717 = vsel %vm641, %v448, 0.0
  %v718 = vadd.f32 %v716, %v717
  %v719 = vsel %vm641, %v450, 0.0
  %v720 = vadd.f32 %v718, %v719
  %v721 = vsel %vm641, %v453, 0.0
  %v722 = vadd.f32 %v720, %v721
  %v723 = vsel %vm641, %v455, 0.0
  %v724 = vadd.f32 %v722, %v723
  %v725 = vsel %vm641, %v458, 0.0
  %v726 = vadd.f32 %v724, %v725
  %v727 = vsel %vm641, %v460, 0.0
  %v728 = vadd.f32 %v726, %v727
  %v729 = vsel %vm641, %v463, 0.0
  %v730 = vadd.f32 %v728, %v729
  %v731 = vsel %vm641, %v465, 0.0
  %v732 = vadd.f32 %v730, %v731
  %v733 = vsel %vm641, %v468, 0.0
  %v734 = vadd.f32 %v732, %v733
  %v735 = vsel %vm641, %v470, 0.0
  %v736 = vadd.f32 %v734, %v735
  %v737 = vsel %vm641, %v473, 0.0
  %v738 = vadd.f32 %v736, %v737
  %v739 = vsel %vm641, %v475, 0.0
  %v740 = vadd.f32 %v738, %v739
  %v741 = vsel %vm641, %v478, 0.0
  %v742 = vadd.f32 %v740, %v741
  %v743 = vsel %vm641, %v480, 0.0
  %v744 = vadd.f32 %v742, %v743
  %v745 = vsel %vm641, %v483, 0.0
  %v746 = vadd.f32 %v744, %v745
  %v747 = vsel %vm641, %v485, 0.0
  %v748 = vadd.f32 %v746, %v747
  %v749 = vsel %vm641, %v488, 0.0
  %v750 = vadd.f32 %v748, %v749
  %v751 = vsel %vm641, %v490, 0.0
  %v752 = vadd.f32 %v750, %v751
  %v753 = vsel %vm641, %v493, 0.0
  %v754 = vadd.f32 %v752, %v753
  %v755 = vsel %vm641, %v495, 0.0
  %v756 = vadd.f32 %v754, %v755
  %v757 = vsel %vm641, %v498, 0.0
  %v758 = vadd.f32 %v756, %v757
  %v759 = vsel %vm641, %v500, 0.0
  %v760 = vadd.f32 %v758, %v759
  %v761 = vsel %vm641, %v503, 0.0
  %v762 = vadd.f32 %v760, %v761
  %v763 = vsel %vm641, %v505, 0.0
  %v764 = vadd.f32 %v762, %v763
  %v765 = vsel %vm641, %v508, 0.0
  %v766 = vadd.f32 %v764, %v765
  %v767 = vsel %vm641, %v510, 0.0
  %v768 = vadd.f32 %v766, %v767
  %v769 = vrot.slane %v768, 4
  %v770 = vadd.f32 %v768, %v769
  %v771 = vrot.slane %v770, 2
  %v772 = vadd.f32 %v770, %v771
  %v773 = vrot.slane %v772, 1
  %v774 = vadd.f32 %v772, %v773
  %vm775 = vcmask 57344
  %776 = vst.msk [vmem:[%s3] sm:$0x1] %vm775, %v774
  %v777 = vmul.f32 %v353, %v353
  %v778 = vmul.f32 %v355, %v355
  %v779 = vmul.f32 %v358, %v358
  %v780 = vmul.f32 %v360, %v360
  %v781 = vmul.f32 %v363, %v363
  %v782 = vmul.f32 %v365, %v365
  %v783 = vmul.f32 %v368, %v368
  %v784 = vmul.f32 %v370, %v370
  %v785 = vmul.f32 %v373, %v373
  %v786 = vmul.f32 %v375, %v375
  %v787 = vmul.f32 %v378, %v378
  %v788 = vmul.f32 %v380, %v380
  %v789 = vmul.f32 %v383, %v383
  %v790 = vmul.f32 %v385, %v385
  %v791 = vmul.f32 %v388, %v388
  %v792 = vmul.f32 %v390, %v390
  %v793 = vmul.f32 %v393, %v393
  %v794 = vmul.f32 %v395, %v395
  %v795 = vmul.f32 %v398, %v398
  %v796 = vmul.f32 %v400, %v400
  %v797 = vmul.f32 %v403, %v403
  %v798 = vmul.f32 %v405, %v405
  %v799 = vmul.f32 %v408, %v408
  %v800 = vmul.f32 %v410, %v410
  %v801 = vmul.f32 %v413, %v413
  %v802 = vmul.f32 %v415, %v415
  %v803 = vmul.f32 %v418, %v418
  %v804 = vmul.f32 %v420, %v420
  %v805 = vmul.f32 %v423, %v423
  %v806 = vmul.f32 %v425, %v425
  %v807 = vmul.f32 %v428, %v428
  %v808 = vmul.f32 %v430, %v430
  %v809 = vmul.f32 %v433, %v433
  %v810 = vmul.f32 %v435, %v435
  %v811 = vmul.f32 %v438, %v438
  %v812 = vmul.f32 %v440, %v440
  %v813 = vmul.f32 %v443, %v443
  %v814 = vmul.f32 %v445, %v445
  %v815 = vmul.f32 %v448, %v448
  %v816 = vmul.f32 %v450, %v450
  %v817 = vmul.f32 %v453, %v453
  %v818 = vmul.f32 %v455, %v455
  %v819 = vmul.f32 %v458, %v458
  %v820 = vmul.f32 %v460, %v460
  %v821 = vmul.f32 %v463, %v463
  %v822 = vmul.f32 %v465, %v465
  %v823 = vmul.f32 %v468, %v468
  %v824 = vmul.f32 %v470, %v470
  %v825 = vmul.f32 %v473, %v473
  %v826 = vmul.f32 %v475, %v475
  %v827 = vmul.f32 %v478, %v478
  %v828 = vmul.f32 %v480, %v480
  %v829 = vmul.f32 %v483, %v483
  %v830 = vmul.f32 %v485, %v485
  %v831 = vmul.f32 %v488, %v488
  %v832 = vmul.f32 %v490, %v490
  %v833 = vmul.f32 %v493, %v493
  %v834 = vmul.f32 %v495, %v495
  %v835 = vmul.f32 %v498, %v498
  %v836 = vmul.f32 %v500, %v500
  %v837 = vmul.f32 %v503, %v503
  %v838 = vmul.f32 %v505, %v505
  %v839 = vmul.f32 %v508, %v508
  %v840 = vmul.f32 %v510, %v510
  %v841 = vsel %vm641, %v777, 0.0
  %v842 = vsel %vm641, %v778, 0.0
  %v843 = vadd.f32 %v841, %v842
  %v844 = vsel %vm641, %v779, 0.0
  %v845 = vadd.f32 %v843, %v844
  %v846 = vsel %vm641, %v780, 0.0
  %v847 = vadd.f32 %v845, %v846
  %v848 = vsel %vm641, %v781, 0.0
  %v849 = vadd.f32 %v847, %v848
  %v850 = vsel %vm641, %v782, 0.0
  %v851 = vadd.f32 %v849, %v850
  %v852 = vsel %vm641, %v783, 0.0
  %v853 = vadd.f32 %v851, %v852
  %v854 = vsel %vm641, %v784, 0.0
  %v855 = vadd.f32 %v853, %v854
  %v856 = vsel %vm641, %v785, 0.0
  %v857 = vadd.f32 %v855, %v856
  %v858 = vsel %vm641, %v786, 0.0
  %v859 = vadd.f32 %v857, %v858
  %v860 = vsel %vm641, %v787, 0.0
  %v861 = vadd.f32 %v859, %v860
  %v862 = vsel %vm641, %v788, 0.0
  %v863 = vadd.f32 %v861, %v862
  %v864 = vsel %vm641, %v789, 0.0
  %v865 = vadd.f32 %v863, %v864
  %v866 = vsel %vm641, %v790, 0.0
  %v867 = vadd.f32 %v865, %v866
  %v868 = vsel %vm641, %v791, 0.0
  %v869 = vadd.f32 %v867, %v868
  %v870 = vsel %vm641, %v792, 0.0
  %v871 = vadd.f32 %v869, %v870
  %v872 = vsel %vm641, %v793, 0.0
  %v873 = vadd.f32 %v871, %v872
  %v874 = vsel %vm641, %v794, 0.0
  %v875 = vadd.f32 %v873, %v874
  %v876 = vsel %vm641, %v795, 0.0
  %v877 = vadd.f32 %v875, %v876
  %v878 = vsel %vm641, %v796, 0.0
  %v879 = vadd.f32 %v877, %v878
  %v880 = vsel %vm641, %v797, 0.0
  %v881 = vadd.f32 %v879, %v880
  %v882 = vsel %vm641, %v798, 0.0
  %v883 = vadd.f32 %v881, %v882
  %v884 = vsel %vm641, %v799, 0.0
  %v885 = vadd.f32 %v883, %v884
  %v886 = vsel %vm641, %v800, 0.0
  %v887 = vadd.f32 %v885, %v886
  %v888 = vsel %vm641, %v801, 0.0
  %v889 = vadd.f32 %v887, %v888
  %v890 = vsel %vm641, %v802, 0.0
  %v891 = vadd.f32 %v889, %v890
  %v892 = vsel %vm641, %v803, 0.0
  %v893 = vadd.f32 %v891, %v892
  %v894 = vsel %vm641, %v804, 0.0
  %v895 = vadd.f32 %v893, %v894
  %v896 = vsel %vm641, %v805, 0.0
  %v897 = vadd.f32 %v895, %v896
  %v898 = vsel %vm641, %v806, 0.0
  %v899 = vadd.f32 %v897, %v898
  %v900 = vsel %vm641, %v807, 0.0
  %v901 = vadd.f32 %v899, %v900
  %v902 = vsel %vm641, %v808, 0.0
  %v903 = vadd.f32 %v901, %v902
  %v904 = vsel %vm641, %v809, 0.0
  %v905 = vadd.f32 %v903, %v904
  %v906 = vsel %vm641, %v810, 0.0
  %v907 = vadd.f32 %v905, %v906
  %v908 = vsel %vm641, %v811, 0.0
  %v909 = vadd.f32 %v907, %v908
  %v910 = vsel %vm641, %v812, 0.0
  %v911 = vadd.f32 %v909, %v910
  %v912 = vsel %vm641, %v813, 0.0
  %v913 = vadd.f32 %v911, %v912
  %v914 = vsel %vm641, %v814, 0.0
  %v915 = vadd.f32 %v913, %v914
  %v916 = vsel %vm641, %v815, 0.0
  %v917 = vadd.f32 %v915, %v916
  %v918 = vsel %vm641, %v816, 0.0
  %v919 = vadd.f32 %v917, %v918
  %v920 = vsel %vm641, %v817, 0.0
  %v921 = vadd.f32 %v919, %v920
  %v922 = vsel %vm641, %v818, 0.0
  %v923 = vadd.f32 %v921, %v922
  %v924 = vsel %vm641, %v819, 0.0
  %v925 = vadd.f32 %v923, %v924
  %v926 = vsel %vm641, %v820, 0.0
  %v927 = vadd.f32 %v925, %v926
  %v928 = vsel %vm641, %v821, 0.0
  %v929 = vadd.f32 %v927, %v928
  %v930 = vsel %vm641, %v822, 0.0
  %v931 = vadd.f32 %v929, %v930
  %v932 = vsel %vm641, %v823, 0.0
  %v933 = vadd.f32 %v931, %v932
  %v934 = vsel %vm641, %v824, 0.0
  %v935 = vadd.f32 %v933, %v934
  %v936 = vsel %vm641, %v825, 0.0
  %v937 = vadd.f32 %v935, %v936
  %v938 = vsel %vm641, %v826, 0.0
  %v939 = vadd.f32 %v937, %v938
  %v940 = vsel %vm641, %v827, 0.0
  %v941 = vadd.f32 %v939, %v940
  %v942 = vsel %vm641, %v828, 0.0
  %v943 = vadd.f32 %v941, %v942
  %v944 = vsel %vm641, %v829, 0.0
  %v945 = vadd.f32 %v943, %v944
  %v946 = vsel %vm641, %v830, 0.0
  %v947 = vadd.f32 %v945, %v946
  %v948 = vsel %vm641, %v831, 0.0
  %v949 = vadd.f32 %v947, %v948
  %v950 = vsel %vm641, %v832, 0.0
  %v951 = vadd.f32 %v949, %v950
  %v952 = vsel %vm641, %v833, 0.0
  %v953 = vadd.f32 %v951, %v952
  %v954 = vsel %vm641, %v834, 0.0
  %v955 = vadd.f32 %v953, %v954
  %v956 = vsel %vm641, %v835, 0.0
  %v957 = vadd.f32 %v955, %v956
  %v958 = vsel %vm641, %v836, 0.0
  %v959 = vadd.f32 %v957, %v958
  %v960 = vsel %vm641, %v837, 0.0
  %v961 = vadd.f32 %v959, %v960
  %v962 = vsel %vm641, %v838, 0.0
  %v963 = vadd.f32 %v961, %v962
  %v964 = vsel %vm641, %v839, 0.0
  %v965 = vadd.f32 %v963, %v964
  %v966 = vsel %vm641, %v840, 0.0
  %v967 = vadd.f32 %v965, %v966
  %v968 = vrot.slane %v967, 4
  %v969 = vadd.f32 %v967, %v968
  %v970 = vrot.slane %v969, 2
  %v971 = vadd.f32 %v969, %v970
  %v972 = vrot.slane %v971, 1
  %v973 = vadd.f32 %v971, %v972
  %974 = vst.msk [vmem:[%s3 + $0x1] sm:$0x1] %vm775, %v973
  // Predicated region
  $region10: #{bottleneck_forward.6} parent=0 // pred_check
    _
  $region11: #{bottleneck_forward.6} parent=0 // pred_check_branch
    %976 = sbr.rel (0) target = $region13
  $region12: #{bottleneck_forward.6} parent=0 // pred_region
    _
  $region13: #{bottleneck_forward.6} parent=0 // pred_fallthru
    _
  // Predicated region
  $region14: #{bottleneck_forward.6} parent=0 // pred_check
    _
  $region15: #{bottleneck_forward.6} parent=0 // pred_check_branch
    %978 = sbr.rel (0) target = $region17
  $region16: #{bottleneck_forward.6} parent=0 // pred_region
    _
  $region17: #{bottleneck_forward.6} parent=0 // pred_fallthru
    _
  // Predicated region
  $region18: #{bottleneck_forward.6} parent=0 // pred_check
    _
  $region19: #{bottleneck_forward.6} parent=0 // pred_check_branch
    %980 = sbr.rel (0) target = $region21
  $region20: #{bottleneck_forward.6} parent=0 // pred_region
    _
  $region21: #{bottleneck_forward.6} parent=0 // pred_fallthru
    _
  // Predicated region
  $region22: #{bottleneck_forward.6} parent=0 // pred_check
    _
  $region23: #{bottleneck_forward.6} parent=0 // pred_check_branch
    %982 = sbr.rel (0) target = $region25
  $region24: #{bottleneck_forward.6} parent=0 // pred_region
    _
  $region25: #{bottleneck_forward.6} parent=0 // pred_fallthru
    _

// kernel: bottleneck_forward.11
$region0: #{bottleneck_forward.11}
  #allocation0 [shape = 'u32[]', space=smem, size = 0x4, offset = 0x4, fixed_abs, tag = 'smem constant byte address 0x4 - core index']
  #allocation1 [shape = 'u32[72,128]{1,0:T(1,128)}', space=vmem, size = 0x9000, scoped, tag = 'internal scratch']
  %s0 = inlined_call_operand.vmem [shape: bf16[128,32], index: 0, kind: input, shape index: {}]
  %s1 = inlined_call_operand.vmem [shape: f32[1,32], index: 1, kind: input, shape index: {}]
  %s2 = inlined_call_operand.vmem [shape: f32[1,32], index: 2, kind: input, shape index: {}]
  %s3 = inlined_call_operand.vmem [shape: bf16[128,32], index: 3, kind: input, shape index: {}]
  %s4 = inlined_call_operand.vmem [shape: f32[1,32], index: 4, kind: input, shape index: {}]
  %s5 = inlined_call_operand.vmem [shape: f32[1,32], index: 5, kind: input, shape index: {}]
  %s6 = inlined_call_operand.hbm [shape: f32[128,32], index: 6, kind: output, shape index: {}]
  %s7 = sld [smem:[#allocation0]]
  $region34: #{bottleneck_forward.11} parent=0
    _
  %s9 = ssub.s32 1, %s7
  %s10 = scalar_select 0, %s9, %s7
  $region1: #{bottleneck_forward.11} parent=0
    #allocation2 [shape = 'u8[65536]{0}', space=vmem, size = 0x10000, scoped, tag = 'output window, operand 0, single buffered']
    #allocation3 [shape = 's32[1]{0}', space=sflag, size = 0x4, scoped, tag = 'scoped memory for bottleneck_forward.11']
    %11 = vsyncpa [#allocation3], 0
    // Predicated region
    $region2: #{bottleneck_forward.11} parent=1 // pred_check
      _
    $region3: #{bottleneck_forward.11} parent=1 // pred_check_branch
      %13 = sbr.rel (0) target = $region5
    $region4: #{bottleneck_forward.11} parent=1 // pred_region
      _
    $region5: #{bottleneck_forward.11} parent=1 // pred_fallthru
      _
    // Predicated region
    $region6: #{bottleneck_forward.11} parent=1 // pred_check
      _
    $region7: #{bottleneck_forward.11} parent=1 // pred_check_branch
      %15 = sbr.rel (0) target = $region9
    $region8: #{bottleneck_forward.11} parent=1 // pred_region
      _
    $region9: #{bottleneck_forward.11} parent=1 // pred_fallthru
      _
    // Predicated region
    $region10: #{bottleneck_forward.11} parent=1 // pred_check
      _
    $region11: #{bottleneck_forward.11} parent=1 // pred_check_branch
      %17 = sbr.rel (0) target = $region13
    $region12: #{bottleneck_forward.11} parent=1 // pred_region
      _
    $region13: #{bottleneck_forward.11} parent=1 // pred_fallthru
      _
    // Predicated region
    $region14: #{bottleneck_forward.11} parent=1 // pred_check
      _
    $region15: #{bottleneck_forward.11} parent=1 // pred_check_branch
      %19 = sbr.rel (0) target = $region17
    $region16: #{bottleneck_forward.11} parent=1 // pred_region
      _
    $region17: #{bottleneck_forward.11} parent=1 // pred_fallthru
      _
    // Predicated region
    $region18: #{bottleneck_forward.11} parent=1 // pred_check
      _
    $region19: #{bottleneck_forward.11} parent=1 // pred_check_branch
      %21 = sbr.rel (0) target = $region21
    $region20: #{bottleneck_forward.11} parent=1 // pred_region
      _
    $region21: #{bottleneck_forward.11} parent=1 // pred_fallthru
      _
    // Predicated region
    $region22: #{bottleneck_forward.11} parent=1 // pred_check
      _
    $region23: #{bottleneck_forward.11} parent=1 // pred_check_branch
      %23 = sbr.rel (0) target = $region25
    $region24: #{bottleneck_forward.11} parent=1 // pred_region
      _
    $region25: #{bottleneck_forward.11} parent=1 // pred_fallthru
      _
    %v24 = vld [vmem:[%s0] sm:$0xf]
    %v25 = vld [vmem:[%s0 + $0x4] sm:$0xf]
    %v26 = vld [vmem:[%s0 + $0x8] sm:$0xf]
    %v27 = vld [vmem:[%s0 + $0xc] sm:$0xf]
    %v28 = vld [vmem:[%s0 + $0x10] sm:$0xf]
    %v29 = vld [vmem:[%s0 + $0x14] sm:$0xf]
    %v30 = vld [vmem:[%s0 + $0x18] sm:$0xf]
    %v31 = vld [vmem:[%s0 + $0x1c] sm:$0xf]
    %v32 = vld [vmem:[%s0 + $0x20] sm:$0xf]
    %v33 = vld [vmem:[%s0 + $0x24] sm:$0xf]
    %v34 = vld [vmem:[%s0 + $0x28] sm:$0xf]
    %v35 = vld [vmem:[%s0 + $0x2c] sm:$0xf]
    %v36 = vld [vmem:[%s0 + $0x30] sm:$0xf]
    %v37 = vld [vmem:[%s0 + $0x34] sm:$0xf]
    %v38 = vld [vmem:[%s0 + $0x38] sm:$0xf]
    %v39 = vld [vmem:[%s0 + $0x3c] sm:$0xf]
    %v40 = vunpack.c.l.bf16 %v24
    %v41 = vunpack.c.l.bf16 %v25
    %v42 = vunpack.c.l.bf16 %v26
    %v43 = vunpack.c.l.bf16 %v27
    %v44 = vunpack.c.l.bf16 %v28
    %v45 = vunpack.c.l.bf16 %v29
    %v46 = vunpack.c.l.bf16 %v30
    %v47 = vunpack.c.l.bf16 %v31
    %v48 = vunpack.c.l.bf16 %v32
    %v49 = vunpack.c.l.bf16 %v33
    %v50 = vunpack.c.l.bf16 %v34
    %v51 = vunpack.c.l.bf16 %v35
    %v52 = vunpack.c.l.bf16 %v36
    %v53 = vunpack.c.l.bf16 %v37
    %v54 = vunpack.c.l.bf16 %v38
    %v55 = vunpack.c.l.bf16 %v39
    %v56 = vld [vmem:[%s1] sm:$0x1]
    %v58 = vperm.slane %v56, 0
    %v60 = vmul.f32 %v40, %v58
    %v61 = vmul.f32 %v41, %v58
    %v62 = vmul.f32 %v42, %v58
    %v63 = vmul.f32 %v43, %v58
    %v64 = vmul.f32 %v44, %v58
    %v65 = vmul.f32 %v45, %v58
    %v66 = vmul.f32 %v46, %v58
    %v67 = vmul.f32 %v47, %v58
    %v68 = vmul.f32 %v48, %v58
    %v69 = vmul.f32 %v49, %v58
    %v70 = vmul.f32 %v50, %v58
    %v71 = vmul.f32 %v51, %v58
    %v72 = vmul.f32 %v52, %v58
    %v73 = vmul.f32 %v53, %v58
    %v74 = vmul.f32 %v54, %v58
    %v75 = vmul.f32 %v55, %v58
    %v76 = vld [vmem:[%s2] sm:$0x1]
    %v78 = vperm.slane %v76, 0
    %v80 = vadd.f32 %v60, %v78
    %v81 = vadd.f32 %v61, %v78
    %v82 = vadd.f32 %v62, %v78
    %v83 = vadd.f32 %v63, %v78
    %v84 = vadd.f32 %v64, %v78
    %v85 = vadd.f32 %v65, %v78
    %v86 = vadd.f32 %v66, %v78
    %v87 = vadd.f32 %v67, %v78
    %v88 = vadd.f32 %v68, %v78
    %v89 = vadd.f32 %v69, %v78
    %v90 = vadd.f32 %v70, %v78
    %v91 = vadd.f32 %v71, %v78
    %v92 = vadd.f32 %v72, %v78
    %v93 = vadd.f32 %v73, %v78
    %v94 = vadd.f32 %v74, %v78
    %v95 = vadd.f32 %v75, %v78
    %v96 = vld [vmem:[%s3] sm:$0xf]
    %v97 = vld [vmem:[%s3 + $0x4] sm:$0xf]
    %v98 = vld [vmem:[%s3 + $0x8] sm:$0xf]
    %v99 = vld [vmem:[%s3 + $0xc] sm:$0xf]
    %v100 = vld [vmem:[%s3 + $0x10] sm:$0xf]
    %v101 = vld [vmem:[%s3 + $0x14] sm:$0xf]
    %v102 = vld [vmem:[%s3 + $0x18] sm:$0xf]
    %v103 = vld [vmem:[%s3 + $0x1c] sm:$0xf]
    %v104 = vld [vmem:[%s3 + $0x20] sm:$0xf]
    %v105 = vld [vmem:[%s3 + $0x24] sm:$0xf]
    %v106 = vld [vmem:[%s3 + $0x28] sm:$0xf]
    %v107 = vld [vmem:[%s3 + $0x2c] sm:$0xf]
    %v108 = vld [vmem:[%s3 + $0x30] sm:$0xf]
    %v109 = vld [vmem:[%s3 + $0x34] sm:$0xf]
    %v110 = vld [vmem:[%s3 + $0x38] sm:$0xf]
    %v111 = vld [vmem:[%s3 + $0x3c] sm:$0xf]
    %v112 = vunpack.c.l.bf16 %v96
    %v113 = vunpack.c.l.bf16 %v97
    %v114 = vunpack.c.l.bf16 %v98
    %v115 = vunpack.c.l.bf16 %v99
    %v116 = vunpack.c.l.bf16 %v100
    %v117 = vunpack.c.l.bf16 %v101
    %v118 = vunpack.c.l.bf16 %v102
    %v119 = vunpack.c.l.bf16 %v103
    %v120 = vunpack.c.l.bf16 %v104
    %v121 = vunpack.c.l.bf16 %v105
    %v122 = vunpack.c.l.bf16 %v106
    %v123 = vunpack.c.l.bf16 %v107
    %v124 = vunpack.c.l.bf16 %v108
    %v125 = vunpack.c.l.bf16 %v109
    %v126 = vunpack.c.l.bf16 %v110
    %v127 = vunpack.c.l.bf16 %v111
    %v128 = vld [vmem:[%s4] sm:$0x1]
    %v130 = vperm.slane %v128, 0
    %v132 = vmul.f32 %v112, %v130
    %v133 = vmul.f32 %v113, %v130
    %v134 = vmul.f32 %v114, %v130
    %v135 = vmul.f32 %v115, %v130
    %v136 = vmul.f32 %v116, %v130
    %v137 = vmul.f32 %v117, %v130
    %v138 = vmul.f32 %v118, %v130
    %v139 = vmul.f32 %v119, %v130
    %v140 = vmul.f32 %v120, %v130
    %v141 = vmul.f32 %v121, %v130
    %v142 = vmul.f32 %v122, %v130
    %v143 = vmul.f32 %v123, %v130
    %v144 = vmul.f32 %v124, %v130
    %v145 = vmul.f32 %v125, %v130
    %v146 = vmul.f32 %v126, %v130
    %v147 = vmul.f32 %v127, %v130
    %v148 = vld [vmem:[%s5] sm:$0x1]
    %v150 = vperm.slane %v148, 0
    %v152 = vadd.f32 %v132, %v150
    %v153 = vadd.f32 %v133, %v150
    %v154 = vadd.f32 %v134, %v150
    %v155 = vadd.f32 %v135, %v150
    %v156 = vadd.f32 %v136, %v150
    %v157 = vadd.f32 %v137, %v150
    %v158 = vadd.f32 %v138, %v150
    %v159 = vadd.f32 %v139, %v150
    %v160 = vadd.f32 %v140, %v150
    %v161 = vadd.f32 %v141, %v150
    %v162 = vadd.f32 %v142, %v150
    %v163 = vadd.f32 %v143, %v150
    %v164 = vadd.f32 %v144, %v150
    %v165 = vadd.f32 %v145, %v150
    %v166 = vadd.f32 %v146, %v150
    %v167 = vadd.f32 %v147, %v150
    %v168 = vadd.f32 %v80, %v152
    %v169 = vadd.f32 %v81, %v153
    %v170 = vadd.f32 %v82, %v154
    %v171 = vadd.f32 %v83, %v155
    %v172 = vadd.f32 %v84, %v156
    %v173 = vadd.f32 %v85, %v157
    %v174 = vadd.f32 %v86, %v158
    %v175 = vadd.f32 %v87, %v159
    %v176 = vadd.f32 %v88, %v160
    %v177 = vadd.f32 %v89, %v161
    %v178 = vadd.f32 %v90, %v162
    %v179 = vadd.f32 %v91, %v163
    %v180 = vadd.f32 %v92, %v164
    %v181 = vadd.f32 %v93, %v165
    %v182 = vadd.f32 %v94, %v166
    %v183 = vadd.f32 %v95, %v167
    %v184 = vmax.f32 %v168, 0.0
    %v185 = vmax.f32 %v169, 0.0
    %v186 = vmax.f32 %v170, 0.0
    %v187 = vmax.f32 %v171, 0.0
    %v188 = vmax.f32 %v172, 0.0
    %v189 = vmax.f32 %v173, 0.0
    %v190 = vmax.f32 %v174, 0.0
    %v191 = vmax.f32 %v175, 0.0
    %v192 = vmax.f32 %v176, 0.0
    %v193 = vmax.f32 %v177, 0.0
    %v194 = vmax.f32 %v178, 0.0
    %v195 = vmax.f32 %v179, 0.0
    %v196 = vmax.f32 %v180, 0.0
    %v197 = vmax.f32 %v181, 0.0
    %v198 = vmax.f32 %v182, 0.0
    %v199 = vmax.f32 %v183, 0.0
    %vm200 = vcmask 261120
    %201 = vst.msk [vmem:[#allocation2] sm:$0xff] %vm200, %v184
    %202 = vst.msk [vmem:[#allocation2 + $0x8] sm:$0xff] %vm200, %v185
    %203 = vst.msk [vmem:[#allocation2 + $0x10] sm:$0xff] %vm200, %v186
    %204 = vst.msk [vmem:[#allocation2 + $0x18] sm:$0xff] %vm200, %v187
    %205 = vst.msk [vmem:[#allocation2 + $0x20] sm:$0xff] %vm200, %v188
    %206 = vst.msk [vmem:[#allocation2 + $0x28] sm:$0xff] %vm200, %v189
    %207 = vst.msk [vmem:[#allocation2 + $0x30] sm:$0xff] %vm200, %v190
    %208 = vst.msk [vmem:[#allocation2 + $0x38] sm:$0xff] %vm200, %v191
    %209 = vst.msk [vmem:[#allocation2 + $0x40] sm:$0xff] %vm200, %v192
    %210 = vst.msk [vmem:[#allocation2 + $0x48] sm:$0xff] %vm200, %v193
    %211 = vst.msk [vmem:[#allocation2 + $0x50] sm:$0xff] %vm200, %v194
    %212 = vst.msk [vmem:[#allocation2 + $0x58] sm:$0xff] %vm200, %v195
    %213 = vst.msk [vmem:[#allocation2 + $0x60] sm:$0xff] %vm200, %v196
    %214 = vst.msk [vmem:[#allocation2 + $0x68] sm:$0xff] %vm200, %v197
    %215 = vst.msk [vmem:[#allocation2 + $0x70] sm:$0xff] %vm200, %v198
    %216 = vst.msk [vmem:[#allocation2 + $0x78] sm:$0xff] %vm200, %v199
    // Predicated region
    $region26: #{bottleneck_forward.11} parent=1 // pred_check
      _
    $region27: #{bottleneck_forward.11} parent=1 // pred_check_branch
      %218 = sbr.rel (0) target = $region29
    $region28: #{bottleneck_forward.11} parent=1 // pred_region
      %220 = vsyncadd [#allocation3], 0
      %s221 = sshll.u32 [#allocation2], 4
      %s222 = int_to_ptr.vmem [resolvable:$true] %s221
      %s223 = sshll.u32 %s6, 4
      %s224 = int_to_ptr.hbm [resolvable:$true] %s223
      %229 = dma.vmem_to_hbm [thread:$0]  %s222, 2048, %s224, [#allocation3], 128, 128, 8
    $region29: #{bottleneck_forward.11} parent=1 // pred_fallthru
      _
    // Predicated region
    $region30: #{bottleneck_forward.11} parent=1 // pred_check
      _
    $region31: #{bottleneck_forward.11} parent=1 // pred_check_branch
      %231 = sbr.rel (0) target = $region33
    $region32: #{bottleneck_forward.11} parent=1 // pred_region
      %233 = dma.done [#allocation3], 2048
    $region33: #{bottleneck_forward.11} parent=1 // pred_fallthru
      _
    %234 = vsyncpa [#allocation3], 1

// kernel: bottleneck_forward.9
$region0: #{bottleneck_forward.9}
  #allocation0 [shape = 'u32[]', space=smem, size = 0x4, offset = 0x4, fixed_abs, tag = 'smem constant byte address 0x4 - core index']
  #allocation1 [shape = 'u32[72,128]{1,0:T(1,128)}', space=vmem, size = 0x9000, scoped, tag = 'internal scratch']
  %s0 = inlined_call_operand.vmem [shape: bf16[128,8], index: 0, kind: input, shape index: {}]
  %s1 = inlined_call_operand.vmem [shape: f32[1,8], index: 1, kind: input, shape index: {}]
  %s2 = inlined_call_operand.vmem [shape: f32[1,8], index: 2, kind: input, shape index: {}]
  %s3 = inlined_call_operand.vmem [shape: bf16[8,32], index: 3, kind: input, shape index: {}]
  %s4 = inlined_call_operand.vmem [shape: bf16[128,32], index: 4, kind: output, shape index: {0}]
  %s5 = inlined_call_operand.vmem [shape: f32[1,2,32], index: 5, kind: output, shape index: {1}]
  %6 = xla_tuple %s4, %s5
  %s7 = sld [smem:[#allocation0]]
  $region34: #{bottleneck_forward.9} parent=0
    _
  %s9 = ssub.s32 1, %s7
  %s10 = scalar_select 0, %s9, %s7
  // Predicated region
  $region2: #{bottleneck_forward.9} parent=0 // pred_check
    _
  $region3: #{bottleneck_forward.9} parent=0 // pred_check_branch
    %12 = sbr.rel (0) target = $region5
  $region4: #{bottleneck_forward.9} parent=0 // pred_region
    _
  $region5: #{bottleneck_forward.9} parent=0 // pred_fallthru
    _
  // Predicated region
  $region6: #{bottleneck_forward.9} parent=0 // pred_check
    _
  $region7: #{bottleneck_forward.9} parent=0 // pred_check_branch
    %14 = sbr.rel (0) target = $region9
  $region8: #{bottleneck_forward.9} parent=0 // pred_region
    _
  $region9: #{bottleneck_forward.9} parent=0 // pred_fallthru
    _
  // Predicated region
  $region10: #{bottleneck_forward.9} parent=0 // pred_check
    _
  $region11: #{bottleneck_forward.9} parent=0 // pred_check_branch
    %16 = sbr.rel (0) target = $region13
  $region12: #{bottleneck_forward.9} parent=0 // pred_region
    _
  $region13: #{bottleneck_forward.9} parent=0 // pred_fallthru
    _
  // Predicated region
  $region14: #{bottleneck_forward.9} parent=0 // pred_check
    _
  $region15: #{bottleneck_forward.9} parent=0 // pred_check_branch
    %18 = sbr.rel (0) target = $region17
  $region16: #{bottleneck_forward.9} parent=0 // pred_region
    _
  $region17: #{bottleneck_forward.9} parent=0 // pred_fallthru
    _
  %v20 = vld [vmem:[%s0] sm:$0xf]
  %v21 = vld [vmem:[%s0 + $0x4] sm:$0xf]
  %v22 = vld [vmem:[%s0 + $0x8] sm:$0xf]
  %v23 = vld [vmem:[%s0 + $0xc] sm:$0xf]
  %v24 = vld [vmem:[%s0 + $0x10] sm:$0xf]
  %v25 = vld [vmem:[%s0 + $0x14] sm:$0xf]
  %v26 = vld [vmem:[%s0 + $0x18] sm:$0xf]
  %v27 = vld [vmem:[%s0 + $0x1c] sm:$0xf]
  %v28 = vld [vmem:[%s0 + $0x20] sm:$0xf]
  %v29 = vld [vmem:[%s0 + $0x24] sm:$0xf]
  %v30 = vld [vmem:[%s0 + $0x28] sm:$0xf]
  %v31 = vld [vmem:[%s0 + $0x2c] sm:$0xf]
  %v32 = vld [vmem:[%s0 + $0x30] sm:$0xf]
  %v33 = vld [vmem:[%s0 + $0x34] sm:$0xf]
  %v34 = vld [vmem:[%s0 + $0x38] sm:$0xf]
  %v35 = vld [vmem:[%s0 + $0x3c] sm:$0xf]
  %v36 = vunpack.c.l.bf16 %v20
  %v37 = vunpack.c.l.bf16 %v21
  %v38 = vunpack.c.l.bf16 %v22
  %v39 = vunpack.c.l.bf16 %v23
  %v40 = vunpack.c.l.bf16 %v24
  %v41 = vunpack.c.l.bf16 %v25
  %v42 = vunpack.c.l.bf16 %v26
  %v43 = vunpack.c.l.bf16 %v27
  %v44 = vunpack.c.l.bf16 %v28
  %v45 = vunpack.c.l.bf16 %v29
  %v46 = vunpack.c.l.bf16 %v30
  %v47 = vunpack.c.l.bf16 %v31
  %v48 = vunpack.c.l.bf16 %v32
  %v49 = vunpack.c.l.bf16 %v33
  %v50 = vunpack.c.l.bf16 %v34
  %v51 = vunpack.c.l.bf16 %v35
  %v52 = vld [vmem:[%s1] sm:$0x1]
  %v54 = vperm.slane %v52, 0
  %v56 = vmul.f32 %v36, %v54
  %v57 = vmul.f32 %v37, %v54
  %v58 = vmul.f32 %v38, %v54
  %v59 = vmul.f32 %v39, %v54
  %v60 = vmul.f32 %v40, %v54
  %v61 = vmul.f32 %v41, %v54
  %v62 = vmul.f32 %v42, %v54
  %v63 = vmul.f32 %v43, %v54
  %v64 = vmul.f32 %v44, %v54
  %v65 = vmul.f32 %v45, %v54
  %v66 = vmul.f32 %v46, %v54
  %v67 = vmul.f32 %v47, %v54
  %v68 = vmul.f32 %v48, %v54
  %v69 = vmul.f32 %v49, %v54
  %v70 = vmul.f32 %v50, %v54
  %v71 = vmul.f32 %v51, %v54
  %v72 = vld [vmem:[%s2] sm:$0x1]
  %v74 = vperm.slane %v72, 0
  %v76 = vadd.f32 %v56, %v74
  %v77 = vadd.f32 %v57, %v74
  %v78 = vadd.f32 %v58, %v74
  %v79 = vadd.f32 %v59, %v74
  %v80 = vadd.f32 %v60, %v74
  %v81 = vadd.f32 %v61, %v74
  %v82 = vadd.f32 %v62, %v74
  %v83 = vadd.f32 %v63, %v74
  %v84 = vadd.f32 %v64, %v74
  %v85 = vadd.f32 %v65, %v74
  %v86 = vadd.f32 %v66, %v74
  %v87 = vadd.f32 %v67, %v74
  %v88 = vadd.f32 %v68, %v74
  %v89 = vadd.f32 %v69, %v74
  %v90 = vadd.f32 %v70, %v74
  %v91 = vadd.f32 %v71, %v74
  %v92 = vmax.f32 %v76, 0.0
  %v93 = vmax.f32 %v77, 0.0
  %v94 = vmax.f32 %v78, 0.0
  %v95 = vmax.f32 %v79, 0.0
  %v96 = vmax.f32 %v80, 0.0
  %v97 = vmax.f32 %v81, 0.0
  %v98 = vmax.f32 %v82, 0.0
  %v99 = vmax.f32 %v83, 0.0
  %v100 = vmax.f32 %v84, 0.0
  %v101 = vmax.f32 %v85, 0.0
  %v102 = vmax.f32 %v86, 0.0
  %v103 = vmax.f32 %v87, 0.0
  %v104 = vmax.f32 %v88, 0.0
  %v105 = vmax.f32 %v89, 0.0
  %v106 = vmax.f32 %v90, 0.0
  %v107 = vmax.f32 %v91, 0.0
  %v108 = vpack.c.bf16 %v93, %v92
  %v109 = vpack.c.bf16 %v95, %v94
  %v110 = vpack.c.bf16 %v97, %v96
  %v111 = vpack.c.bf16 %v99, %v98
  %v112 = vpack.c.bf16 %v101, %v100
  %v113 = vpack.c.bf16 %v103, %v102
  %v114 = vpack.c.bf16 %v105, %v104
  %v115 = vpack.c.bf16 %v107, %v106
  %v116 = vld [vmem:[%s3] sm:$0xf]
  %vm117 = vcmask 64512
  %v119 = vsel %vm117, %v108, 0
  %v122 = vsel %vm117, %v109, 0
  %v125 = vsel %vm117, %v110, 0
  %v128 = vsel %vm117, %v111, 0
  %v131 = vsel %vm117, %v112, 0
  %v134 = vsel %vm117, %v113, 0
  %v137 = vsel %vm117, %v114, 0
  %v140 = vsel %vm117, %v115, 0
  %vm142 = vcmask 1043456
  %v144 = vsel %vm142, %v116, 0
  %146 = vmatpush.bf16.msra.mxu0 0
  %147 = vmatpush.bf16.msra.mxu0 0
  %148 = vmatpush.bf16.msra.mxu0 0
  %149 = vmatpush.bf16.msra.mxu0 0
  %150 = vmatpush.bf16.msra.mxu0 0
  %151 = vmatpush.bf16.msra.mxu0 0
  %152 = vmatpush.bf16.msra.mxu0 0
  %153 = vmatpush.bf16.msra.mxu0 %v144
  %154 = vmatmul.bf16.gmra.mxu0 %v119
  %v155 = vpop.f32.mrf.mxu0
  %v156 = vadd.f32 0.0, %v155
  %v157 = vpop.f32.mrf.mxu0
  %v158 = vadd.f32 0.0, %v157
  %159 = vmatmul.bf16.gmra.mxu0 %v122
  %v160 = vpop.f32.mrf.mxu0
  %v161 = vadd.f32 0.0, %v160
  %v162 = vpop.f32.mrf.mxu0
  %v163 = vadd.f32 0.0, %v162
  %164 = vmatmul.bf16.gmra.mxu0 %v125
  %v165 = vpop.f32.mrf.mxu0
  %v166 = vadd.f32 0.0, %v165
  %v167 = vpop.f32.mrf.mxu0
  %v168 = vadd.f32 0.0, %v167
  %169 = vmatmul.bf16.gmra.mxu0 %v128
  %v170 = vpop.f32.mrf.mxu0
  %v171 = vadd.f32 0.0, %v170
  %v172 = vpop.f32.mrf.mxu0
  %v173 = vadd.f32 0.0, %v172
  %174 = vmatmul.bf16.gmra.mxu0 %v131
  %v175 = vpop.f32.mrf.mxu0
  %v176 = vadd.f32 0.0, %v175
  %v177 = vpop.f32.mrf.mxu0
  %v178 = vadd.f32 0.0, %v177
  %179 = vmatmul.bf16.gmra.mxu0 %v134
  %v180 = vpop.f32.mrf.mxu0
  %v181 = vadd.f32 0.0, %v180
  %v182 = vpop.f32.mrf.mxu0
  %v183 = vadd.f32 0.0, %v182
  %184 = vmatmul.bf16.gmra.mxu0 %v137
  %v185 = vpop.f32.mrf.mxu0
  %v186 = vadd.f32 0.0, %v185
  %v187 = vpop.f32.mrf.mxu0
  %v188 = vadd.f32 0.0, %v187
  %189 = vmatmul.bf16.gmra.mxu0 %v140
  %v190 = vpop.f32.mrf.mxu0
  %v191 = vadd.f32 0.0, %v190
  %v192 = vpop.f32.mrf.mxu0
  %v193 = vadd.f32 0.0, %v192
  %194 = vdwg.mxu0
  %v195 = vpack.c.bf16 %v156, %v156
  %v196 = vpack.c.bf16 %v158, %v158
  %v197 = vpack.c.bf16 %v161, %v161
  %v198 = vpack.c.bf16 %v163, %v163
  %v199 = vpack.c.bf16 %v166, %v166
  %v200 = vpack.c.bf16 %v168, %v168
  %v201 = vpack.c.bf16 %v171, %v171
  %v202 = vpack.c.bf16 %v173, %v173
  %v203 = vpack.c.bf16 %v176, %v176
  %v204 = vpack.c.bf16 %v178, %v178
  %v205 = vpack.c.bf16 %v181, %v181
  %v206 = vpack.c.bf16 %v183, %v183
  %v207 = vpack.c.bf16 %v186, %v186
  %v208 = vpack.c.bf16 %v188, %v188
  %v209 = vpack.c.bf16 %v191, %v191
  %v210 = vpack.c.bf16 %v193, %v193
  %vm211 = vcmask 257024
  %212 = vst.msk [vmem:[%s4] sm:$0xf] %vm211, %v195
  %213 = vst.msk [vmem:[%s4 + $0x4] sm:$0xf] %vm211, %v196
  %214 = vst.msk [vmem:[%s4 + $0x8] sm:$0xf] %vm211, %v197
  %215 = vst.msk [vmem:[%s4 + $0xc] sm:$0xf] %vm211, %v198
  %216 = vst.msk [vmem:[%s4 + $0x10] sm:$0xf] %vm211, %v199
  %217 = vst.msk [vmem:[%s4 + $0x14] sm:$0xf] %vm211, %v200
  %218 = vst.msk [vmem:[%s4 + $0x18] sm:$0xf] %vm211, %v201
  %219 = vst.msk [vmem:[%s4 + $0x1c] sm:$0xf] %vm211, %v202
  %220 = vst.msk [vmem:[%s4 + $0x20] sm:$0xf] %vm211, %v203
  %221 = vst.msk [vmem:[%s4 + $0x24] sm:$0xf] %vm211, %v204
  %222 = vst.msk [vmem:[%s4 + $0x28] sm:$0xf] %vm211, %v205
  %223 = vst.msk [vmem:[%s4 + $0x2c] sm:$0xf] %vm211, %v206
  %224 = vst.msk [vmem:[%s4 + $0x30] sm:$0xf] %vm211, %v207
  %225 = vst.msk [vmem:[%s4 + $0x34] sm:$0xf] %vm211, %v208
  %226 = vst.msk [vmem:[%s4 + $0x38] sm:$0xf] %vm211, %v209
  %227 = vst.msk [vmem:[%s4 + $0x3c] sm:$0xf] %vm211, %v210
  %vm228 = vcmask 261120
  %v229 = vsel %vm228, %v156, 0.0
  %v230 = vsel %vm228, %v158, 0.0
  %v231 = vadd.f32 %v229, %v230
  %v232 = vsel %vm228, %v161, 0.0
  %v233 = vadd.f32 %v231, %v232
  %v234 = vsel %vm228, %v163, 0.0
  %v235 = vadd.f32 %v233, %v234
  %v236 = vsel %vm228, %v166, 0.0
  %v237 = vadd.f32 %v235, %v236
  %v238 = vsel %vm228, %v168, 0.0
  %v239 = vadd.f32 %v237, %v238
  %v240 = vsel %vm228, %v171, 0.0
  %v241 = vadd.f32 %v239, %v240
  %v242 = vsel %vm228, %v173, 0.0
  %v243 = vadd.f32 %v241, %v242
  %v244 = vsel %vm228, %v176, 0.0
  %v245 = vadd.f32 %v243, %v244
  %v246 = vsel %vm228, %v178, 0.0
  %v247 = vadd.f32 %v245, %v246
  %v248 = vsel %vm228, %v181, 0.0
  %v249 = vadd.f32 %v247, %v248
  %v250 = vsel %vm228, %v183, 0.0
  %v251 = vadd.f32 %v249, %v250
  %v252 = vsel %vm228, %v186, 0.0
  %v253 = vadd.f32 %v251, %v252
  %v254 = vsel %vm228, %v188, 0.0
  %v255 = vadd.f32 %v253, %v254
  %v256 = vsel %vm228, %v191, 0.0
  %v257 = vadd.f32 %v255, %v256
  %v258 = vsel %vm228, %v193, 0.0
  %v259 = vadd.f32 %v257, %v258
  %v260 = vrot.slane %v259, 4
  %v261 = vadd.f32 %v259, %v260
  %v262 = vrot.slane %v261, 2
  %v263 = vadd.f32 %v261, %v262
  %v264 = vrot.slane %v263, 1
  %v265 = vadd.f32 %v263, %v264
  %vm266 = vcmask 253952
  %267 = vst.msk [vmem:[%s5] sm:$0x1] %vm266, %v265
  %v268 = vmul.f32 %v156, %v156
  %v269 = vmul.f32 %v158, %v158
  %v270 = vmul.f32 %v161, %v161
  %v271 = vmul.f32 %v163, %v163
  %v272 = vmul.f32 %v166, %v166
  %v273 = vmul.f32 %v168, %v168
  %v274 = vmul.f32 %v171, %v171
  %v275 = vmul.f32 %v173, %v173
  %v276 = vmul.f32 %v176, %v176
  %v277 = vmul.f32 %v178, %v178
  %v278 = vmul.f32 %v181, %v181
  %v279 = vmul.f32 %v183, %v183
  %v280 = vmul.f32 %v186, %v186
  %v281 = vmul.f32 %v188, %v188
  %v282 = vmul.f32 %v191, %v191
  %v283 = vmul.f32 %v193, %v193
  %v284 = vsel %vm228, %v268, 0.0
  %v285 = vsel %vm228, %v269, 0.0
  %v286 = vadd.f32 %v284, %v285
  %v287 = vsel %vm228, %v270, 0.0
  %v288 = vadd.f32 %v286, %v287
  %v289 = vsel %vm228, %v271, 0.0
  %v290 = vadd.f32 %v288, %v289
  %v291 = vsel %vm228, %v272, 0.0
  %v292 = vadd.f32 %v290, %v291
  %v293 = vsel %vm228, %v273, 0.0
  %v294 = vadd.f32 %v292, %v293
  %v295 = vsel %vm228, %v274, 0.0
  %v296 = vadd.f32 %v294, %v295
  %v297 = vsel %vm228, %v275, 0.0
  %v298 = vadd.f32 %v296, %v297
  %v299 = vsel %vm228, %v276, 0.0
  %v300 = vadd.f32 %v298, %v299
  %v301 = vsel %vm228, %v277, 0.0
  %v302 = vadd.f32 %v300, %v301
  %v303 = vsel %vm228, %v278, 0.0
  %v304 = vadd.f32 %v302, %v303
  %v305 = vsel %vm228, %v279, 0.0
  %v306 = vadd.f32 %v304, %v305
  %v307 = vsel %vm228, %v280, 0.0
  %v308 = vadd.f32 %v306, %v307
  %v309 = vsel %vm228, %v281, 0.0
  %v310 = vadd.f32 %v308, %v309
  %v311 = vsel %vm228, %v282, 0.0
  %v312 = vadd.f32 %v310, %v311
  %v313 = vsel %vm228, %v283, 0.0
  %v314 = vadd.f32 %v312, %v313
  %v315 = vrot.slane %v314, 4
  %v316 = vadd.f32 %v314, %v315
  %v317 = vrot.slane %v316, 2
  %v318 = vadd.f32 %v316, %v317
  %v319 = vrot.slane %v318, 1
  %v320 = vadd.f32 %v318, %v319
  %321 = vst.msk [vmem:[%s5 + $0x1] sm:$0x1] %vm266, %v320
  // Predicated region
  $region18: #{bottleneck_forward.9} parent=0 // pred_check
    _
  $region19: #{bottleneck_forward.9} parent=0 // pred_check_branch
    %323 = sbr.rel (0) target = $region21
  $region20: #{bottleneck_forward.9} parent=0 // pred_region
    _
  $region21: #{bottleneck_forward.9} parent=0 // pred_fallthru
    _
  // Predicated region
  $region22: #{bottleneck_forward.9} parent=0 // pred_check
    _
  $region23: #{bottleneck_forward.9} parent=0 // pred_check_branch
    %325 = sbr.rel (0) target = $region25
  $region24: #{bottleneck_forward.9} parent=0 // pred_region
    _
  $region25: #{bottleneck_forward.9} parent=0 // pred_fallthru
    _
  // Predicated region
  $region26: #{bottleneck_forward.9} parent=0 // pred_check
    _
  $region27: #{bottleneck_forward.9} parent=0 // pred_check_branch
    %327 = sbr.rel (0) target = $region29
  $region28: #{bottleneck_forward.9} parent=0 // pred_region
    _
  $region29: #{bottleneck_forward.9} parent=0 // pred_fallthru
    _
  // Predicated region
  $region30: #{bottleneck_forward.9} parent=0 // pred_check
    _
  $region31: #{bottleneck_forward.9} parent=0 // pred_check_branch
    %329 = sbr.rel (0) target = $region33
  $region32: #{bottleneck_forward.9} parent=0 // pred_region
    _
  $region33: #{bottleneck_forward.9} parent=0 // pred_fallthru
    _

// kernel: bottleneck_forward.8
$region0: #{bottleneck_forward.8}
  #allocation0 [shape = 'u32[]', space=smem, size = 0x4, offset = 0x4, fixed_abs, tag = 'smem constant byte address 0x4 - core index']
  #allocation1 [shape = 'u32[72,128]{1,0:T(1,128)}', space=vmem, size = 0x9000, scoped, tag = 'internal scratch']
  %s0 = inlined_call_operand.vmem [shape: bf16[2,9,9,16], index: 0, kind: input, shape index: {}]
  %s1 = inlined_call_operand.vmem [shape: bf16[2,9,9,16], index: 1, kind: input, shape index: {}]
  %s2 = inlined_call_operand.vmem [shape: bf16[3,24,8], index: 2, kind: input, shape index: {}]
  %s3 = inlined_call_operand.vmem [shape: bf16[2,8,8,8], index: 3, kind: output, shape index: {0}]
  %s4 = inlined_call_operand.vmem [shape: f32[2,1,2,8], index: 4, kind: output, shape index: {1}]
  %5 = xla_tuple %s3, %s4
  %s6 = sld [smem:[#allocation0]]
  $region53: #{bottleneck_forward.8} parent=0
    _
  %s8 = ssub.s32 1, %s6
  %s9 = scalar_select 0, %s8, %s6
  loop: start=0, step=1, limit=4
  $region2: #{bottleneck_forward.8} parent=0 // loop_pre_header
    _
  $region3: #{bottleneck_forward.8} parent=0 // loop_header
    %s11 = sphi 0, %s15
    %p12 = scmp.ge.s32.totalorder %s11, 4
    %s18 = sphi 0, %s30
    %s19 = sphi 0, %s26
    %s20 = sphi 0, %s18
    %s21 = sphi 0, %s19
    %s22 = sphi 0, %s20
    %s23 = sphi 0, %s21
    %s33 = sphi 0, %s35
    %s36 = sphi 0, %s33
    %s37 = sphi 0, %s36
    %s53 = sphi 0, %s37
    %s59 = sphi 0, %s61
    %s62 = sphi 0, %s59
    %s63 = sphi 0, %s62
    %s79 = sphi 0, %s63
    %s83 = sphi 0, %s83
    %s85 = sphi 0, %s83
    %s86 = sphi 0, %s85
    %s100 = sphi 0, %s86
    %s108 = sphi 0, %s110
    %s111 = sphi 0, %s108
    %s112 = sphi 0, %s111
    %s128 = sphi 0, %s112
    %s136 = sphi 0, %s138
    %s139 = sphi 0, %s136
    %s140 = sphi 0, %s139
    %s156 = sphi 0, %s140
  $region4: #{bottleneck_forward.8} parent=0 // loop_header_branch
    %14 = sbr.rel (%p12) target = $region8
  $region5: #{bottleneck_forward.8} parent=0 // loop_body
    %s16 = ssub.s32 %s11, 1
    %s17 = ssub.s32 %s11, 2
    %s24 = sadd.s32 1, %s19
    %p25 = scmp.ge.s32.totalorder %s24, 1
    %s26 = scalar_select %p25, 0, %s24
    %s27 = sadd.s32 1, %s18
    %s28 = scalar_select %p25, %s27, %s18
    %p29 = scmp.ge.s32.totalorder %s28, 2
    %s30 = scalar_select %p29, 0, %s28
    %s31 = ssub.s32 %s18, %s30
    %p32 = scmp.eq.s32.totalorder %s31, 0
    %s34 = sadd.s32 %s33, 1
    %s35 = scalar_select %p32, %s33, %s34
    %p38 = pneg %p32
    %p39 = scmp.eq.s32.totalorder %s11, 1
    %p40 = por %p38, %p39
    %p41 = scmp.ne.s32.totalorder %s33, %s36
    %p42 = scmp.eq.s32.totalorder %s11, 0
    %p43 = por %p41, %p42
    %p44 = scmp.ne.s32.totalorder %s33, %s36
    %p45 = scmp.eq.s32.totalorder %s16, 1
    %p46 = por %p44, %p45
    %p47 = scmp.ne.s32.totalorder %s36, %s37
    %p48 = scmp.eq.s32.totalorder %s16, 0
    %p49 = por %p47, %p48
    %p50 = scmp.ne.s32.totalorder %s36, %s37
    %p51 = scmp.eq.s32.totalorder %s17, 1
    %p52 = por %p50, %p51
    %p54 = scmp.ne.s32.totalorder %s37, %s53
    %p55 = scmp.eq.s32.totalorder %s17, 0
    %p56 = por %p54, %p55
    %s57 = ssub.s32 %s18, %s30
    %p58 = scmp.eq.s32.totalorder %s57, 0
    %s60 = sadd.s32 %s59, 1
    %s61 = scalar_select %p58, %s59, %s60
    %p64 = pneg %p58
    %p65 = scmp.eq.s32.totalorder %s11, 1
    %p66 = por %p64, %p65
    %p67 = scmp.ne.s32.totalorder %s59, %s62
    %p68 = scmp.eq.s32.totalorder %s11, 0
    %p69 = por %p67, %p68
    %p70 = scmp.ne.s32.totalorder %s59, %s62
    %p71 = scmp.eq.s32.totalorder %s16, 1
    %p72 = por %p70, %p71
    %p73 = scmp.ne.s32.totalorder %s62, %s63
    %p74 = scmp.eq.s32.totalorder %s16, 0
    %p75 = por %p73, %p74
    %p76 = scmp.ne.s32.totalorder %s62, %s63
    %p77 = scmp.eq.s32.totalorder %s17, 1
    %p78 = por %p76, %p77
    %p80 = scmp.ne.s32.totalorder %s63, %s79
    %p81 = scmp.eq.s32.totalorder %s17, 0
    %p82 = por %p80, %p81
    %s84 = sadd.s32 %s83, 1
    %p87 = scmp.eq.s32.totalorder %s11, 1
    %p88 = scmp.ne.s32.totalorder %s83, %s85
    %p89 = scmp.eq.s32.totalorder %s11, 0
    %p90 = por %p88, %p89
    %p91 = scmp.ne.s32.totalorder %s83, %s85
    %p92 = scmp.eq.s32.totalorder %s16, 1
    %p93 = por %p91, %p92
    %p94 = scmp.ne.s32.totalorder %s85, %s86
    %p95 = scmp.eq.s32.totalorder %s16, 0
    %p96 = por %p94, %p95
    %p97 = scmp.ne.s32.totalorder %s85, %s86
    %p98 = scmp.eq.s32.totalorder %s17, 1
    %p99 = por %p97, %p98
    %p101 = scmp.ne.s32.totalorder %s86, %s100
    %p102 = scmp.eq.s32.totalorder %s17, 0
    %p103 = por %p101, %p102
    %s104 = ssub.s32 %s18, %s30
    %s105 = ssub.s32 %s19, %s26
    %s106 = sor.u32 %s104, %s105
    %p107 = scmp.eq.s32.totalorder %s106, 0
    %s109 = sadd.s32 %s108, 1
    %s110 = scalar_select %p107, %s108, %s109
    %p113 = pneg %p107
    %p114 = scmp.eq.s32.totalorder %s11, 1
    %p115 = por %p113, %p114
    %p116 = scmp.ne.s32.totalorder %s108, %s111
    %p117 = scmp.eq.s32.totalorder %s11, 0
    %p118 = por %p116, %p117
    %p119 = scmp.ne.s32.totalorder %s108, %s111
    %p120 = scmp.eq.s32.totalorder %s16, 1
    %p121 = por %p119, %p120
    %p122 = scmp.ne.s32.totalorder %s111, %s112
    %p123 = scmp.eq.s32.totalorder %s16, 0
    %p124 = por %p122, %p123
    %p125 = scmp.ne.s32.totalorder %s111, %s112
    %p126 = scmp.eq.s32.totalorder %s17, 1
    %p127 = por %p125, %p126
    %p129 = scmp.ne.s32.totalorder %s112, %s128
    %p130 = scmp.eq.s32.totalorder %s17, 0
    %p131 = por %p129, %p130
    %s132 = ssub.s32 %s18, %s30
    %s133 = ssub.s32 %s19, %s26
    %s134 = sor.u32 %s132, %s133
    %p135 = scmp.eq.s32.totalorder %s134, 0
    %s137 = sadd.s32 %s136, 1
    %s138 = scalar_select %p135, %s136, %s137
    %p141 = pneg %p135
    %p142 = scmp.eq.s32.totalorder %s11, 1
    %p143 = por %p141, %p142
    %p144 = scmp.ne.s32.totalorder %s136, %s139
    %p145 = scmp.eq.s32.totalorder %s11, 0
    %p146 = por %p144, %p145
    %p147 = scmp.ne.s32.totalorder %s136, %s139
    %p148 = scmp.eq.s32.totalorder %s16, 1
    %p149 = por %p147, %p148
    %p150 = scmp.ne.s32.totalorder %s139, %s140
    %p151 = scmp.eq.s32.totalorder %s16, 0
    %p152 = por %p150, %p151
    %p153 = scmp.ne.s32.totalorder %s139, %s140
    %p154 = scmp.eq.s32.totalorder %s17, 1
    %p155 = por %p153, %p154
    %p157 = scmp.ne.s32.totalorder %s140, %s156
    %p158 = scmp.eq.s32.totalorder %s17, 0
    %p159 = por %p157, %p158
    %p160 = scmp.le.s32.totalorder 1, %s11
    %p161 = scmp.lt.s32.totalorder %s11, 3
    %p162 = pnand %p160, %p161
    %p163 = pneg %p162
    // Predicated region
    $region9: #{bottleneck_forward.8} parent=5 // pred_check
      _
    $region10: #{bottleneck_forward.8} parent=5 // pred_check_branch
      %165 = sbr.rel (%p162) target = $region12
    $region11: #{bottleneck_forward.8} parent=5 // pred_region
      %s166 = ssub.s32 %s11, 1
      // Predicated region
      $region13: #{bottleneck_forward.8} parent=11 // pred_check
        %p167 = pneg %p96
      $region14: #{bottleneck_forward.8} parent=11 // pred_check_branch
        %169 = sbr.rel (%p167) target = $region16
      $region15: #{bottleneck_forward.8} parent=11 // pred_region
        _
      $region16: #{bottleneck_forward.8} parent=11 // pred_fallthru
        _
    $region12: #{bottleneck_forward.8} parent=5 // pred_fallthru
      _
    %p170 = scmp.lt.s32.totalorder %s11, 2
    // Predicated region
    $region17: #{bottleneck_forward.8} parent=5 // pred_check
      %p171 = pneg %p170
    $region18: #{bottleneck_forward.8} parent=5 // pred_check_branch
      %173 = sbr.rel (%p171) target = $region20
    $region19: #{bottleneck_forward.8} parent=5 // pred_region
      // Predicated region
      $region21: #{bottleneck_forward.8} parent=19 // pred_check
        %p174 = pneg %p43
      $region22: #{bottleneck_forward.8} parent=19 // pred_check_branch
        %176 = sbr.rel (%p174) target = $region24
      $region23: #{bottleneck_forward.8} parent=19 // pred_region
        %p177 = scmp.lt.s32.totalorder %s18, 1
        %s178 = scalar_select %p177, %s18, 1
        %s179 = smul.addr %s178, 18
        %s180 = smul.addr %s179, 4
        %s181 = scalar_lea.vmem %s0, %s180
      $region24: #{bottleneck_forward.8} parent=19 // pred_fallthru
        _
      // Predicated region
      $region25: #{bottleneck_forward.8} parent=19 // pred_check
        %p182 = pneg %p69
      $region26: #{bottleneck_forward.8} parent=19 // pred_check_branch
        %184 = sbr.rel (%p182) target = $region28
      $region27: #{bottleneck_forward.8} parent=19 // pred_region
        %p185 = scmp.lt.s32.totalorder %s18, 1
        %s186 = scalar_select %p185, %s18, 1
        %s187 = smul.addr %s186, 18
        %s188 = smul.addr %s187, 4
        %s189 = scalar_lea.vmem %s1, %s188
      $region28: #{bottleneck_forward.8} parent=19 // pred_fallthru
        _
    $region20: #{bottleneck_forward.8} parent=5 // pred_fallthru
      _
    %p190 = scmp.le.s32.totalorder 1, %s11
    %p191 = scmp.lt.s32.totalorder %s11, 3
    %p192 = pnand %p190, %p191
    %p193 = pneg %p192
    // Predicated region
    $region29: #{bottleneck_forward.8} parent=5 // pred_check
      _
    $region30: #{bottleneck_forward.8} parent=5 // pred_check_branch
      %195 = sbr.rel (%p192) target = $region32
    $region31: #{bottleneck_forward.8} parent=5 // pred_region
      %s196 = ssub.s32 %s11, 1
      %p197 = scmp.lt.s32.totalorder %s20, 1
      %s198 = scalar_select %p197, %s20, 1
      %s199 = smul.addr %s198, 18
      %s200 = smul.addr %s199, 4
      %s201 = scalar_lea.vmem %s0, %s200
      %p202 = pneg %p49
      %p203 = pneg %p46
      %p204 = scmp.lt.s32.totalorder %s20, 1
      %s205 = scalar_select %p204, %s20, 1
      %s206 = smul.addr %s205, 18
      %s207 = smul.addr %s206, 4
      %s208 = scalar_lea.vmem %s1, %s207
      %p209 = pneg %p75
      %p210 = pneg %p72
      %p211 = pneg %p96
      %p212 = pneg %p93
      %p213 = pneg %p124
      %p214 = pneg %p121
      %s215 = smul.u32 8, %s21
      %p216 = scmp.lt.s32.totalorder %s20, 1
      %s217 = scalar_select %p216, %s20, 1
      %p218 = scmp.lt.s32.totalorder %s215, 7
      %s219 = scalar_select %p218, %s215, 7
      %s220 = smul.addr %s217, 8
      %s221 = sadd.s32 %s219, %s220
      %s222 = smul.addr %s221, 4
      %s223 = scalar_lea.vmem %s3, %s222
      %p224 = pneg %p152
      %p225 = pneg %p149
      %p226 = scmp.lt.s32.totalorder %s20, 1
      %s227 = scalar_select %p226, %s20, 1
      %p228 = scmp.lt.s32.totalorder %s21, 0
      %s229 = scalar_select %p228, %s21, 0
      %s230 = sadd.s32 %s229, %s227
      %s231 = smul.addr %s230, 2
      %s232 = scalar_lea.vmem %s4, %s231
      %p233 = scmp.lt.s32.totalorder %s20, 1
      %s234 = scalar_select %p233, %s20, 1
      %s235 = smul.addr %s234, 18
      %s236 = smul.addr %s235, 4
      %s237 = scalar_lea.vmem %s0, %s236
      %p238 = scmp.lt.s32.totalorder %s20, 1
      %s239 = scalar_select %p238, %s20, 1
      %s240 = smul.addr %s239, 18
      %s241 = smul.addr %s240, 4
      %s242 = scalar_lea.vmem %s1, %s241
      %s243 = smul.u32 8, %s21
      %p244 = scmp.lt.s32.totalorder %s20, 1
      %s245 = scalar_select %p244, %s20, 1
      %p246 = scmp.lt.s32.totalorder %s243, 7
      %s247 = scalar_select %p246, %s243, 7
      %s248 = smul.addr %s245, 8
      %s249 = sadd.s32 %s247, %s248
      %s250 = smul.addr %s249, 4
      %s251 = scalar_lea.vmem %s3, %s250
      %s252 = smul.u32 8, %s21
      %p253 = scmp.lt.s32.totalorder %s20, 1
      %s254 = scalar_select %p253, %s20, 1
      %p255 = scmp.lt.s32.totalorder %s21, 0
      %s256 = scalar_select %p255, %s21, 0
      %s257 = sadd.s32 %s256, %s254
      %s258 = smul.addr %s257, 2
      %s259 = scalar_lea.vmem %s4, %s258
      %s261 = smul.u32 %s21, 8
      %s262 = smul.u32 %s261, 2
      %s263 = smul.addr %s262, 4
      %s264 = scalar_lea.vmem %s237, %s263
      %v265 = vld [vmem:[%s264] sm:$0xf]
      %v266 = vld [vmem:[%s264 + $0x4] sm:$0x1]
      %v267 = vld [vmem:[%s264 + $0x8] sm:$0xf]
      %v268 = vld [vmem:[%s264 + $0xc] sm:$0x1]
      %v269 = vld [vmem:[%s264 + $0x10] sm:$0xf]
      %v270 = vld [vmem:[%s264 + $0x14] sm:$0x1]
      %v271 = vld [vmem:[%s264 + $0x18] sm:$0xf]
      %v272 = vld [vmem:[%s264 + $0x1c] sm:$0x1]
      %v273 = vld [vmem:[%s264 + $0x20] sm:$0xf]
      %v274 = vld [vmem:[%s264 + $0x24] sm:$0x1]
      %v275 = vld [vmem:[%s264 + $0x28] sm:$0xf]
      %v276 = vld [vmem:[%s264 + $0x2c] sm:$0x1]
      %v277 = vld [vmem:[%s264 + $0x30] sm:$0xf]
      %v278 = vld [vmem:[%s264 + $0x34] sm:$0x1]
      %v279 = vld [vmem:[%s264 + $0x38] sm:$0xf]
      %v280 = vld [vmem:[%s264 + $0x3c] sm:$0x1]
      %s281 = smul.addr %s262, 4
      %s282 = scalar_lea.vmem %s242, %s281
      %v283 = vld [vmem:[%s282] sm:$0xf]
      %v284 = vld [vmem:[%s282 + $0x4] sm:$0x1]
      %v285 = vld [vmem:[%s282 + $0x8] sm:$0xf]
      %v286 = vld [vmem:[%s282 + $0xc] sm:$0x1]
      %v287 = vld [vmem:[%s282 + $0x10] sm:$0xf]
      %v288 = vld [vmem:[%s282 + $0x14] sm:$0x1]
      %v289 = vld [vmem:[%s282 + $0x18] sm:$0xf]
      %v290 = vld [vmem:[%s282 + $0x1c] sm:$0x1]
      %v291 = vld [vmem:[%s282 + $0x20] sm:$0xf]
      %v292 = vld [vmem:[%s282 + $0x24] sm:$0x1]
      %v293 = vld [vmem:[%s282 + $0x28] sm:$0xf]
      %v294 = vld [vmem:[%s282 + $0x2c] sm:$0x1]
      %v295 = vld [vmem:[%s282 + $0x30] sm:$0xf]
      %v296 = vld [vmem:[%s282 + $0x34] sm:$0x1]
      %v297 = vld [vmem:[%s282 + $0x38] sm:$0xf]
      %v298 = vld [vmem:[%s282 + $0x3c] sm:$0x1]
      %s299 = sadd.s32 %s261, 1
      %s300 = smul.u32 %s299, 2
      %s301 = smul.addr %s300, 4
      %s302 = scalar_lea.vmem %s237, %s301
      %v303 = vld [vmem:[%s302] sm:$0xf]
      %v304 = vld [vmem:[%s302 + $0x4] sm:$0x1]
      %v305 = vld [vmem:[%s302 + $0x8] sm:$0xf]
      %v306 = vld [vmem:[%s302 + $0xc] sm:$0x1]
      %v307 = vld [vmem:[%s302 + $0x10] sm:$0xf]
      %v308 = vld [vmem:[%s302 + $0x14] sm:$0x1]
      %v309 = vld [vmem:[%s302 + $0x18] sm:$0xf]
      %v310 = vld [vmem:[%s302 + $0x1c] sm:$0x1]
      %v311 = vld [vmem:[%s302 + $0x20] sm:$0xf]
      %v312 = vld [vmem:[%s302 + $0x24] sm:$0x1]
      %v313 = vld [vmem:[%s302 + $0x28] sm:$0xf]
      %v314 = vld [vmem:[%s302 + $0x2c] sm:$0x1]
      %v315 = vld [vmem:[%s302 + $0x30] sm:$0xf]
      %v316 = vld [vmem:[%s302 + $0x34] sm:$0x1]
      %v317 = vld [vmem:[%s302 + $0x38] sm:$0xf]
      %v318 = vld [vmem:[%s302 + $0x3c] sm:$0x1]
      %v335 = vunpack.c.l.b16 %v265
      %v336 = vunpack.c.l.b16 %v266
      %v337 = vunpack.c.l.b16 %v267
      %v338 = vunpack.c.l.b16 %v268
      %v339 = vunpack.c.l.b16 %v269
      %v340 = vunpack.c.l.b16 %v270
      %v341 = vunpack.c.l.b16 %v271
      %v342 = vunpack.c.l.b16 %v272
      %v343 = vunpack.c.l.b16 %v273
      %v344 = vunpack.c.l.b16 %v274
      %v345 = vunpack.c.l.b16 %v275
      %v346 = vunpack.c.l.b16 %v276
      %v347 = vunpack.c.l.b16 %v277
      %v348 = vunpack.c.l.b16 %v278
      %v349 = vunpack.c.l.b16 %v279
      %v350 = vunpack.c.l.b16 %v280
      %v351 = vpack.c.b16 %v336, %v335
      %v352 = vpack.c.b16 %v338, %v337
      %v353 = vpack.c.b16 %v340, %v339
      %v354 = vpack.c.b16 %v342, %v341
      %v355 = vpack.c.b16 %v344, %v343
      %v356 = vpack.c.b16 %v346, %v345
      %v357 = vpack.c.b16 %v348, %v347
      %v358 = vpack.c.b16 %v350, %v349
      %v360 = vshrl.u32 %v351, 16
      %v362 = vshll.u32 %v351, 16
      %v364 = vrot.slane %v362, 1
      %v365 = vor.u32 %v360, %v364
      %v367 = vshrl.u32 %v352, 16
      %v369 = vshll.u32 %v352, 16
      %v371 = vrot.slane %v369, 1
      %v372 = vor.u32 %v367, %v371
      %v374 = vshrl.u32 %v353, 16
      %v376 = vshll.u32 %v353, 16
      %v378 = vrot.slane %v376, 1
      %v379 = vor.u32 %v374, %v378
      %v381 = vshrl.u32 %v354, 16
      %v383 = vshll.u32 %v354, 16
      %v385 = vrot.slane %v383, 1
      %v386 = vor.u32 %v381, %v385
      %v388 = vshrl.u32 %v355, 16
      %v390 = vshll.u32 %v355, 16
      %v392 = vrot.slane %v390, 1
      %v393 = vor.u32 %v388, %v392
      %v395 = vshrl.u32 %v356, 16
      %v397 = vshll.u32 %v356, 16
      %v399 = vrot.slane %v397, 1
      %v400 = vor.u32 %v395, %v399
      %v402 = vshrl.u32 %v357, 16
      %v404 = vshll.u32 %v357, 16
      %v406 = vrot.slane %v404, 1
      %v407 = vor.u32 %v402, %v406
      %v409 = vshrl.u32 %v358, 16
      %v411 = vshll.u32 %v358, 16
      %v413 = vrot.slane %v411, 1
      %v414 = vor.u32 %v409, %v413
      %415 = vrot.lane.b32.xlu0 %v365, 16
      %v416 = vpop.permute.xlu0 %415
      %417 = vrot.lane.b32.xlu0 %v372, 16
      %v418 = vpop.permute.xlu0 %417
      %419 = vrot.lane.b32.xlu0 %v379, 16
      %v420 = vpop.permute.xlu0 %419
      %421 = vrot.lane.b32.xlu0 %v386, 16
      %v422 = vpop.permute.xlu0 %421
      %423 = vrot.lane.b32.xlu0 %v393, 16
      %v424 = vpop.permute.xlu0 %423
      %425 = vrot.lane.b32.xlu0 %v400, 16
      %v426 = vpop.permute.xlu0 %425
      %427 = vrot.lane.b32.xlu0 %v407, 16
      %v428 = vpop.permute.xlu0 %427
      %429 = vrot.lane.b32.xlu0 %v414, 16
      %v430 = vpop.permute.xlu0 %429
      %vm431 = vcmask 64512
      %vm440 = vcmask 130048
      %v442 = vsel %vm440, %v265, %v416
      %v444 = vsel %vm440, %v267, %v418
      %v446 = vsel %vm440, %v269, %v420
      %v448 = vsel %vm440, %v271, %v422
      %v450 = vsel %vm440, %v273, %v424
      %v452 = vsel %vm440, %v275, %v426
      %v454 = vsel %vm440, %v277, %v428
      %v456 = vsel %vm440, %v279, %v430
      %v457 = vld [vmem:[%s2] sm:$0xf]
      %v458 = vld [vmem:[%s2 + $0x4] sm:$0xf]
      %v459 = vld [vmem:[%s2 + $0x8] sm:$0xf]
      %v476 = vunpack.c.l.b16 %v283
      %v477 = vunpack.c.l.b16 %v284
      %v478 = vunpack.c.l.b16 %v285
      %v479 = vunpack.c.l.b16 %v286
      %v480 = vunpack.c.l.b16 %v287
      %v481 = vunpack.c.l.b16 %v288
      %v482 = vunpack.c.l.b16 %v289
      %v483 = vunpack.c.l.b16 %v290
      %v484 = vunpack.c.l.b16 %v291
      %v485 = vunpack.c.l.b16 %v292
      %v486 = vunpack.c.l.b16 %v293
      %v487 = vunpack.c.l.b16 %v294
      %v488 = vunpack.c.l.b16 %v295
      %v489 = vunpack.c.l.b16 %v296
      %v490 = vunpack.c.l.b16 %v297
      %v491 = vunpack.c.l.b16 %v298
      %v492 = vpack.c.b16 %v477, %v476
      %v493 = vpack.c.b16 %v479, %v478
      %v494 = vpack.c.b16 %v481, %v480
      %v495 = vpack.c.b16 %v483, %v482
      %v496 = vpack.c.b16 %v485, %v484
      %v497 = vpack.c.b16 %v487, %v486
      %v498 = vpack.c.b16 %v489, %v488
      %v499 = vpack.c.b16 %v491, %v490
      %v501 = vshrl.u32 %v492, 16
      %v503 = vshll.u32 %v492, 16
      %v505 = vrot.slane %v503, 1
      %v506 = vor.u32 %v501, %v505
      %v508 = vshrl.u32 %v493, 16
      %v510 = vshll.u32 %v493, 16
      %v512 = vrot.slane %v510, 1
      %v513 = vor.u32 %v508, %v512
      %v515 = vshrl.u32 %v494, 16
      %v517 = vshll.u32 %v494, 16
      %v519 = vrot.slane %v517, 1
      %v520 = vor.u32 %v515, %v519
      %v522 = vshrl.u32 %v495, 16
      %v524 = vshll.u32 %v495, 16
      %v526 = vrot.slane %v524, 1
      %v527 = vor.u32 %v522, %v526
      %v529 = vshrl.u32 %v496, 16
      %v531 = vshll.u32 %v496, 16
      %v533 = vrot.slane %v531, 1
      %v534 = vor.u32 %v529, %v533
      %v536 = vshrl.u32 %v497, 16
      %v538 = vshll.u32 %v497, 16
      %v540 = vrot.slane %v538, 1
      %v541 = vor.u32 %v536, %v540
      %v543 = vshrl.u32 %v498, 16
      %v545 = vshll.u32 %v498, 16
      %v547 = vrot.slane %v545, 1
      %v548 = vor.u32 %v543, %v547
      %v550 = vshrl.u32 %v499, 16
      %v552 = vshll.u32 %v499, 16
      %v554 = vrot.slane %v552, 1
      %v555 = vor.u32 %v550, %v554
      %556 = vrot.lane.b32.xlu0 %v506, 16
      %v557 = vpop.permute.xlu0 %556
      %558 = vrot.lane.b32.xlu0 %v513, 16
      %v559 = vpop.permute.xlu0 %558
      %560 = vrot.lane.b32.xlu0 %v520, 16
      %v561 = vpop.permute.xlu0 %560
      %562 = vrot.lane.b32.xlu0 %v527, 16
      %v563 = vpop.permute.xlu0 %562
      %564 = vrot.lane.b32.xlu0 %v534, 16
      %v565 = vpop.permute.xlu0 %564
      %566 = vrot.lane.b32.xlu0 %v541, 16
      %v567 = vpop.permute.xlu0 %566
      %568 = vrot.lane.b32.xlu0 %v548, 16
      %v569 = vpop.permute.xlu0 %568
      %570 = vrot.lane.b32.xlu0 %v555, 16
      %v571 = vpop.permute.xlu0 %570
      %v581 = vsel %vm440, %v283, %v557
      %v583 = vsel %vm440, %v285, %v559
      %v585 = vsel %vm440, %v287, %v561
      %v587 = vsel %vm440, %v289, %v563
      %v589 = vsel %vm440, %v291, %v565
      %v591 = vsel %vm440, %v293, %v567
      %v593 = vsel %vm440, %v295, %v569
      %v595 = vsel %vm440, %v297, %v571
      %s596 = scalar_lea.vmem %s2, 12
      %v597 = vld [vmem:[%s596] sm:$0xf]
      %v598 = vld [vmem:[%s596 + $0x4] sm:$0xf]
      %v599 = vld [vmem:[%s596 + $0x8] sm:$0xf]
      %v608 = vunpack.c.l.b16 %v581
      %v609 = vunpack.c.l.b16 %v583
      %v610 = vunpack.c.l.b16 %v585
      %v611 = vunpack.c.l.b16 %v587
      %v612 = vunpack.c.l.b16 %v589
      %v613 = vunpack.c.l.b16 %v591
      %v614 = vunpack.c.l.b16 %v593
      %v615 = vunpack.c.l.b16 %v595
      %v616 = vpack.c.b16 %v609, %v608
      %v617 = vpack.c.b16 %v611, %v610
      %v618 = vpack.c.b16 %v613, %v612
      %v619 = vpack.c.b16 %v615, %v614
      %v623 = vunpack.c.l.b16 %v597
      %v624 = vunpack.c.l.b16 %v598
      %v625 = vunpack.c.l.b16 %v599
      %v626 = vpack.c.b16 %v624, %v623
      %v627 = vpack.c.b16 %v625, %v625
      %vm629 = vcmask 195584
      %v631 = vsel %vm629, %v616, 0
      %v634 = vsel %vm629, %v617, 0
      %v637 = vsel %vm629, %v618, 0
      %v640 = vsel %vm629, %v619, 0
      %vm642 = vcmask 1043456
      %v644 = vsel %vm642, %v627, 0
      %646 = vmatpush.bf16.msra.mxu0 0
      %647 = vmatpush.bf16.msra.mxu0 0
      %648 = vmatpush.bf16.msra.mxu0 0
      %649 = vmatpush.bf16.msra.mxu0 0
      %650 = vmatpush.bf16.msra.mxu0 0
      %651 = vmatpush.bf16.msra.mxu0 0
      %652 = vmatpush.bf16.msra.mxu0 %v644
      %653 = vmatpush.bf16.msra.mxu0 %v626
      %654 = vmatmul.bf16.gmra.mxu0 %v631
      %v655 = vpop.f32.mrf.mxu0
      %v656 = vadd.f32 0.0, %v655
      %v657 = vpop.f32.mrf.mxu0
      %v658 = vadd.f32 0.0, %v657
      %659 = vmatmul.bf16.gmra.mxu0 %v634
      %v660 = vpop.f32.mrf.mxu0
      %v661 = vadd.f32 0.0, %v660
      %v662 = vpop.f32.mrf.mxu0
      %v663 = vadd.f32 0.0, %v662
      %664 = vmatmul.bf16.gmra.mxu0 %v637
      %v665 = vpop.f32.mrf.mxu0
      %v666 = vadd.f32 0.0, %v665
      %v667 = vpop.f32.mrf.mxu0
      %v668 = vadd.f32 0.0, %v667
      %669 = vmatmul.bf16.gmra.mxu0 %v640
      %v670 = vpop.f32.mrf.mxu0
      %v671 = vadd.f32 0.0, %v670
      %v672 = vpop.f32.mrf.mxu0
      %v673 = vadd.f32 0.0, %v672
      %674 = vdwg.mxu0
      %v683 = vunpack.c.l.b16 %v442
      %v684 = vunpack.c.l.b16 %v444
      %v685 = vunpack.c.l.b16 %v446
      %v686 = vunpack.c.l.b16 %v448
      %v687 = vunpack.c.l.b16 %v450
      %v688 = vunpack.c.l.b16 %v452
      %v689 = vunpack.c.l.b16 %v454
      %v690 = vunpack.c.l.b16 %v456
      %v691 = vpack.c.b16 %v684, %v683
      %v692 = vpack.c.b16 %v686, %v685
      %v693 = vpack.c.b16 %v688, %v687
      %v694 = vpack.c.b16 %v690, %v689
      %v698 = vunpack.c.l.b16 %v457
      %v699 = vunpack.c.l.b16 %v458
      %v700 = vunpack.c.l.b16 %v459
      %v701 = vpack.c.b16 %v699, %v698
      %v702 = vpack.c.b16 %v700, %v700
      %v705 = vsel %vm629, %v691, 0
      %v708 = vsel %vm629, %v692, 0
      %v711 = vsel %vm629, %v693, 0
      %v714 = vsel %vm629, %v694, 0
      %v717 = vsel %vm642, %v702, 0
      %719 = vmatpush.bf16.msra.mxu0 0
      %720 = vmatpush.bf16.msra.mxu0 0
      %721 = vmatpush.bf16.msra.mxu0 0
      %722 = vmatpush.bf16.msra.mxu0 0
      %723 = vmatpush.bf16.msra.mxu0 0
      %724 = vmatpush.bf16.msra.mxu0 0
      %725 = vmatpush.bf16.msra.mxu0 %v717
      %726 = vmatpush.bf16.msra.mxu0 %v701
      %727 = vmatmul.bf16.gmra.mxu0 %v705
      %v728 = vpop.f32.mrf.mxu0
      %v729 = vadd.f32 %v656, %v728
      %v730 = vpop.f32.mrf.mxu0
      %v731 = vadd.f32 %v658, %v730
      %732 = vmatmul.bf16.gmra.mxu0 %v708
      %v733 = vpop.f32.mrf.mxu0
      %v734 = vadd.f32 %v661, %v733
      %v735 = vpop.f32.mrf.mxu0
      %v736 = vadd.f32 %v663, %v735
      %737 = vmatmul.bf16.gmra.mxu0 %v711
      %v738 = vpop.f32.mrf.mxu0
      %v739 = vadd.f32 %v666, %v738
      %v740 = vpop.f32.mrf.mxu0
      %v741 = vadd.f32 %v668, %v740
      %742 = vmatmul.bf16.gmra.mxu0 %v714
      %v743 = vpop.f32.mrf.mxu0
      %v744 = vadd.f32 %v671, %v743
      %v745 = vpop.f32.mrf.mxu0
      %v746 = vadd.f32 %v673, %v745
      %747 = vdwg.mxu0
      %v764 = vunpack.c.l.b16 %v303
      %v765 = vunpack.c.l.b16 %v304
      %v766 = vunpack.c.l.b16 %v305
      %v767 = vunpack.c.l.b16 %v306
      %v768 = vunpack.c.l.b16 %v307
      %v769 = vunpack.c.l.b16 %v308
      %v770 = vunpack.c.l.b16 %v309
      %v771 = vunpack.c.l.b16 %v310
      %v772 = vunpack.c.l.b16 %v311
      %v773 = vunpack.c.l.b16 %v312
      %v774 = vunpack.c.l.b16 %v313
      %v775 = vunpack.c.l.b16 %v314
      %v776 = vunpack.c.l.b16 %v315
      %v777 = vunpack.c.l.b16 %v316
      %v778 = vunpack.c.l.b16 %v317
      %v779 = vunpack.c.l.b16 %v318
      %v780 = vpack.c.b16 %v765, %v764
      %v781 = vpack.c.b16 %v767, %v766
      %v782 = vpack.c.b16 %v769, %v768
      %v783 = vpack.c.b16 %v771, %v770
      %v784 = vpack.c.b16 %v773, %v772
      %v785 = vpack.c.b16 %v775, %v774
      %v786 = vpack.c.b16 %v777, %v776
      %v787 = vpack.c.b16 %v779, %v778
      %v789 = vshrl.u32 %v780, 16
      %v791 = vshll.u32 %v780, 16
      %v793 = vrot.slane %v791, 1
      %v794 = vor.u32 %v789, %v793
      %v796 = vshrl.u32 %v781, 16
      %v798 = vshll.u32 %v781, 16
      %v800 = vrot.slane %v798, 1
      %v801 = vor.u32 %v796, %v800
      %v803 = vshrl.u32 %v782, 16
      %v805 = vshll.u32 %v782, 16
      %v807 = vrot.slane %v805, 1
      %v808 = vor.u32 %v803, %v807
      %v810 = vshrl.u32 %v783, 16
      %v812 = vshll.u32 %v783, 16
      %v814 = vrot.slane %v812, 1
      %v815 = vor.u32 %v810, %v814
      %v817 = vshrl.u32 %v784, 16
      %v819 = vshll.u32 %v784, 16
      %v821 = vrot.slane %v819, 1
      %v822 = vor.u32 %v817, %v821
      %v824 = vshrl.u32 %v785, 16
      %v826 = vshll.u32 %v785, 16
      %v828 = vrot.slane %v826, 1
      %v829 = vor.u32 %v824, %v828
      %v831 = vshrl.u32 %v786, 16
      %v833 = vshll.u32 %v786, 16
      %v835 = vrot.slane %v833, 1
      %v836 = vor.u32 %v831, %v835
      %v838 = vshrl.u32 %v787, 16
      %v840 = vshll.u32 %v787, 16
      %v842 = vrot.slane %v840, 1
      %v843 = vor.u32 %v838, %v842
      %844 = vrot.lane.b32.xlu0 %v794, 16
      %v845 = vpop.permute.xlu0 %844
      %846 = vrot.lane.b32.xlu0 %v801, 16
      %v847 = vpop.permute.xlu0 %846
      %848 = vrot.lane.b32.xlu0 %v808, 16
      %v849 = vpop.permute.xlu0 %848
      %850 = vrot.lane.b32.xlu0 %v815, 16
      %v851 = vpop.permute.xlu0 %850
      %852 = vrot.lane.b32.xlu0 %v822, 16
      %v853 = vpop.permute.xlu0 %852
      %854 = vrot.lane.b32.xlu0 %v829, 16
      %v855 = vpop.permute.xlu0 %854
      %856 = vrot.lane.b32.xlu0 %v836, 16
      %v857 = vpop.permute.xlu0 %856
      %858 = vrot.lane.b32.xlu0 %v843, 16
      %v859 = vpop.permute.xlu0 %858
      %v869 = vsel %vm440, %v303, %v845
      %v871 = vsel %vm440, %v305, %v847
      %v873 = vsel %vm440, %v307, %v849
      %v875 = vsel %vm440, %v309, %v851
      %v877 = vsel %vm440, %v311, %v853
      %v879 = vsel %vm440, %v313, %v855
      %v881 = vsel %vm440, %v315, %v857
      %v883 = vsel %vm440, %v317, %v859
      %s884 = scalar_lea.vmem %s2, 24
      %v885 = vld [vmem:[%s884] sm:$0xf]
      %v886 = vld [vmem:[%s884 + $0x4] sm:$0xf]
      %v887 = vld [vmem:[%s884 + $0x8] sm:$0xf]
      %v896 = vunpack.c.l.b16 %v869
      %v897 = vunpack.c.l.b16 %v871
      %v898 = vunpack.c.l.b16 %v873
      %v899 = vunpack.c.l.b16 %v875
      %v900 = vunpack.c.l.b16 %v877
      %v901 = vunpack.c.l.b16 %v879
      %v902 = vunpack.c.l.b16 %v881
      %v903 = vunpack.c.l.b16 %v883
      %v904 = vpack.c.b16 %v897, %v896
      %v905 = vpack.c.b16 %v899, %v898
      %v906 = vpack.c.b16 %v901, %v900
      %v907 = vpack.c.b16 %v903, %v902
      %v911 = vunpack.c.l.b16 %v885
      %v912 = vunpack.c.l.b16 %v886
      %v913 = vunpack.c.l.b16 %v887
      %v914 = vpack.c.b16 %v912, %v911
      %v915 = vpack.c.b16 %v913, %v913
      %v918 = vsel %vm629, %v904, 0
      %v921 = vsel %vm629, %v905, 0
      %v924 = vsel %vm629, %v906, 0
      %v927 = vsel %vm629, %v907, 0
      %v930 = vsel %vm642, %v915, 0
      %932 = vmatpush.bf16.msra.mxu0 0
      %933 = vmatpush.bf16.msra.mxu0 0
      %934 = vmatpush.bf16.msra.mxu0 0
      %935 = vmatpush.bf16.msra.mxu0 0
      %936 = vmatpush.bf16.msra.mxu0 0
      %937 = vmatpush.bf16.msra.mxu0 0
      %938 = vmatpush.bf16.msra.mxu0 %v930
      %939 = vmatpush.bf16.msra.mxu0 %v914
      %940 = vmatmul.bf16.gmra.mxu0 %v918
      %v941 = vpop.f32.mrf.mxu0
      %v942 = vadd.f32 0.0, %v941
      %v943 = vpop.f32.mrf.mxu0
      %v944 = vadd.f32 0.0, %v943
      %945 = vmatmul.bf16.gmra.mxu0 %v921
      %v946 = vpop.f32.mrf.mxu0
      %v947 = vadd.f32 0.0, %v946
      %v948 = vpop.f32.mrf.mxu0
      %v949 = vadd.f32 0.0, %v948
      %950 = vmatmul.bf16.gmra.mxu0 %v924
      %v951 = vpop.f32.mrf.mxu0
      %v952 = vadd.f32 0.0, %v951
      %v953 = vpop.f32.mrf.mxu0
      %v954 = vadd.f32 0.0, %v953
      %955 = vmatmul.bf16.gmra.mxu0 %v927
      %v956 = vpop.f32.mrf.mxu0
      %v957 = vadd.f32 0.0, %v956
      %v958 = vpop.f32.mrf.mxu0
      %v959 = vadd.f32 0.0, %v958
      %960 = vdwg.mxu0
      %v961 = vadd.f32 %v729, %v942
      %v962 = vadd.f32 %v731, %v944
      %v963 = vadd.f32 %v734, %v947
      %v964 = vadd.f32 %v736, %v949
      %v965 = vadd.f32 %v739, %v952
      %v966 = vadd.f32 %v741, %v954
      %v967 = vadd.f32 %v744, %v957
      %v968 = vadd.f32 %v746, %v959
      %v969 = vpack.c.bf16 %v961, %v961
      %v970 = vpack.c.bf16 %v962, %v962
      %v971 = vpack.c.bf16 %v963, %v963
      %v972 = vpack.c.bf16 %v964, %v964
      %v973 = vpack.c.bf16 %v965, %v965
      %v974 = vpack.c.bf16 %v966, %v966
      %v975 = vpack.c.bf16 %v967, %v967
      %v976 = vpack.c.bf16 %v968, %v968
      %vm977 = vcmask 60416
      %978 = vst.msk [vmem:[%s251] sm:$0xf] %vm977, %v969
      %979 = vst.msk [vmem:[%s251 + $0x4] sm:$0xf] %vm977, %v970
      %980 = vst.msk [vmem:[%s251 + $0x8] sm:$0xf] %vm977, %v971
      %981 = vst.msk [vmem:[%s251 + $0xc] sm:$0xf] %vm977, %v972
      %982 = vst.msk [vmem:[%s251 + $0x10] sm:$0xf] %vm977, %v973
      %983 = vst.msk [vmem:[%s251 + $0x14] sm:$0xf] %vm977, %v974
      %984 = vst.msk [vmem:[%s251 + $0x18] sm:$0xf] %vm977, %v975
      %985 = vst.msk [vmem:[%s251 + $0x1c] sm:$0xf] %vm977, %v976
      %v986 = vsel %vm431, %v961, 0.0
      %v987 = vsel %vm431, %v962, 0.0
      %v988 = vadd.f32 %v986, %v987
      %v989 = vsel %vm431, %v963, 0.0
      %v990 = vadd.f32 %v988, %v989
      %v991 = vsel %vm431, %v964, 0.0
      %v992 = vadd.f32 %v990, %v991
      %v993 = vsel %vm431, %v965, 0.0
      %v994 = vadd.f32 %v992, %v993
      %v995 = vsel %vm431, %v966, 0.0
      %v996 = vadd.f32 %v994, %v995
      %v997 = vsel %vm431, %v967, 0.0
      %v998 = vadd.f32 %v996, %v997
      %v999 = vsel %vm431, %v968, 0.0
      %v1000 = vadd.f32 %v998, %v999
      %v1001 = vrot.slane %v1000, 4
      %v1002 = vadd.f32 %v1000, %v1001
      %v1003 = vrot.slane %v1002, 2
      %v1004 = vadd.f32 %v1002, %v1003
      %v1005 = vrot.slane %v1004, 1
      %v1006 = vadd.f32 %v1004, %v1005
      %vm1007 = vcmask 57344
      %1008 = vst.msk [vmem:[%s259] sm:$0x1] %vm1007, %v1006
      %v1009 = vmul.f32 %v961, %v961
      %v1010 = vmul.f32 %v962, %v962
      %v1011 = vmul.f32 %v963, %v963
      %v1012 = vmul.f32 %v964, %v964
      %v1013 = vmul.f32 %v965, %v965
      %v1014 = vmul.f32 %v966, %v966
      %v1015 = vmul.f32 %v967, %v967
      %v1016 = vmul.f32 %v968, %v968
      %v1017 = vsel %vm431, %v1009, 0.0
      %v1018 = vsel %vm431, %v1010, 0.0
      %v1019 = vadd.f32 %v1017, %v1018
      %v1020 = vsel %vm431, %v1011, 0.0
      %v1021 = vadd.f32 %v1019, %v1020
      %v1022 = vsel %vm431, %v1012, 0.0
      %v1023 = vadd.f32 %v1021, %v1022
      %v1024 = vsel %vm431, %v1013, 0.0
      %v1025 = vadd.f32 %v1023, %v1024
      %v1026 = vsel %vm431, %v1014, 0.0
      %v1027 = vadd.f32 %v1025, %v1026
      %v1028 = vsel %vm431, %v1015, 0.0
      %v1029 = vadd.f32 %v1027, %v1028
      %v1030 = vsel %vm431, %v1016, 0.0
      %v1031 = vadd.f32 %v1029, %v1030
      %v1032 = vrot.slane %v1031, 4
      %v1033 = vadd.f32 %v1031, %v1032
      %v1034 = vrot.slane %v1033, 2
      %v1035 = vadd.f32 %v1033, %v1034
      %v1036 = vrot.slane %v1035, 1
      %v1037 = vadd.f32 %v1035, %v1036
      %1038 = vst.msk [vmem:[%s259 + $0x1] sm:$0x1] %vm1007, %v1037
      %s1039 = smul.u32 8, %s21
      %p1040 = scmp.lt.s32.totalorder %s20, 1
      %s1041 = scalar_select %p1040, %s20, 1
      %p1042 = scmp.lt.s32.totalorder %s1039, 7
      %s1043 = scalar_select %p1042, %s1039, 7
      %s1044 = smul.addr %s1041, 8
      %s1045 = sadd.s32 %s1043, %s1044
      %s1046 = smul.addr %s1045, 4
      %s1047 = scalar_lea.vmem %s3, %s1046
      %p1048 = scmp.lt.s32.totalorder %s20, 1
      %s1049 = scalar_select %p1048, %s20, 1
      %p1050 = scmp.lt.s32.totalorder %s21, 0
      %s1051 = scalar_select %p1050, %s21, 0
      %s1052 = sadd.s32 %s1051, %s1049
      %s1053 = smul.addr %s1052, 2
      %s1054 = scalar_lea.vmem %s4, %s1053
      // Predicated region
      $region33: #{bottleneck_forward.8} parent=31 // pred_check
        %p1055 = pneg %p121
      $region34: #{bottleneck_forward.8} parent=31 // pred_check_branch
        %1057 = sbr.rel (%p1055) target = $region36
      $region35: #{bottleneck_forward.8} parent=31 // pred_region
        %s1058 = smul.u32 8, %s21
      $region36: #{bottleneck_forward.8} parent=31 // pred_fallthru
        _
      // Predicated region
      $region37: #{bottleneck_forward.8} parent=31 // pred_check
        %p1059 = pneg %p149
      $region38: #{bottleneck_forward.8} parent=31 // pred_check_branch
        %1061 = sbr.rel (%p1059) target = $region40
      $region39: #{bottleneck_forward.8} parent=31 // pred_region
        _
      $region40: #{bottleneck_forward.8} parent=31 // pred_fallthru
        _
    $region32: #{bottleneck_forward.8} parent=5 // pred_fallthru
      _
    %p1062 = scmp.le.s32.totalorder 2, %s11
    // Predicated region
    $region41: #{bottleneck_forward.8} parent=5 // pred_check
      %p1063 = pneg %p1062
    $region42: #{bottleneck_forward.8} parent=5 // pred_check_branch
      %1065 = sbr.rel (%p1063) target = $region44
    $region43: #{bottleneck_forward.8} parent=5 // pred_region
      %s1066 = ssub.s32 %s11, 2
      // Predicated region
      $region45: #{bottleneck_forward.8} parent=43 // pred_check
        %p1067 = pneg %p127
      $region46: #{bottleneck_forward.8} parent=43 // pred_check_branch
        %1069 = sbr.rel (%p1067) target = $region48
      $region47: #{bottleneck_forward.8} parent=43 // pred_region
        %s1070 = smul.u32 8, %s23
        %p1071 = scmp.lt.s32.totalorder %s22, 1
        %s1072 = scalar_select %p1071, %s22, 1
        %p1073 = scmp.lt.s32.totalorder %s1070, 7
        %s1074 = scalar_select %p1073, %s1070, 7
        %s1075 = smul.addr %s1072, 8
        %s1076 = sadd.s32 %s1074, %s1075
        %s1077 = smul.addr %s1076, 4
        %s1078 = scalar_lea.vmem %s3, %s1077
      $region48: #{bottleneck_forward.8} parent=43 // pred_fallthru
        _
      // Predicated region
      $region49: #{bottleneck_forward.8} parent=43 // pred_check
        %p1079 = pneg %p155
      $region50: #{bottleneck_forward.8} parent=43 // pred_check_branch
        %1081 = sbr.rel (%p1079) target = $region52
      $region51: #{bottleneck_forward.8} parent=43 // pred_region
        %p1082 = scmp.lt.s32.totalorder %s22, 1
        %s1083 = scalar_select %p1082, %s22, 1
        %p1084 = scmp.lt.s32.totalorder %s23, 0
        %s1085 = scalar_select %p1084, %s23, 0
        %s1086 = sadd.s32 %s1085, %s1083
        %s1087 = smul.addr %s1086, 2
        %s1088 = scalar_lea.vmem %s4, %s1087
      $region52: #{bottleneck_forward.8} parent=43 // pred_fallthru
        _
    $region44: #{bottleneck_forward.8} parent=5 // pred_fallthru
      _
  $region6: #{bottleneck_forward.8} parent=0 // loop_footer
    %s15 = sadd.s32 1, %s11
  $region7: #{bottleneck_forward.8} parent=0 // loop_footer_branch
    %10 = sbr.rel target = $region3
  $region8: #{bottleneck_forward.8} parent=0 // loop_exit
    _

</llo_original>
